<compile_context>
chip_gen: v5e
topology: v5e:2x2
jax: 0.10.0
libtpu: 0.0.40
codegen_flags: <defaults>
</compile_context>

<pallas_src>
import jax
import jax.numpy as jnp
from jax.experimental import pallas as pl
from jax.experimental.pallas import tpu as pltpu


def _round_up(x, m):
    return ((x + m - 1) // m) * m


def _mlp_kernel(x_ref, w1_ref, wc_ref, bc_ref, o_ref):
    """Fused: (x @ w1) on the MXU, folded affine tail as VPU mul + lane reduce."""
    # f32 -> bf16 cast happens here (VMEM), not in the wrapper.
    h = jnp.dot(x_ref[...].astype(w1_ref.dtype), w1_ref[...],
                preferred_element_type=jnp.float32)            # (block_b, 1024) f32
    # Folded tail: per-row dot with the f32 column + scalar bias (VPU + XLU; MXU stays idle).
    y = jnp.sum(h * wc_ref[...], axis=-1) + bc_ref[0]          # (block_b,) f32
    # Lane-dense store: one (1, block_b) row per grid step.
    o_ref[...] = y[None, :].astype(o_ref.dtype)


def aesthetic_predictor_forward(x, prepared, *, block_b=256, out_dtype=jnp.float32):
    """x: (B, input_size) float32.  prepared: output of prepare_params()."""
    w1, wc, bc = prepared
    B, D = x.shape
    H = w1.shape[1]

    # Batch tile: multiples of 128 keep the output lane-dense and the MXU sublane
    # dim full; prefer >=2 grid steps so a 2-TensorCore chip (v7x) splits the work.
    Bp128 = _round_up(B, 128)
    block_b = max(128, min(block_b, Bp128))
    if block_b >= Bp128 and Bp128 >= 256:
        block_b = _round_up(Bp128 // 2, 128)
    Bp = _round_up(B, block_b)
    if Bp != B:  # only materializes when B is not a multiple of block_b
        x = jnp.pad(x, ((0, Bp - B), (0, 0)))
    # NOTE: x stays f32 in HBM; the bf16 cast is done inside the kernel.

    grid = (Bp // block_b,)

    in_specs = [
        pl.BlockSpec((block_b, D), lambda i: (i, 0)),           # x tile (f32)
        pl.BlockSpec((D, H), lambda i: (0, 0)),                 # w1 (bf16), grid-invariant
        pl.BlockSpec((1, H), lambda i: (0, 0)),                 # wc (f32), grid-invariant
        pl.BlockSpec(memory_space=pltpu.MemorySpace.SMEM),      # bc scalar (f32)
    ]
    out_spec = pl.BlockSpec((1, block_b), lambda i: (0, i))

    flops = 2 * Bp * D * H + 2 * Bp * H
    bytes_accessed = (Bp * D * 4            # x read once, f32
                      + D * H * 2           # w1 bf16
                      + H * 4 + 4           # wc + bc
                      + Bp * 4)             # output

    y = pl.pallas_call(
        _mlp_kernel,
        out_shape=jax.ShapeDtypeStruct((1, Bp), out_dtype),
        grid=grid,
        in_specs=in_specs,
        out_specs=out_spec,
        compiler_params=pltpu.CompilerParams(
            dimension_semantics=("parallel",),
            vmem_limit_bytes=32 * 1024 * 1024,
        ),
        cost_estimate=pl.CostEstimate(
            flops=flops, transcendentals=0, bytes_accessed=bytes_accessed),
    )(x, w1, wc, bc)
    return y[0, :B].reshape(B, 1)


def init_params(key, input_size):
    """Deterministic init mimicking PyTorch nn.Linear defaults
    (uniform(-1/sqrt(fan_in), 1/sqrt(fan_in)) for both W and b).
    Weights stored as (in, out) — transposed relative to PyTorch's (out, in)."""
    dims = [input_size, 1024, 128, 64, 16, 1]
    params = []
    for fan_in, fan_out in zip(dims[:-1], dims[1:]):
        key, kw, kb = jax.random.split(key, 3)
        bound = 1.0 / jnp.sqrt(jnp.float32(fan_in))
        w = jax.random.uniform(kw, (fan_in, fan_out), jnp.float32, -bound, bound)
        b = jax.random.uniform(kb, (1, fan_out), jnp.float32, -bound, bound)
        params.append((w, b))
    return params


def prepare_params(params, dtype=jnp.bfloat16):
    """Fold everything after the first Linear (Dropout = identity in eval, no
    activations) into a single f32 column wc (1,1024) and scalar bias bc.
      y = (x @ w1 + b1) @ w2 @ w3 @ w4 @ w5 + (bias chain)
        = (x @ w1) @ w_tail + (b1 @ w_tail + b_tail)
    Folding is done in f32; only w1 is cast to the MXU compute dtype."""
    (w1, b1), (w2, b2), (w3, b3), (w4, b4), (w5, b5) = params
    w_tail = w2 @ w3 @ w4 @ w5                        # (1024, 1)
    b_tail = ((b2 @ w3 + b3) @ w4 + b4) @ w5 + b5     # (1, 1)
    wc = w_tail.reshape(1, -1).astype(jnp.float32)    # (1, 1024), stays f32
    bc = (b1 @ w_tail + b_tail).reshape(1).astype(jnp.float32)  # (1,)
    return w1.astype(dtype), wc, bc


def reference_forward(x, params):
    """Pure-f32 equivalent of the PyTorch module in eval mode."""
    h = x
    for w, b in params:
        h = h @ w + b
    return h


def reference_prepared(x, prepared):
    """Same arithmetic path as the kernel (bf16 x/w1, f32 accumulation, folded
    f32 tail), via plain XLA — used for a tight numerical check."""
    w1, wc, bc = prepared
    h = jnp.dot(x.astype(w1.dtype), w1, preferred_element_type=jnp.float32)
    return (jnp.sum(h * wc, axis=-1) + bc[0])[:, None]


if __name__ == "__main__":
    key = jax.random.PRNGKey(0)
    input_size = 768   # CLIP ViT-L/14 embedding width
    batch = 256        # -> block_b=128, 2 grid steps (feeds both v7x TensorCores)

    kp, kx = jax.random.split(key)
    params = init_params(kp, input_size)
    x = jax.random.normal(kx, (batch, input_size), dtype=jnp.float32)

    prepared = prepare_params(params, dtype=jnp.bfloat16)
    out = aesthetic_predictor_forward(x, prepared)
    out = jax.block_until_ready(out)
    assert out.shape == (batch, 1), out.shape

    # Tight check: kernel vs XLA on the identical (folded, bf16-w1) parameters.
    ref_p = reference_prepared(x, prepared)
    err_p = float(jnp.max(jnp.abs(out - ref_p)))
    assert err_p < 1e-2, f"kernel vs prepared-params reference: max abs err {err_p}"

    # Fidelity check vs the original f32, 5-layer (PyTorch-eval) module.
    ref = reference_forward(x, params)
    err = float(jnp.max(jnp.abs(out - ref)))
    assert err < 3e-2, f"kernel vs f32 module reference: max abs err {err}"

    print("KERNEL_OK")
</pallas_src>

<mosaic_0001>
module attributes {stable_mosaic.version = 11 : i64} {
  func.func @_mlp_kernel(%arg0: i32, %arg1: memref<128x768xf32, #tpu.memory_space<vmem>>, %arg2: memref<768x1024xbf16, #tpu.memory_space<vmem>>, %arg3: memref<1x1024xf32, #tpu.memory_space<vmem>>, %arg4: memref<1xf32, #tpu.memory_space<smem>>, %arg5: memref<1x128xf32, #tpu.memory_space<vmem>>) attributes {dimension_semantics = [#tpu.dimension_semantics<parallel>], iteration_bounds = array<i64: 2>, scalar_prefetch = 0 : i64, scratch_operands = 0 : i64, tpu.core_type = #tpu.core_type<tc>, window_params = [{transform_indices = @transform_0, window_bounds = array<i64: 128, 768>}, {pipeline_mode = #tpu.pipeline_mode<synchronous>, transform_indices = @transform_1, window_bounds = array<i64: 768, 1024>}, {pipeline_mode = #tpu.pipeline_mode<synchronous>, transform_indices = @transform_2, window_bounds = array<i64: 1, 1024>}, {transform_indices = @transform_3, window_bounds = array<i64: 1>}, {transform_indices = @transform_4, window_bounds = array<i64: 1, 128>}]} {
    %c0 = arith.constant 0 : index
    %c0_0 = arith.constant 0 : index
    %0 = vector.load %arg1[%c0, %c0_0] : memref<128x768xf32, #tpu.memory_space<vmem>>, vector<128x768xf32>
    %1 = arith.truncf %0 : vector<128x768xf32> to vector<128x768xbf16>
    %c0_1 = arith.constant 0 : index
    %c0_2 = arith.constant 0 : index
    %2 = vector.load %arg2[%c0_1, %c0_2] : memref<768x1024xbf16, #tpu.memory_space<vmem>>, vector<768x1024xbf16>
    %cst = arith.constant dense<0.000000e+00> : vector<128x1024xf32>
    %3 = tpu.matmul %1, %2, %cst {dimension_numbers = #tpu.dot_dimension_numbers<[1], [0], [0], [1], [0, 0, 1, 1], [], []>} : vector<128x768xbf16>, vector<768x1024xbf16>, vector<128x1024xf32> -> vector<128x1024xf32>
    %c0_3 = arith.constant 0 : index
    %c0_4 = arith.constant 0 : index
    %4 = vector.load %arg3[%c0_3, %c0_4] : memref<1x1024xf32, #tpu.memory_space<vmem>>, vector<1x1024xf32>
    %5 = vector.broadcast %4 : vector<1x1024xf32> to vector<128x1024xf32>
    %6 = arith.mulf %3, %5 : vector<128x1024xf32>
    %cst_5 = arith.constant dense<0.000000e+00> : vector<128xf32>
    %7 = vector.multi_reduction <add>, %6, %cst_5 [1] : vector<128x1024xf32> to vector<128xf32>
    %c0_6 = arith.constant 0 : index
    %8 = memref.load %arg4[%c0_6] : memref<1xf32, #tpu.memory_space<smem>>
    %9 = vector.broadcast %8 : f32 to vector<128xf32>
    %10 = arith.addf %7, %9 : vector<128xf32>
    %11 = vector.shape_cast %10 : vector<128xf32> to vector<1x128xf32>
    %c0_7 = arith.constant 0 : index
    %c0_8 = arith.constant 0 : index
    %12 = vector.load %arg5[%c0_7, %c0_8] : memref<1x128xf32, #tpu.memory_space<vmem>>, vector<1x128xf32>
    tpu.vector_store %arg5[%c0_7, %c0_8], %11 {strides = array<i32>} : memref<1x128xf32, #tpu.memory_space<vmem>>, vector<1x128xf32>,
    return
  }
  func.func @transform_0(%arg0: i32) -> (i32, i32) {
    %c0_i32 = arith.constant 0 : i32
    %c0_i32_0 = arith.constant 0 : i32
    return %arg0, %c0_i32 : i32, i32
  }
  func.func @transform_1(%arg0: i32) -> (i32, i32) {
    %c0_i32 = arith.constant 0 : i32
    %c0_i32_0 = arith.constant 0 : i32
    %c0_i32_1 = arith.constant 0 : i32
    return %c0_i32, %c0_i32_0 : i32, i32
  }
  func.func @transform_2(%arg0: i32) -> (i32, i32) {
    %c0_i32 = arith.constant 0 : i32
    %c0_i32_0 = arith.constant 0 : i32
    %c0_i32_1 = arith.constant 0 : i32
    return %c0_i32, %c0_i32_0 : i32, i32
  }
  func.func @transform_3(%arg0: i32) -> i32 {
    %c0_i32 = arith.constant 0 : i32
    %c0_i32_0 = arith.constant 0 : i32
    return %c0_i32 : i32
  }
  func.func @transform_4(%arg0: i32) -> (i32, i32) {
    %c0_i32 = arith.constant 0 : i32
    %c0_i32_0 = arith.constant 0 : i32
    return %c0_i32, %arg0 : i32, i32
  }
}

</mosaic_0001>

<llo_original>
// kernel: tpu_custom_call.1
$region0: #{tpu_custom_call.1}
  #allocation0 [shape = 'u32[]', space=smem, size = 0x4, offset = 0x4, fixed_abs, tag = 'smem constant byte address 0x4 - core index']
  #allocation1 [shape = 'u32[72,128]{1,0:T(1,128)}', space=vmem, size = 0x9000, scoped, tag = 'internal scratch']
  #allocation2 [shape = 'f32[1]{0:T(128)S(6)}', space=smem, size = 0x200, scoped, tag = 'scoped memory for tpu_custom_call.1']
  %s0 = inlined_call_operand.hbm [shape: f32[256,768], index: 0, kind: input, shape index: {}]
  %s1 = inlined_call_operand.hbm [shape: bf16[768,1024], index: 1, kind: input, shape index: {}]
  %s2 = inlined_call_operand.hbm [shape: f32[1,1024], index: 2, kind: input, shape index: {}]
  %s3 = inlined_call_operand.<no memory space> [shape: f32[1], index: 3, kind: input, shape index: {}]
  %s4 = inlined_call_operand.hbm [shape: f32[1,256], index: 4, kind: output, shape index: {}]
  %s5 = sld [smem:[#allocation0]]
  $region61: #{tpu_custom_call.1} parent=0
    _
  %s7 = ssub.s32 1, %s5
  %s8 = scalar_select 0, %s7, %s5
  %9 = sst [smem:[#allocation2]] %s3
  $region1: #{tpu_custom_call.1} parent=0
    #allocation3 [shape = 'u8[786432]{0}', space=vmem, size = 0xc0000, scoped, tag = 'input window, operand 0']
    #allocation4 [shape = 's32[2]{0}', space=sflag, size = 0x8, scoped, tag = 'scoped memory for tpu_custom_call.1']
    #allocation5 [shape = 's32[2]{0}', space=sflag, size = 0x8, scoped, tag = 'scoped memory for tpu_custom_call.1']
    #allocation6 [shape = 'u8[1572864]{0}', space=vmem, size = 0x180000, scoped, tag = 'input window, operand 1, single buffered']
    #allocation7 [shape = 's32[1]{0}', space=sflag, size = 0x4, scoped, tag = 'scoped memory for tpu_custom_call.1']
    #allocation8 [shape = 'u8[4096]{0}', space=vmem, size = 0x1000, scoped, tag = 'input window, operand 2, single buffered']
    #allocation9 [shape = 'u8[1024]{0}', space=vmem, size = 0x400, scoped, tag = 'output window, operand 0']
    %10 = vsyncpa [#allocation4], 0
    %s11 = scalar_lea.sflag [#allocation4], 1
    %12 = vsyncpa %s11, 0
    %13 = vsyncpa [#allocation7], 0
    %14 = vsyncpa [#allocation5], 0
    %s15 = scalar_lea.sflag [#allocation5], 1
    %16 = vsyncpa %s15, 0
    loop: start=0, step=1, limit=4
    $region2: #{tpu_custom_call.1} parent=1 // loop_pre_header
      _
    $region3: #{tpu_custom_call.1} parent=1 // loop_header
      %s18 = sphi 0, %s22
      %p19 = scmp.ge.s32.totalorder %s18, 4
      %s28 = sphi 0, %s30
      %s31 = sphi 0, %s28
      %s32 = sphi 0, %s31
      %s48 = sphi 0, %s32
      %s52 = sphi 0, %s52
      %s54 = sphi 0, %s52
      %s55 = sphi 0, %s54
      %s69 = sphi 0, %s55
      %s73 = sphi 0, %s73
      %s75 = sphi 0, %s73
      %s76 = sphi 0, %s75
      %s90 = sphi 0, %s76
      %s94 = sphi 0, %s94
      %s96 = sphi 0, %s94
      %s97 = sphi 0, %s96
      %s111 = sphi 0, %s97
      %s117 = sphi 0, %s119
      %s120 = sphi 0, %s117
      %s121 = sphi 0, %s120
      %s137 = sphi 0, %s121
    $region4: #{tpu_custom_call.1} parent=1 // loop_header_branch
      %21 = sbr.rel (%p19) target = $region8
    $region5: #{tpu_custom_call.1} parent=1 // loop_body
      %s23 = ssub.s32 %s18, 1
      %s24 = ssub.s32 %s18, 2
      %s25 = sadd.s32 %s18, 1
      %s26 = ssub.s32 %s18, %s25
      %p27 = scmp.eq.s32.totalorder %s26, 0
      %s29 = sadd.s32 %s28, 1
      %s30 = scalar_select %p27, %s28, %s29
      %p33 = pneg %p27
      %p34 = scmp.eq.s32.totalorder %s18, 1
      %p35 = por %p33, %p34
      %p36 = scmp.ne.s32.totalorder %s28, %s31
      %p37 = scmp.eq.s32.totalorder %s18, 0
      %p38 = por %p36, %p37
      %p39 = scmp.ne.s32.totalorder %s28, %s31
      %p40 = scmp.eq.s32.totalorder %s23, 1
      %p41 = por %p39, %p40
      %p42 = scmp.ne.s32.totalorder %s31, %s32
      %p43 = scmp.eq.s32.totalorder %s23, 0
      %p44 = por %p42, %p43
      %p45 = scmp.ne.s32.totalorder %s31, %s32
      %p46 = scmp.eq.s32.totalorder %s24, 1
      %p47 = por %p45, %p46
      %p49 = scmp.ne.s32.totalorder %s32, %s48
      %p50 = scmp.eq.s32.totalorder %s24, 0
      %p51 = por %p49, %p50
      %s53 = sadd.s32 %s52, 1
      %p56 = scmp.eq.s32.totalorder %s18, 1
      %p57 = scmp.ne.s32.totalorder %s52, %s54
      %p58 = scmp.eq.s32.totalorder %s18, 0
      %p59 = por %p57, %p58
      %p60 = scmp.ne.s32.totalorder %s52, %s54
      %p61 = scmp.eq.s32.totalorder %s23, 1
      %p62 = por %p60, %p61
      %p63 = scmp.ne.s32.totalorder %s54, %s55
      %p64 = scmp.eq.s32.totalorder %s23, 0
      %p65 = por %p63, %p64
      %p66 = scmp.ne.s32.totalorder %s54, %s55
      %p67 = scmp.eq.s32.totalorder %s24, 1
      %p68 = por %p66, %p67
      %p70 = scmp.ne.s32.totalorder %s55, %s69
      %p71 = scmp.eq.s32.totalorder %s24, 0
      %p72 = por %p70, %p71
      %s74 = sadd.s32 %s73, 1
      %p77 = scmp.eq.s32.totalorder %s18, 1
      %p78 = scmp.ne.s32.totalorder %s73, %s75
      %p79 = scmp.eq.s32.totalorder %s18, 0
      %p80 = por %p78, %p79
      %p81 = scmp.ne.s32.totalorder %s73, %s75
      %p82 = scmp.eq.s32.totalorder %s23, 1
      %p83 = por %p81, %p82
      %p84 = scmp.ne.s32.totalorder %s75, %s76
      %p85 = scmp.eq.s32.totalorder %s23, 0
      %p86 = por %p84, %p85
      %p87 = scmp.ne.s32.totalorder %s75, %s76
      %p88 = scmp.eq.s32.totalorder %s24, 1
      %p89 = por %p87, %p88
      %p91 = scmp.ne.s32.totalorder %s76, %s90
      %p92 = scmp.eq.s32.totalorder %s24, 0
      %p93 = por %p91, %p92
      %s95 = sadd.s32 %s94, 1
      %p98 = scmp.eq.s32.totalorder %s18, 1
      %p99 = scmp.ne.s32.totalorder %s94, %s96
      %p100 = scmp.eq.s32.totalorder %s18, 0
      %p101 = por %p99, %p100
      %p102 = scmp.ne.s32.totalorder %s94, %s96
      %p103 = scmp.eq.s32.totalorder %s23, 1
      %p104 = por %p102, %p103
      %p105 = scmp.ne.s32.totalorder %s96, %s97
      %p106 = scmp.eq.s32.totalorder %s23, 0
      %p107 = por %p105, %p106
      %p108 = scmp.ne.s32.totalorder %s96, %s97
      %p109 = scmp.eq.s32.totalorder %s24, 1
      %p110 = por %p108, %p109
      %p112 = scmp.ne.s32.totalorder %s97, %s111
      %p113 = scmp.eq.s32.totalorder %s24, 0
      %p114 = por %p112, %p113
      %s115 = ssub.s32 %s18, %s25
      %p116 = scmp.eq.s32.totalorder %s115, 0
      %s118 = sadd.s32 %s117, 1
      %s119 = scalar_select %p116, %s117, %s118
      %p122 = pneg %p116
      %p123 = scmp.eq.s32.totalorder %s18, 1
      %p124 = por %p122, %p123
      %p125 = scmp.ne.s32.totalorder %s117, %s120
      %p126 = scmp.eq.s32.totalorder %s18, 0
      %p127 = por %p125, %p126
      %p128 = scmp.ne.s32.totalorder %s117, %s120
      %p129 = scmp.eq.s32.totalorder %s23, 1
      %p130 = por %p128, %p129
      %p131 = scmp.ne.s32.totalorder %s120, %s121
      %p132 = scmp.eq.s32.totalorder %s23, 0
      %p133 = por %p131, %p132
      %p134 = scmp.ne.s32.totalorder %s120, %s121
      %p135 = scmp.eq.s32.totalorder %s24, 1
      %p136 = por %p134, %p135
      %p138 = scmp.ne.s32.totalorder %s121, %s137
      %p139 = scmp.eq.s32.totalorder %s24, 0
      %p140 = por %p138, %p139
      %p141 = scmp.le.s32.totalorder 1, %s18
      %p142 = scmp.lt.s32.totalorder %s18, 3
      %p143 = pnand %p141, %p142
      %p144 = pneg %p143
      // Predicated region
      $region9: #{tpu_custom_call.1} parent=5 // pred_check
        _
      $region10: #{tpu_custom_call.1} parent=5 // pred_check_branch
        %146 = sbr.rel (%p143) target = $region12
      $region11: #{tpu_custom_call.1} parent=5 // pred_region
        %s147 = ssub.s32 %s18, 1
        // Predicated region
        $region13: #{tpu_custom_call.1} parent=11 // pred_check
          %p148 = pneg %p65
        $region14: #{tpu_custom_call.1} parent=11 // pred_check_branch
          %150 = sbr.rel (%p148) target = $region16
        $region15: #{tpu_custom_call.1} parent=11 // pred_region
          %152 = vsyncadd [#allocation7], 0
          %s153 = sshll.u32 %s1, 4
          %s154 = int_to_ptr.hbm [resolvable:$true] %s153
          %s155 = sshll.u32 [#allocation6], 4
          %s156 = int_to_ptr.vmem [resolvable:$true] %s155
          %161 = dma.hbm_to_vmem [thread:$0]  %s154, 49152, %s156, [#allocation7], 512, 512, 32
        $region16: #{tpu_custom_call.1} parent=11 // pred_fallthru
          _
        // Predicated region
        $region17: #{tpu_custom_call.1} parent=11 // pred_check
          %p162 = pneg %p86
        $region18: #{tpu_custom_call.1} parent=11 // pred_check_branch
          %164 = sbr.rel (%p162) target = $region20
        $region19: #{tpu_custom_call.1} parent=11 // pred_region
          %166 = vsyncadd [#allocation7], 0
          %s168 = sshll.u32 %s2, 4
          %s169 = int_to_ptr.hbm [resolvable:$true] %s168
          %s170 = sshll.u32 [#allocation8], 4
          %s171 = int_to_ptr.vmem [resolvable:$true] %s170
          %173 = dma.hbm_to_vmem [thread:$0]  %s169, 128, %s171, [#allocation7]
        $region20: #{tpu_custom_call.1} parent=11 // pred_fallthru
          _
        // Predicated region
        $region21: #{tpu_custom_call.1} parent=11 // pred_check
          %p174 = pneg %p107
        $region22: #{tpu_custom_call.1} parent=11 // pred_check_branch
          %176 = sbr.rel (%p174) target = $region24
        $region23: #{tpu_custom_call.1} parent=11 // pred_region
          _
        $region24: #{tpu_custom_call.1} parent=11 // pred_fallthru
          _
      $region12: #{tpu_custom_call.1} parent=5 // pred_fallthru
        _
      %p177 = scmp.lt.s32.totalorder %s18, 2
      // Predicated region
      $region25: #{tpu_custom_call.1} parent=5 // pred_check
        %p178 = pneg %p177
      $region26: #{tpu_custom_call.1} parent=5 // pred_check_branch
        %180 = sbr.rel (%p178) target = $region28
      $region27: #{tpu_custom_call.1} parent=5 // pred_region
        // Predicated region
        $region29: #{tpu_custom_call.1} parent=27 // pred_check
          %p181 = pneg %p38
        $region30: #{tpu_custom_call.1} parent=27 // pred_check_branch
          %183 = sbr.rel (%p181) target = $region32
        $region31: #{tpu_custom_call.1} parent=27 // pred_region
          %s184 = sand.u32 %s28, 1
          %s185 = scalar_lea.sflag [#allocation4], %s184
          %s186 = sand.u32 %s28, 1
          %s187 = smul.addr %s186, 768
          %s188 = scalar_lea.vmem [#allocation3], %s187
          %s189 = smul.u32 16, %s18
          %191 = vsyncadd %s185, 0
          %s192 = smul.addr %s189, 6
          %s193 = smul.addr %s192, 8
          %s194 = scalar_lea.hbm %s0, %s193
          %s195 = sshll.u32 %s194, 4
          %s196 = int_to_ptr.hbm [resolvable:$true] %s195
          %s197 = sshll.u32 %s188, 4
          %s198 = int_to_ptr.vmem [resolvable:$true] %s197
          %203 = dma.hbm_to_vmem [thread:$0]  %s196, 12288, %s198, %s185, 768, 768, 48
        $region32: #{tpu_custom_call.1} parent=27 // pred_fallthru
          _
      $region28: #{tpu_custom_call.1} parent=5 // pred_fallthru
        _
      %p204 = scmp.le.s32.totalorder 1, %s18
      %p205 = scmp.lt.s32.totalorder %s18, 3
      %p206 = pnand %p204, %p205
      %p207 = pneg %p206
      // Predicated region
      $region33: #{tpu_custom_call.1} parent=5 // pred_check
        _
      $region34: #{tpu_custom_call.1} parent=5 // pred_check_branch
        %209 = sbr.rel (%p206) target = $region36
      $region35: #{tpu_custom_call.1} parent=5 // pred_region
        %s210 = ssub.s32 %s18, 1
        %s211 = sand.u32 %s31, 1
        %s212 = scalar_lea.sflag [#allocation4], %s211
        %s213 = sand.u32 %s31, 1
        %s214 = smul.addr %s213, 768
        %s215 = scalar_lea.vmem [#allocation3], %s214
        // Predicated region
        $region37: #{tpu_custom_call.1} parent=35 // pred_check
          %p216 = pneg %p44
        $region38: #{tpu_custom_call.1} parent=35 // pred_check_branch
          %218 = sbr.rel (%p216) target = $region40
        $region39: #{tpu_custom_call.1} parent=35 // pred_region
          %220 = dma.done %s212, 12288
        $region40: #{tpu_custom_call.1} parent=35 // pred_fallthru
          _
        // Predicated region
        $region41: #{tpu_custom_call.1} parent=35 // pred_check
          %p221 = pneg %p65
        $region42: #{tpu_custom_call.1} parent=35 // pred_check_branch
          %223 = sbr.rel (%p221) target = $region44
        $region43: #{tpu_custom_call.1} parent=35 // pred_region
          %225 = dma.done [#allocation7], 49152
        $region44: #{tpu_custom_call.1} parent=35 // pred_fallthru
          _
        // Predicated region
        $region45: #{tpu_custom_call.1} parent=35 // pred_check
          %p226 = pneg %p86
        $region46: #{tpu_custom_call.1} parent=35 // pred_check_branch
          %228 = sbr.rel (%p226) target = $region48
        $region47: #{tpu_custom_call.1} parent=35 // pred_region
          %230 = dma.done [#allocation7], 128
        $region48: #{tpu_custom_call.1} parent=35 // pred_fallthru
          _
        %s231 = sand.u32 %s31, 1
        %s232 = scalar_lea.sflag [#allocation4], %s231
        %s233 = sand.u32 %s31, 1
        %s234 = smul.addr %s233, 768
        %s235 = scalar_lea.vmem [#allocation3], %s234
        %p236 = pneg %p44
        %p237 = pneg %p41
        %p238 = pneg %p65
        %p239 = pneg %p62
        %p240 = pneg %p86
        %p241 = pneg %p83
        %p242 = pneg %p107
        %p243 = pneg %p104
        %p244 = pneg %p133
        %p245 = pneg %p130
        %s246 = sand.u32 %s120, 1
        %s247 = scalar_lea.sflag [#allocation5], %s246
        %s248 = sand.u32 %s120, 1
        %s249 = scalar_lea.vmem [#allocation9], %s248
        %s250 = smul.u32 16, %s23
        %v251 = vld [vmem:[%s215] sm:$0xff]
        %v252 = vld [vmem:[%s215 + $0x8] sm:$0xff]
        %v253 = vld [vmem:[%s215 + $0x10] sm:$0xff]
        %v254 = vld [vmem:[%s215 + $0x18] sm:$0xff]
        %v255 = vld [vmem:[%s215 + $0x20] sm:$0xff]
        %v256 = vld [vmem:[%s215 + $0x28] sm:$0xff]
        %v257 = vld [vmem:[%s215 + $0x30] sm:$0xff]
        %v258 = vld [vmem:[%s215 + $0x38] sm:$0xff]
        %v259 = vld [vmem:[%s215 + $0x40] sm:$0xff]
        %v260 = vld [vmem:[%s215 + $0x48] sm:$0xff]
        %v261 = vld [vmem:[%s215 + $0x50] sm:$0xff]
        %v262 = vld [vmem:[%s215 + $0x58] sm:$0xff]
        %v263 = vld [vmem:[%s215 + $0x60] sm:$0xff]
        %v264 = vld [vmem:[%s215 + $0x68] sm:$0xff]
        %v265 = vld [vmem:[%s215 + $0x70] sm:$0xff]
        %v266 = vld [vmem:[%s215 + $0x78] sm:$0xff]
        %v267 = vld [vmem:[%s215 + $0x80] sm:$0xff]
        %v268 = vld [vmem:[%s215 + $0x88] sm:$0xff]
        %v269 = vld [vmem:[%s215 + $0x90] sm:$0xff]
        %v270 = vld [vmem:[%s215 + $0x98] sm:$0xff]
        %v271 = vld [vmem:[%s215 + $0xa0] sm:$0xff]
        %v272 = vld [vmem:[%s215 + $0xa8] sm:$0xff]
        %v273 = vld [vmem:[%s215 + $0xb0] sm:$0xff]
        %v274 = vld [vmem:[%s215 + $0xb8] sm:$0xff]
        %v275 = vld [vmem:[%s215 + $0xc0] sm:$0xff]
        %v276 = vld [vmem:[%s215 + $0xc8] sm:$0xff]
        %v277 = vld [vmem:[%s215 + $0xd0] sm:$0xff]
        %v278 = vld [vmem:[%s215 + $0xd8] sm:$0xff]
        %v279 = vld [vmem:[%s215 + $0xe0] sm:$0xff]
        %v280 = vld [vmem:[%s215 + $0xe8] sm:$0xff]
        %v281 = vld [vmem:[%s215 + $0xf0] sm:$0xff]
        %v282 = vld [vmem:[%s215 + $0xf8] sm:$0xff]
        %v283 = vld [vmem:[%s215 + $0x100] sm:$0xff]
        %v284 = vld [vmem:[%s215 + $0x108] sm:$0xff]
        %v285 = vld [vmem:[%s215 + $0x110] sm:$0xff]
        %v286 = vld [vmem:[%s215 + $0x118] sm:$0xff]
        %v287 = vld [vmem:[%s215 + $0x120] sm:$0xff]
        %v288 = vld [vmem:[%s215 + $0x128] sm:$0xff]
        %v289 = vld [vmem:[%s215 + $0x130] sm:$0xff]
        %v290 = vld [vmem:[%s215 + $0x138] sm:$0xff]
        %v291 = vld [vmem:[%s215 + $0x140] sm:$0xff]
        %v292 = vld [vmem:[%s215 + $0x148] sm:$0xff]
        %v293 = vld [vmem:[%s215 + $0x150] sm:$0xff]
        %v294 = vld [vmem:[%s215 + $0x158] sm:$0xff]
        %v295 = vld [vmem:[%s215 + $0x160] sm:$0xff]
        %v296 = vld [vmem:[%s215 + $0x168] sm:$0xff]
        %v297 = vld [vmem:[%s215 + $0x170] sm:$0xff]
        %v298 = vld [vmem:[%s215 + $0x178] sm:$0xff]
        %v299 = vld [vmem:[%s215 + $0x180] sm:$0xff]
        %v300 = vld [vmem:[%s215 + $0x188] sm:$0xff]
        %v301 = vld [vmem:[%s215 + $0x190] sm:$0xff]
        %v302 = vld [vmem:[%s215 + $0x198] sm:$0xff]
        %v303 = vld [vmem:[%s215 + $0x1a0] sm:$0xff]
        %v304 = vld [vmem:[%s215 + $0x1a8] sm:$0xff]
        %v305 = vld [vmem:[%s215 + $0x1b0] sm:$0xff]
        %v306 = vld [vmem:[%s215 + $0x1b8] sm:$0xff]
        %v307 = vld [vmem:[%s215 + $0x1c0] sm:$0xff]
        %v308 = vld [vmem:[%s215 + $0x1c8] sm:$0xff]
        %v309 = vld [vmem:[%s215 + $0x1d0] sm:$0xff]
        %v310 = vld [vmem:[%s215 + $0x1d8] sm:$0xff]
        %v311 = vld [vmem:[%s215 + $0x1e0] sm:$0xff]
        %v312 = vld [vmem:[%s215 + $0x1e8] sm:$0xff]
        %v313 = vld [vmem:[%s215 + $0x1f0] sm:$0xff]
        %v314 = vld [vmem:[%s215 + $0x1f8] sm:$0xff]
        %v315 = vld [vmem:[%s215 + $0x200] sm:$0xff]
        %v316 = vld [vmem:[%s215 + $0x208] sm:$0xff]
        %v317 = vld [vmem:[%s215 + $0x210] sm:$0xff]
        %v318 = vld [vmem:[%s215 + $0x218] sm:$0xff]
        %v319 = vld [vmem:[%s215 + $0x220] sm:$0xff]
        %v320 = vld [vmem:[%s215 + $0x228] sm:$0xff]
        %v321 = vld [vmem:[%s215 + $0x230] sm:$0xff]
        %v322 = vld [vmem:[%s215 + $0x238] sm:$0xff]
        %v323 = vld [vmem:[%s215 + $0x240] sm:$0xff]
        %v324 = vld [vmem:[%s215 + $0x248] sm:$0xff]
        %v325 = vld [vmem:[%s215 + $0x250] sm:$0xff]
        %v326 = vld [vmem:[%s215 + $0x258] sm:$0xff]
        %v327 = vld [vmem:[%s215 + $0x260] sm:$0xff]
        %v328 = vld [vmem:[%s215 + $0x268] sm:$0xff]
        %v329 = vld [vmem:[%s215 + $0x270] sm:$0xff]
        %v330 = vld [vmem:[%s215 + $0x278] sm:$0xff]
        %v331 = vld [vmem:[%s215 + $0x280] sm:$0xff]
        %v332 = vld [vmem:[%s215 + $0x288] sm:$0xff]
        %v333 = vld [vmem:[%s215 + $0x290] sm:$0xff]
        %v334 = vld [vmem:[%s215 + $0x298] sm:$0xff]
        %v335 = vld [vmem:[%s215 + $0x2a0] sm:$0xff]
        %v336 = vld [vmem:[%s215 + $0x2a8] sm:$0xff]
        %v337 = vld [vmem:[%s215 + $0x2b0] sm:$0xff]
        %v338 = vld [vmem:[%s215 + $0x2b8] sm:$0xff]
        %v339 = vld [vmem:[%s215 + $0x2c0] sm:$0xff]
        %v340 = vld [vmem:[%s215 + $0x2c8] sm:$0xff]
        %v341 = vld [vmem:[%s215 + $0x2d0] sm:$0xff]
        %v342 = vld [vmem:[%s215 + $0x2d8] sm:$0xff]
        %v343 = vld [vmem:[%s215 + $0x2e0] sm:$0xff]
        %v344 = vld [vmem:[%s215 + $0x2e8] sm:$0xff]
        %v345 = vld [vmem:[%s215 + $0x2f0] sm:$0xff]
        %v346 = vld [vmem:[%s215 + $0x2f8] sm:$0xff]
        %v347 = vpack.c.bf16 %v257, %v251
        %v348 = vpack.c.bf16 %v258, %v252
        %v349 = vpack.c.bf16 %v259, %v253
        %v350 = vpack.c.bf16 %v260, %v254
        %v351 = vpack.c.bf16 %v261, %v255
        %v352 = vpack.c.bf16 %v262, %v256
        %v353 = vpack.c.bf16 %v269, %v263
        %v354 = vpack.c.bf16 %v270, %v264
        %v355 = vpack.c.bf16 %v271, %v265
        %v356 = vpack.c.bf16 %v272, %v266
        %v357 = vpack.c.bf16 %v273, %v267
        %v358 = vpack.c.bf16 %v274, %v268
        %v359 = vpack.c.bf16 %v281, %v275
        %v360 = vpack.c.bf16 %v282, %v276
        %v361 = vpack.c.bf16 %v283, %v277
        %v362 = vpack.c.bf16 %v284, %v278
        %v363 = vpack.c.bf16 %v285, %v279
        %v364 = vpack.c.bf16 %v286, %v280
        %v365 = vpack.c.bf16 %v293, %v287
        %v366 = vpack.c.bf16 %v294, %v288
        %v367 = vpack.c.bf16 %v295, %v289
        %v368 = vpack.c.bf16 %v296, %v290
        %v369 = vpack.c.bf16 %v297, %v291
        %v370 = vpack.c.bf16 %v298, %v292
        %v371 = vpack.c.bf16 %v305, %v299
        %v372 = vpack.c.bf16 %v306, %v300
        %v373 = vpack.c.bf16 %v307, %v301
        %v374 = vpack.c.bf16 %v308, %v302
        %v375 = vpack.c.bf16 %v309, %v303
        %v376 = vpack.c.bf16 %v310, %v304
        %v377 = vpack.c.bf16 %v317, %v311
        %v378 = vpack.c.bf16 %v318, %v312
        %v379 = vpack.c.bf16 %v319, %v313
        %v380 = vpack.c.bf16 %v320, %v314
        %v381 = vpack.c.bf16 %v321, %v315
        %v382 = vpack.c.bf16 %v322, %v316
        %v383 = vpack.c.bf16 %v329, %v323
        %v384 = vpack.c.bf16 %v330, %v324
        %v385 = vpack.c.bf16 %v331, %v325
        %v386 = vpack.c.bf16 %v332, %v326
        %v387 = vpack.c.bf16 %v333, %v327
        %v388 = vpack.c.bf16 %v334, %v328
        %v389 = vpack.c.bf16 %v341, %v335
        %v390 = vpack.c.bf16 %v342, %v336
        %v391 = vpack.c.bf16 %v343, %v337
        %v392 = vpack.c.bf16 %v344, %v338
        %v393 = vpack.c.bf16 %v345, %v339
        %v394 = vpack.c.bf16 %v346, %v340
        %v395 = vld [vmem:[#allocation6] sm:$0xff]
        %v396 = vld [vmem:[#allocation6 + $0x8] sm:$0xff]
        %v397 = vld [vmem:[#allocation6 + $0x10] sm:$0xff]
        %v398 = vld [vmem:[#allocation6 + $0x18] sm:$0xff]
        %v399 = vld [vmem:[#allocation6 + $0x20] sm:$0xff]
        %v400 = vld [vmem:[#allocation6 + $0x28] sm:$0xff]
        %v401 = vld [vmem:[#allocation6 + $0x30] sm:$0xff]
        %v402 = vld [vmem:[#allocation6 + $0x38] sm:$0xff]
        %v403 = vld [vmem:[#allocation6 + $0x40] sm:$0xff]
        %v404 = vld [vmem:[#allocation6 + $0x48] sm:$0xff]
        %v405 = vld [vmem:[#allocation6 + $0x50] sm:$0xff]
        %v406 = vld [vmem:[#allocation6 + $0x58] sm:$0xff]
        %v407 = vld [vmem:[#allocation6 + $0x60] sm:$0xff]
        %v408 = vld [vmem:[#allocation6 + $0x68] sm:$0xff]
        %v409 = vld [vmem:[#allocation6 + $0x70] sm:$0xff]
        %v410 = vld [vmem:[#allocation6 + $0x78] sm:$0xff]
        %v411 = vld [vmem:[#allocation6 + $0x80] sm:$0xff]
        %v412 = vld [vmem:[#allocation6 + $0x88] sm:$0xff]
        %v413 = vld [vmem:[#allocation6 + $0x90] sm:$0xff]
        %v414 = vld [vmem:[#allocation6 + $0x98] sm:$0xff]
        %v415 = vld [vmem:[#allocation6 + $0xa0] sm:$0xff]
        %v416 = vld [vmem:[#allocation6 + $0xa8] sm:$0xff]
        %v417 = vld [vmem:[#allocation6 + $0xb0] sm:$0xff]
        %v418 = vld [vmem:[#allocation6 + $0xb8] sm:$0xff]
        %v419 = vld [vmem:[#allocation6 + $0xc0] sm:$0xff]
        %v420 = vld [vmem:[#allocation6 + $0xc8] sm:$0xff]
        %v421 = vld [vmem:[#allocation6 + $0xd0] sm:$0xff]
        %v422 = vld [vmem:[#allocation6 + $0xd8] sm:$0xff]
        %v423 = vld [vmem:[#allocation6 + $0xe0] sm:$0xff]
        %v424 = vld [vmem:[#allocation6 + $0xe8] sm:$0xff]
        %v425 = vld [vmem:[#allocation6 + $0xf0] sm:$0xff]
        %v426 = vld [vmem:[#allocation6 + $0xf8] sm:$0xff]
        %v427 = vld [vmem:[#allocation6 + $0x100] sm:$0xff]
        %v428 = vld [vmem:[#allocation6 + $0x108] sm:$0xff]
        %v429 = vld [vmem:[#allocation6 + $0x110] sm:$0xff]
        %v430 = vld [vmem:[#allocation6 + $0x118] sm:$0xff]
        %v431 = vld [vmem:[#allocation6 + $0x120] sm:$0xff]
        %v432 = vld [vmem:[#allocation6 + $0x128] sm:$0xff]
        %v433 = vld [vmem:[#allocation6 + $0x130] sm:$0xff]
        %v434 = vld [vmem:[#allocation6 + $0x138] sm:$0xff]
        %v435 = vld [vmem:[#allocation6 + $0x140] sm:$0xff]
        %v436 = vld [vmem:[#allocation6 + $0x148] sm:$0xff]
        %v437 = vld [vmem:[#allocation6 + $0x150] sm:$0xff]
        %v438 = vld [vmem:[#allocation6 + $0x158] sm:$0xff]
        %v439 = vld [vmem:[#allocation6 + $0x160] sm:$0xff]
        %v440 = vld [vmem:[#allocation6 + $0x168] sm:$0xff]
        %v441 = vld [vmem:[#allocation6 + $0x170] sm:$0xff]
        %v442 = vld [vmem:[#allocation6 + $0x178] sm:$0xff]
        %v443 = vld [vmem:[#allocation6 + $0x180] sm:$0xff]
        %v444 = vld [vmem:[#allocation6 + $0x188] sm:$0xff]
        %v445 = vld [vmem:[#allocation6 + $0x190] sm:$0xff]
        %v446 = vld [vmem:[#allocation6 + $0x198] sm:$0xff]
        %v447 = vld [vmem:[#allocation6 + $0x1a0] sm:$0xff]
        %v448 = vld [vmem:[#allocation6 + $0x1a8] sm:$0xff]
        %v449 = vld [vmem:[#allocation6 + $0x1b0] sm:$0xff]
        %v450 = vld [vmem:[#allocation6 + $0x1b8] sm:$0xff]
        %v451 = vld [vmem:[#allocation6 + $0x1c0] sm:$0xff]
        %v452 = vld [vmem:[#allocation6 + $0x1c8] sm:$0xff]
        %v453 = vld [vmem:[#allocation6 + $0x1d0] sm:$0xff]
        %v454 = vld [vmem:[#allocation6 + $0x1d8] sm:$0xff]
        %v455 = vld [vmem:[#allocation6 + $0x1e0] sm:$0xff]
        %v456 = vld [vmem:[#allocation6 + $0x1e8] sm:$0xff]
        %v457 = vld [vmem:[#allocation6 + $0x1f0] sm:$0xff]
        %v458 = vld [vmem:[#allocation6 + $0x1f8] sm:$0xff]
        %v459 = vld [vmem:[#allocation6 + $0x200] sm:$0xff]
        %v460 = vld [vmem:[#allocation6 + $0x208] sm:$0xff]
        %v461 = vld [vmem:[#allocation6 + $0x210] sm:$0xff]
        %v462 = vld [vmem:[#allocation6 + $0x218] sm:$0xff]
        %v463 = vld [vmem:[#allocation6 + $0x220] sm:$0xff]
        %v464 = vld [vmem:[#allocation6 + $0x228] sm:$0xff]
        %v465 = vld [vmem:[#allocation6 + $0x230] sm:$0xff]
        %v466 = vld [vmem:[#allocation6 + $0x238] sm:$0xff]
        %v467 = vld [vmem:[#allocation6 + $0x240] sm:$0xff]
        %v468 = vld [vmem:[#allocation6 + $0x248] sm:$0xff]
        %v469 = vld [vmem:[#allocation6 + $0x250] sm:$0xff]
        %v470 = vld [vmem:[#allocation6 + $0x258] sm:$0xff]
        %v471 = vld [vmem:[#allocation6 + $0x260] sm:$0xff]
        %v472 = vld [vmem:[#allocation6 + $0x268] sm:$0xff]
        %v473 = vld [vmem:[#allocation6 + $0x270] sm:$0xff]
        %v474 = vld [vmem:[#allocation6 + $0x278] sm:$0xff]
        %v475 = vld [vmem:[#allocation6 + $0x280] sm:$0xff]
        %v476 = vld [vmem:[#allocation6 + $0x288] sm:$0xff]
        %v477 = vld [vmem:[#allocation6 + $0x290] sm:$0xff]
        %v478 = vld [vmem:[#allocation6 + $0x298] sm:$0xff]
        %v479 = vld [vmem:[#allocation6 + $0x2a0] sm:$0xff]
        %v480 = vld [vmem:[#allocation6 + $0x2a8] sm:$0xff]
        %v481 = vld [vmem:[#allocation6 + $0x2b0] sm:$0xff]
        %v482 = vld [vmem:[#allocation6 + $0x2b8] sm:$0xff]
        %v483 = vld [vmem:[#allocation6 + $0x2c0] sm:$0xff]
        %v484 = vld [vmem:[#allocation6 + $0x2c8] sm:$0xff]
        %v485 = vld [vmem:[#allocation6 + $0x2d0] sm:$0xff]
        %v486 = vld [vmem:[#allocation6 + $0x2d8] sm:$0xff]
        %v487 = vld [vmem:[#allocation6 + $0x2e0] sm:$0xff]
        %v488 = vld [vmem:[#allocation6 + $0x2e8] sm:$0xff]
        %v489 = vld [vmem:[#allocation6 + $0x2f0] sm:$0xff]
        %v490 = vld [vmem:[#allocation6 + $0x2f8] sm:$0xff]
        %v491 = vld [vmem:[#allocation6 + $0x300] sm:$0xff]
        %v492 = vld [vmem:[#allocation6 + $0x308] sm:$0xff]
        %v493 = vld [vmem:[#allocation6 + $0x310] sm:$0xff]
        %v494 = vld [vmem:[#allocation6 + $0x318] sm:$0xff]
        %v495 = vld [vmem:[#allocation6 + $0x320] sm:$0xff]
        %v496 = vld [vmem:[#allocation6 + $0x328] sm:$0xff]
        %v497 = vld [vmem:[#allocation6 + $0x330] sm:$0xff]
        %v498 = vld [vmem:[#allocation6 + $0x338] sm:$0xff]
        %v499 = vld [vmem:[#allocation6 + $0x340] sm:$0xff]
        %v500 = vld [vmem:[#allocation6 + $0x348] sm:$0xff]
        %v501 = vld [vmem:[#allocation6 + $0x350] sm:$0xff]
        %v502 = vld [vmem:[#allocation6 + $0x358] sm:$0xff]
        %v503 = vld [vmem:[#allocation6 + $0x360] sm:$0xff]
        %v504 = vld [vmem:[#allocation6 + $0x368] sm:$0xff]
        %v505 = vld [vmem:[#allocation6 + $0x370] sm:$0xff]
        %v506 = vld [vmem:[#allocation6 + $0x378] sm:$0xff]
        %v507 = vld [vmem:[#allocation6 + $0x380] sm:$0xff]
        %v508 = vld [vmem:[#allocation6 + $0x388] sm:$0xff]
        %v509 = vld [vmem:[#allocation6 + $0x390] sm:$0xff]
        %v510 = vld [vmem:[#allocation6 + $0x398] sm:$0xff]
        %v511 = vld [vmem:[#allocation6 + $0x3a0] sm:$0xff]
        %v512 = vld [vmem:[#allocation6 + $0x3a8] sm:$0xff]
        %v513 = vld [vmem:[#allocation6 + $0x3b0] sm:$0xff]
        %v514 = vld [vmem:[#allocation6 + $0x3b8] sm:$0xff]
        %v515 = vld [vmem:[#allocation6 + $0x3c0] sm:$0xff]
        %v516 = vld [vmem:[#allocation6 + $0x3c8] sm:$0xff]
        %v517 = vld [vmem:[#allocation6 + $0x3d0] sm:$0xff]
        %v518 = vld [vmem:[#allocation6 + $0x3d8] sm:$0xff]
        %v519 = vld [vmem:[#allocation6 + $0x3e0] sm:$0xff]
        %v520 = vld [vmem:[#allocation6 + $0x3e8] sm:$0xff]
        %v521 = vld [vmem:[#allocation6 + $0x3f0] sm:$0xff]
        %v522 = vld [vmem:[#allocation6 + $0x3f8] sm:$0xff]
        %v523 = vld [vmem:[#allocation6 + $0x400] sm:$0xff]
        %v524 = vld [vmem:[#allocation6 + $0x408] sm:$0xff]
        %v525 = vld [vmem:[#allocation6 + $0x410] sm:$0xff]
        %v526 = vld [vmem:[#allocation6 + $0x418] sm:$0xff]
        %v527 = vld [vmem:[#allocation6 + $0x420] sm:$0xff]
        %v528 = vld [vmem:[#allocation6 + $0x428] sm:$0xff]
        %v529 = vld [vmem:[#allocation6 + $0x430] sm:$0xff]
        %v530 = vld [vmem:[#allocation6 + $0x438] sm:$0xff]
        %v531 = vld [vmem:[#allocation6 + $0x440] sm:$0xff]
        %v532 = vld [vmem:[#allocation6 + $0x448] sm:$0xff]
        %v533 = vld [vmem:[#allocation6 + $0x450] sm:$0xff]
        %v534 = vld [vmem:[#allocation6 + $0x458] sm:$0xff]
        %v535 = vld [vmem:[#allocation6 + $0x460] sm:$0xff]
        %v536 = vld [vmem:[#allocation6 + $0x468] sm:$0xff]
        %v537 = vld [vmem:[#allocation6 + $0x470] sm:$0xff]
        %v538 = vld [vmem:[#allocation6 + $0x478] sm:$0xff]
        %v539 = vld [vmem:[#allocation6 + $0x480] sm:$0xff]
        %v540 = vld [vmem:[#allocation6 + $0x488] sm:$0xff]
        %v541 = vld [vmem:[#allocation6 + $0x490] sm:$0xff]
        %v542 = vld [vmem:[#allocation6 + $0x498] sm:$0xff]
        %v543 = vld [vmem:[#allocation6 + $0x4a0] sm:$0xff]
        %v544 = vld [vmem:[#allocation6 + $0x4a8] sm:$0xff]
        %v545 = vld [vmem:[#allocation6 + $0x4b0] sm:$0xff]
        %v546 = vld [vmem:[#allocation6 + $0x4b8] sm:$0xff]
        %v547 = vld [vmem:[#allocation6 + $0x4c0] sm:$0xff]
        %v548 = vld [vmem:[#allocation6 + $0x4c8] sm:$0xff]
        %v549 = vld [vmem:[#allocation6 + $0x4d0] sm:$0xff]
        %v550 = vld [vmem:[#allocation6 + $0x4d8] sm:$0xff]
        %v551 = vld [vmem:[#allocation6 + $0x4e0] sm:$0xff]
        %v552 = vld [vmem:[#allocation6 + $0x4e8] sm:$0xff]
        %v553 = vld [vmem:[#allocation6 + $0x4f0] sm:$0xff]
        %v554 = vld [vmem:[#allocation6 + $0x4f8] sm:$0xff]
        %v555 = vld [vmem:[#allocation6 + $0x500] sm:$0xff]
        %v556 = vld [vmem:[#allocation6 + $0x508] sm:$0xff]
        %v557 = vld [vmem:[#allocation6 + $0x510] sm:$0xff]
        %v558 = vld [vmem:[#allocation6 + $0x518] sm:$0xff]
        %v559 = vld [vmem:[#allocation6 + $0x520] sm:$0xff]
        %v560 = vld [vmem:[#allocation6 + $0x528] sm:$0xff]
        %v561 = vld [vmem:[#allocation6 + $0x530] sm:$0xff]
        %v562 = vld [vmem:[#allocation6 + $0x538] sm:$0xff]
        %v563 = vld [vmem:[#allocation6 + $0x540] sm:$0xff]
        %v564 = vld [vmem:[#allocation6 + $0x548] sm:$0xff]
        %v565 = vld [vmem:[#allocation6 + $0x550] sm:$0xff]
        %v566 = vld [vmem:[#allocation6 + $0x558] sm:$0xff]
        %v567 = vld [vmem:[#allocation6 + $0x560] sm:$0xff]
        %v568 = vld [vmem:[#allocation6 + $0x568] sm:$0xff]
        %v569 = vld [vmem:[#allocation6 + $0x570] sm:$0xff]
        %v570 = vld [vmem:[#allocation6 + $0x578] sm:$0xff]
        %v571 = vld [vmem:[#allocation6 + $0x580] sm:$0xff]
        %v572 = vld [vmem:[#allocation6 + $0x588] sm:$0xff]
        %v573 = vld [vmem:[#allocation6 + $0x590] sm:$0xff]
        %v574 = vld [vmem:[#allocation6 + $0x598] sm:$0xff]
        %v575 = vld [vmem:[#allocation6 + $0x5a0] sm:$0xff]
        %v576 = vld [vmem:[#allocation6 + $0x5a8] sm:$0xff]
        %v577 = vld [vmem:[#allocation6 + $0x5b0] sm:$0xff]
        %v578 = vld [vmem:[#allocation6 + $0x5b8] sm:$0xff]
        %v579 = vld [vmem:[#allocation6 + $0x5c0] sm:$0xff]
        %v580 = vld [vmem:[#allocation6 + $0x5c8] sm:$0xff]
        %v581 = vld [vmem:[#allocation6 + $0x5d0] sm:$0xff]
        %v582 = vld [vmem:[#allocation6 + $0x5d8] sm:$0xff]
        %v583 = vld [vmem:[#allocation6 + $0x5e0] sm:$0xff]
        %v584 = vld [vmem:[#allocation6 + $0x5e8] sm:$0xff]
        %v585 = vld [vmem:[#allocation6 + $0x5f0] sm:$0xff]
        %v586 = vld [vmem:[#allocation6 + $0x5f8] sm:$0xff]
        %v587 = vld [vmem:[#allocation6 + $0x600] sm:$0xff]
        %v588 = vld [vmem:[#allocation6 + $0x608] sm:$0xff]
        %v589 = vld [vmem:[#allocation6 + $0x610] sm:$0xff]
        %v590 = vld [vmem:[#allocation6 + $0x618] sm:$0xff]
        %v591 = vld [vmem:[#allocation6 + $0x620] sm:$0xff]
        %v592 = vld [vmem:[#allocation6 + $0x628] sm:$0xff]
        %v593 = vld [vmem:[#allocation6 + $0x630] sm:$0xff]
        %v594 = vld [vmem:[#allocation6 + $0x638] sm:$0xff]
        %v595 = vld [vmem:[#allocation6 + $0x640] sm:$0xff]
        %v596 = vld [vmem:[#allocation6 + $0x648] sm:$0xff]
        %v597 = vld [vmem:[#allocation6 + $0x650] sm:$0xff]
        %v598 = vld [vmem:[#allocation6 + $0x658] sm:$0xff]
        %v599 = vld [vmem:[#allocation6 + $0x660] sm:$0xff]
        %v600 = vld [vmem:[#allocation6 + $0x668] sm:$0xff]
        %v601 = vld [vmem:[#allocation6 + $0x670] sm:$0xff]
        %v602 = vld [vmem:[#allocation6 + $0x678] sm:$0xff]
        %v603 = vld [vmem:[#allocation6 + $0x680] sm:$0xff]
        %v604 = vld [vmem:[#allocation6 + $0x688] sm:$0xff]
        %v605 = vld [vmem:[#allocation6 + $0x690] sm:$0xff]
        %v606 = vld [vmem:[#allocation6 + $0x698] sm:$0xff]
        %v607 = vld [vmem:[#allocation6 + $0x6a0] sm:$0xff]
        %v608 = vld [vmem:[#allocation6 + $0x6a8] sm:$0xff]
        %v609 = vld [vmem:[#allocation6 + $0x6b0] sm:$0xff]
        %v610 = vld [vmem:[#allocation6 + $0x6b8] sm:$0xff]
        %v611 = vld [vmem:[#allocation6 + $0x6c0] sm:$0xff]
        %v612 = vld [vmem:[#allocation6 + $0x6c8] sm:$0xff]
        %v613 = vld [vmem:[#allocation6 + $0x6d0] sm:$0xff]
        %v614 = vld [vmem:[#allocation6 + $0x6d8] sm:$0xff]
        %v615 = vld [vmem:[#allocation6 + $0x6e0] sm:$0xff]
        %v616 = vld [vmem:[#allocation6 + $0x6e8] sm:$0xff]
        %v617 = vld [vmem:[#allocation6 + $0x6f0] sm:$0xff]
        %v618 = vld [vmem:[#allocation6 + $0x6f8] sm:$0xff]
        %v619 = vld [vmem:[#allocation6 + $0x700] sm:$0xff]
        %v620 = vld [vmem:[#allocation6 + $0x708] sm:$0xff]
        %v621 = vld [vmem:[#allocation6 + $0x710] sm:$0xff]
        %v622 = vld [vmem:[#allocation6 + $0x718] sm:$0xff]
        %v623 = vld [vmem:[#allocation6 + $0x720] sm:$0xff]
        %v624 = vld [vmem:[#allocation6 + $0x728] sm:$0xff]
        %v625 = vld [vmem:[#allocation6 + $0x730] sm:$0xff]
        %v626 = vld [vmem:[#allocation6 + $0x738] sm:$0xff]
        %v627 = vld [vmem:[#allocation6 + $0x740] sm:$0xff]
        %v628 = vld [vmem:[#allocation6 + $0x748] sm:$0xff]
        %v629 = vld [vmem:[#allocation6 + $0x750] sm:$0xff]
        %v630 = vld [vmem:[#allocation6 + $0x758] sm:$0xff]
        %v631 = vld [vmem:[#allocation6 + $0x760] sm:$0xff]
        %v632 = vld [vmem:[#allocation6 + $0x768] sm:$0xff]
        %v633 = vld [vmem:[#allocation6 + $0x770] sm:$0xff]
        %v634 = vld [vmem:[#allocation6 + $0x778] sm:$0xff]
        %v635 = vld [vmem:[#allocation6 + $0x780] sm:$0xff]
        %v636 = vld [vmem:[#allocation6 + $0x788] sm:$0xff]
        %v637 = vld [vmem:[#allocation6 + $0x790] sm:$0xff]
        %v638 = vld [vmem:[#allocation6 + $0x798] sm:$0xff]
        %v639 = vld [vmem:[#allocation6 + $0x7a0] sm:$0xff]
        %v640 = vld [vmem:[#allocation6 + $0x7a8] sm:$0xff]
        %v641 = vld [vmem:[#allocation6 + $0x7b0] sm:$0xff]
        %v642 = vld [vmem:[#allocation6 + $0x7b8] sm:$0xff]
        %v643 = vld [vmem:[#allocation6 + $0x7c0] sm:$0xff]
        %v644 = vld [vmem:[#allocation6 + $0x7c8] sm:$0xff]
        %v645 = vld [vmem:[#allocation6 + $0x7d0] sm:$0xff]
        %v646 = vld [vmem:[#allocation6 + $0x7d8] sm:$0xff]
        %v647 = vld [vmem:[#allocation6 + $0x7e0] sm:$0xff]
        %v648 = vld [vmem:[#allocation6 + $0x7e8] sm:$0xff]
        %v649 = vld [vmem:[#allocation6 + $0x7f0] sm:$0xff]
        %v650 = vld [vmem:[#allocation6 + $0x7f8] sm:$0xff]
        %v651 = vld [vmem:[#allocation6 + $0x800] sm:$0xff]
        %v652 = vld [vmem:[#allocation6 + $0x808] sm:$0xff]
        %v653 = vld [vmem:[#allocation6 + $0x810] sm:$0xff]
        %v654 = vld [vmem:[#allocation6 + $0x818] sm:$0xff]
        %v655 = vld [vmem:[#allocation6 + $0x820] sm:$0xff]
        %v656 = vld [vmem:[#allocation6 + $0x828] sm:$0xff]
        %v657 = vld [vmem:[#allocation6 + $0x830] sm:$0xff]
        %v658 = vld [vmem:[#allocation6 + $0x838] sm:$0xff]
        %v659 = vld [vmem:[#allocation6 + $0x840] sm:$0xff]
        %v660 = vld [vmem:[#allocation6 + $0x848] sm:$0xff]
        %v661 = vld [vmem:[#allocation6 + $0x850] sm:$0xff]
        %v662 = vld [vmem:[#allocation6 + $0x858] sm:$0xff]
        %v663 = vld [vmem:[#allocation6 + $0x860] sm:$0xff]
        %v664 = vld [vmem:[#allocation6 + $0x868] sm:$0xff]
        %v665 = vld [vmem:[#allocation6 + $0x870] sm:$0xff]
        %v666 = vld [vmem:[#allocation6 + $0x878] sm:$0xff]
        %v667 = vld [vmem:[#allocation6 + $0x880] sm:$0xff]
        %v668 = vld [vmem:[#allocation6 + $0x888] sm:$0xff]
        %v669 = vld [vmem:[#allocation6 + $0x890] sm:$0xff]
        %v670 = vld [vmem:[#allocation6 + $0x898] sm:$0xff]
        %v671 = vld [vmem:[#allocation6 + $0x8a0] sm:$0xff]
        %v672 = vld [vmem:[#allocation6 + $0x8a8] sm:$0xff]
        %v673 = vld [vmem:[#allocation6 + $0x8b0] sm:$0xff]
        %v674 = vld [vmem:[#allocation6 + $0x8b8] sm:$0xff]
        %v675 = vld [vmem:[#allocation6 + $0x8c0] sm:$0xff]
        %v676 = vld [vmem:[#allocation6 + $0x8c8] sm:$0xff]
        %v677 = vld [vmem:[#allocation6 + $0x8d0] sm:$0xff]
        %v678 = vld [vmem:[#allocation6 + $0x8d8] sm:$0xff]
        %v679 = vld [vmem:[#allocation6 + $0x8e0] sm:$0xff]
        %v680 = vld [vmem:[#allocation6 + $0x8e8] sm:$0xff]
        %v681 = vld [vmem:[#allocation6 + $0x8f0] sm:$0xff]
        %v682 = vld [vmem:[#allocation6 + $0x8f8] sm:$0xff]
        %v683 = vld [vmem:[#allocation6 + $0x900] sm:$0xff]
        %v684 = vld [vmem:[#allocation6 + $0x908] sm:$0xff]
        %v685 = vld [vmem:[#allocation6 + $0x910] sm:$0xff]
        %v686 = vld [vmem:[#allocation6 + $0x918] sm:$0xff]
        %v687 = vld [vmem:[#allocation6 + $0x920] sm:$0xff]
        %v688 = vld [vmem:[#allocation6 + $0x928] sm:$0xff]
        %v689 = vld [vmem:[#allocation6 + $0x930] sm:$0xff]
        %v690 = vld [vmem:[#allocation6 + $0x938] sm:$0xff]
        %v691 = vld [vmem:[#allocation6 + $0x940] sm:$0xff]
        %v692 = vld [vmem:[#allocation6 + $0x948] sm:$0xff]
        %v693 = vld [vmem:[#allocation6 + $0x950] sm:$0xff]
        %v694 = vld [vmem:[#allocation6 + $0x958] sm:$0xff]
        %v695 = vld [vmem:[#allocation6 + $0x960] sm:$0xff]
        %v696 = vld [vmem:[#allocation6 + $0x968] sm:$0xff]
        %v697 = vld [vmem:[#allocation6 + $0x970] sm:$0xff]
        %v698 = vld [vmem:[#allocation6 + $0x978] sm:$0xff]
        %v699 = vld [vmem:[#allocation6 + $0x980] sm:$0xff]
        %v700 = vld [vmem:[#allocation6 + $0x988] sm:$0xff]
        %v701 = vld [vmem:[#allocation6 + $0x990] sm:$0xff]
        %v702 = vld [vmem:[#allocation6 + $0x998] sm:$0xff]
        %v703 = vld [vmem:[#allocation6 + $0x9a0] sm:$0xff]
        %v704 = vld [vmem:[#allocation6 + $0x9a8] sm:$0xff]
        %v705 = vld [vmem:[#allocation6 + $0x9b0] sm:$0xff]
        %v706 = vld [vmem:[#allocation6 + $0x9b8] sm:$0xff]
        %v707 = vld [vmem:[#allocation6 + $0x9c0] sm:$0xff]
        %v708 = vld [vmem:[#allocation6 + $0x9c8] sm:$0xff]
        %v709 = vld [vmem:[#allocation6 + $0x9d0] sm:$0xff]
        %v710 = vld [vmem:[#allocation6 + $0x9d8] sm:$0xff]
        %v711 = vld [vmem:[#allocation6 + $0x9e0] sm:$0xff]
        %v712 = vld [vmem:[#allocation6 + $0x9e8] sm:$0xff]
        %v713 = vld [vmem:[#allocation6 + $0x9f0] sm:$0xff]
        %v714 = vld [vmem:[#allocation6 + $0x9f8] sm:$0xff]
        %v715 = vld [vmem:[#allocation6 + $0xa00] sm:$0xff]
        %v716 = vld [vmem:[#allocation6 + $0xa08] sm:$0xff]
        %v717 = vld [vmem:[#allocation6 + $0xa10] sm:$0xff]
        %v718 = vld [vmem:[#allocation6 + $0xa18] sm:$0xff]
        %v719 = vld [vmem:[#allocation6 + $0xa20] sm:$0xff]
        %v720 = vld [vmem:[#allocation6 + $0xa28] sm:$0xff]
        %v721 = vld [vmem:[#allocation6 + $0xa30] sm:$0xff]
        %v722 = vld [vmem:[#allocation6 + $0xa38] sm:$0xff]
        %v723 = vld [vmem:[#allocation6 + $0xa40] sm:$0xff]
        %v724 = vld [vmem:[#allocation6 + $0xa48] sm:$0xff]
        %v725 = vld [vmem:[#allocation6 + $0xa50] sm:$0xff]
        %v726 = vld [vmem:[#allocation6 + $0xa58] sm:$0xff]
        %v727 = vld [vmem:[#allocation6 + $0xa60] sm:$0xff]
        %v728 = vld [vmem:[#allocation6 + $0xa68] sm:$0xff]
        %v729 = vld [vmem:[#allocation6 + $0xa70] sm:$0xff]
        %v730 = vld [vmem:[#allocation6 + $0xa78] sm:$0xff]
        %v731 = vld [vmem:[#allocation6 + $0xa80] sm:$0xff]
        %v732 = vld [vmem:[#allocation6 + $0xa88] sm:$0xff]
        %v733 = vld [vmem:[#allocation6 + $0xa90] sm:$0xff]
        %v734 = vld [vmem:[#allocation6 + $0xa98] sm:$0xff]
        %v735 = vld [vmem:[#allocation6 + $0xaa0] sm:$0xff]
        %v736 = vld [vmem:[#allocation6 + $0xaa8] sm:$0xff]
        %v737 = vld [vmem:[#allocation6 + $0xab0] sm:$0xff]
        %v738 = vld [vmem:[#allocation6 + $0xab8] sm:$0xff]
        %v739 = vld [vmem:[#allocation6 + $0xac0] sm:$0xff]
        %v740 = vld [vmem:[#allocation6 + $0xac8] sm:$0xff]
        %v741 = vld [vmem:[#allocation6 + $0xad0] sm:$0xff]
        %v742 = vld [vmem:[#allocation6 + $0xad8] sm:$0xff]
        %v743 = vld [vmem:[#allocation6 + $0xae0] sm:$0xff]
        %v744 = vld [vmem:[#allocation6 + $0xae8] sm:$0xff]
        %v745 = vld [vmem:[#allocation6 + $0xaf0] sm:$0xff]
        %v746 = vld [vmem:[#allocation6 + $0xaf8] sm:$0xff]
        %v747 = vld [vmem:[#allocation6 + $0xb00] sm:$0xff]
        %v748 = vld [vmem:[#allocation6 + $0xb08] sm:$0xff]
        %v749 = vld [vmem:[#allocation6 + $0xb10] sm:$0xff]
        %v750 = vld [vmem:[#allocation6 + $0xb18] sm:$0xff]
        %v751 = vld [vmem:[#allocation6 + $0xb20] sm:$0xff]
        %v752 = vld [vmem:[#allocation6 + $0xb28] sm:$0xff]
        %v753 = vld [vmem:[#allocation6 + $0xb30] sm:$0xff]
        %v754 = vld [vmem:[#allocation6 + $0xb38] sm:$0xff]
        %v755 = vld [vmem:[#allocation6 + $0xb40] sm:$0xff]
        %v756 = vld [vmem:[#allocation6 + $0xb48] sm:$0xff]
        %v757 = vld [vmem:[#allocation6 + $0xb50] sm:$0xff]
        %v758 = vld [vmem:[#allocation6 + $0xb58] sm:$0xff]
        %v759 = vld [vmem:[#allocation6 + $0xb60] sm:$0xff]
        %v760 = vld [vmem:[#allocation6 + $0xb68] sm:$0xff]
        %v761 = vld [vmem:[#allocation6 + $0xb70] sm:$0xff]
        %v762 = vld [vmem:[#allocation6 + $0xb78] sm:$0xff]
        %v763 = vld [vmem:[#allocation6 + $0xb80] sm:$0xff]
        %v764 = vld [vmem:[#allocation6 + $0xb88] sm:$0xff]
        %v765 = vld [vmem:[#allocation6 + $0xb90] sm:$0xff]
        %v766 = vld [vmem:[#allocation6 + $0xb98] sm:$0xff]
        %v767 = vld [vmem:[#allocation6 + $0xba0] sm:$0xff]
        %v768 = vld [vmem:[#allocation6 + $0xba8] sm:$0xff]
        %v769 = vld [vmem:[#allocation6 + $0xbb0] sm:$0xff]
        %v770 = vld [vmem:[#allocation6 + $0xbb8] sm:$0xff]
        %v771 = vld [vmem:[#allocation6 + $0xbc0] sm:$0xff]
        %v772 = vld [vmem:[#allocation6 + $0xbc8] sm:$0xff]
        %v773 = vld [vmem:[#allocation6 + $0xbd0] sm:$0xff]
        %v774 = vld [vmem:[#allocation6 + $0xbd8] sm:$0xff]
        %v775 = vld [vmem:[#allocation6 + $0xbe0] sm:$0xff]
        %v776 = vld [vmem:[#allocation6 + $0xbe8] sm:$0xff]
        %v777 = vld [vmem:[#allocation6 + $0xbf0] sm:$0xff]
        %v778 = vld [vmem:[#allocation6 + $0xbf8] sm:$0xff]
        %v1163 = vunpack.c.l.b16 %v395
        %v1164 = vunpack.c.h.b16 %v395
        %v1165 = vunpack.c.l.b16 %v396
        %v1166 = vunpack.c.h.b16 %v396
        %v1167 = vunpack.c.l.b16 %v397
        %v1168 = vunpack.c.h.b16 %v397
        %v1169 = vunpack.c.l.b16 %v398
        %v1170 = vunpack.c.h.b16 %v398
        %v1171 = vunpack.c.l.b16 %v399
        %v1172 = vunpack.c.h.b16 %v399
        %v1173 = vunpack.c.l.b16 %v400
        %v1174 = vunpack.c.h.b16 %v400
        %v1175 = vunpack.c.l.b16 %v401
        %v1176 = vunpack.c.h.b16 %v401
        %v1177 = vunpack.c.l.b16 %v402
        %v1178 = vunpack.c.h.b16 %v402
        %v1179 = vunpack.c.l.b16 %v403
        %v1180 = vunpack.c.h.b16 %v403
        %v1181 = vunpack.c.l.b16 %v404
        %v1182 = vunpack.c.h.b16 %v404
        %v1183 = vunpack.c.l.b16 %v405
        %v1184 = vunpack.c.h.b16 %v405
        %v1185 = vunpack.c.l.b16 %v406
        %v1186 = vunpack.c.h.b16 %v406
        %v1187 = vunpack.c.l.b16 %v407
        %v1188 = vunpack.c.h.b16 %v407
        %v1189 = vunpack.c.l.b16 %v408
        %v1190 = vunpack.c.h.b16 %v408
        %v1191 = vunpack.c.l.b16 %v409
        %v1192 = vunpack.c.h.b16 %v409
        %v1193 = vunpack.c.l.b16 %v410
        %v1194 = vunpack.c.h.b16 %v410
        %v1195 = vunpack.c.l.b16 %v411
        %v1196 = vunpack.c.h.b16 %v411
        %v1197 = vunpack.c.l.b16 %v412
        %v1198 = vunpack.c.h.b16 %v412
        %v1199 = vunpack.c.l.b16 %v413
        %v1200 = vunpack.c.h.b16 %v413
        %v1201 = vunpack.c.l.b16 %v414
        %v1202 = vunpack.c.h.b16 %v414
        %v1203 = vunpack.c.l.b16 %v415
        %v1204 = vunpack.c.h.b16 %v415
        %v1205 = vunpack.c.l.b16 %v416
        %v1206 = vunpack.c.h.b16 %v416
        %v1207 = vunpack.c.l.b16 %v417
        %v1208 = vunpack.c.h.b16 %v417
        %v1209 = vunpack.c.l.b16 %v418
        %v1210 = vunpack.c.h.b16 %v418
        %v1211 = vunpack.c.l.b16 %v419
        %v1212 = vunpack.c.h.b16 %v419
        %v1213 = vunpack.c.l.b16 %v420
        %v1214 = vunpack.c.h.b16 %v420
        %v1215 = vunpack.c.l.b16 %v421
        %v1216 = vunpack.c.h.b16 %v421
        %v1217 = vunpack.c.l.b16 %v422
        %v1218 = vunpack.c.h.b16 %v422
        %v1219 = vunpack.c.l.b16 %v423
        %v1220 = vunpack.c.h.b16 %v423
        %v1221 = vunpack.c.l.b16 %v424
        %v1222 = vunpack.c.h.b16 %v424
        %v1223 = vunpack.c.l.b16 %v425
        %v1224 = vunpack.c.h.b16 %v425
        %v1225 = vunpack.c.l.b16 %v426
        %v1226 = vunpack.c.h.b16 %v426
        %v1227 = vunpack.c.l.b16 %v427
        %v1228 = vunpack.c.h.b16 %v427
        %v1229 = vunpack.c.l.b16 %v428
        %v1230 = vunpack.c.h.b16 %v428
        %v1231 = vunpack.c.l.b16 %v429
        %v1232 = vunpack.c.h.b16 %v429
        %v1233 = vunpack.c.l.b16 %v430
        %v1234 = vunpack.c.h.b16 %v430
        %v1235 = vunpack.c.l.b16 %v431
        %v1236 = vunpack.c.h.b16 %v431
        %v1237 = vunpack.c.l.b16 %v432
        %v1238 = vunpack.c.h.b16 %v432
        %v1239 = vunpack.c.l.b16 %v433
        %v1240 = vunpack.c.h.b16 %v433
        %v1241 = vunpack.c.l.b16 %v434
        %v1242 = vunpack.c.h.b16 %v434
        %v1243 = vunpack.c.l.b16 %v435
        %v1244 = vunpack.c.h.b16 %v435
        %v1245 = vunpack.c.l.b16 %v436
        %v1246 = vunpack.c.h.b16 %v436
        %v1247 = vunpack.c.l.b16 %v437
        %v1248 = vunpack.c.h.b16 %v437
        %v1249 = vunpack.c.l.b16 %v438
        %v1250 = vunpack.c.h.b16 %v438
        %v1251 = vunpack.c.l.b16 %v439
        %v1252 = vunpack.c.h.b16 %v439
        %v1253 = vunpack.c.l.b16 %v440
        %v1254 = vunpack.c.h.b16 %v440
        %v1255 = vunpack.c.l.b16 %v441
        %v1256 = vunpack.c.h.b16 %v441
        %v1257 = vunpack.c.l.b16 %v442
        %v1258 = vunpack.c.h.b16 %v442
        %v1259 = vunpack.c.l.b16 %v443
        %v1260 = vunpack.c.h.b16 %v443
        %v1261 = vunpack.c.l.b16 %v444
        %v1262 = vunpack.c.h.b16 %v444
        %v1263 = vunpack.c.l.b16 %v445
        %v1264 = vunpack.c.h.b16 %v445
        %v1265 = vunpack.c.l.b16 %v446
        %v1266 = vunpack.c.h.b16 %v446
        %v1267 = vunpack.c.l.b16 %v447
        %v1268 = vunpack.c.h.b16 %v447
        %v1269 = vunpack.c.l.b16 %v448
        %v1270 = vunpack.c.h.b16 %v448
        %v1271 = vunpack.c.l.b16 %v449
        %v1272 = vunpack.c.h.b16 %v449
        %v1273 = vunpack.c.l.b16 %v450
        %v1274 = vunpack.c.h.b16 %v450
        %v1275 = vunpack.c.l.b16 %v451
        %v1276 = vunpack.c.h.b16 %v451
        %v1277 = vunpack.c.l.b16 %v452
        %v1278 = vunpack.c.h.b16 %v452
        %v1279 = vunpack.c.l.b16 %v453
        %v1280 = vunpack.c.h.b16 %v453
        %v1281 = vunpack.c.l.b16 %v454
        %v1282 = vunpack.c.h.b16 %v454
        %v1283 = vunpack.c.l.b16 %v455
        %v1284 = vunpack.c.h.b16 %v455
        %v1285 = vunpack.c.l.b16 %v456
        %v1286 = vunpack.c.h.b16 %v456
        %v1287 = vunpack.c.l.b16 %v457
        %v1288 = vunpack.c.h.b16 %v457
        %v1289 = vunpack.c.l.b16 %v458
        %v1290 = vunpack.c.h.b16 %v458
        %v1291 = vunpack.c.l.b16 %v459
        %v1292 = vunpack.c.h.b16 %v459
        %v1293 = vunpack.c.l.b16 %v460
        %v1294 = vunpack.c.h.b16 %v460
        %v1295 = vunpack.c.l.b16 %v461
        %v1296 = vunpack.c.h.b16 %v461
        %v1297 = vunpack.c.l.b16 %v462
        %v1298 = vunpack.c.h.b16 %v462
        %v1299 = vunpack.c.l.b16 %v463
        %v1300 = vunpack.c.h.b16 %v463
        %v1301 = vunpack.c.l.b16 %v464
        %v1302 = vunpack.c.h.b16 %v464
        %v1303 = vunpack.c.l.b16 %v465
        %v1304 = vunpack.c.h.b16 %v465
        %v1305 = vunpack.c.l.b16 %v466
        %v1306 = vunpack.c.h.b16 %v466
        %v1307 = vunpack.c.l.b16 %v467
        %v1308 = vunpack.c.h.b16 %v467
        %v1309 = vunpack.c.l.b16 %v468
        %v1310 = vunpack.c.h.b16 %v468
        %v1311 = vunpack.c.l.b16 %v469
        %v1312 = vunpack.c.h.b16 %v469
        %v1313 = vunpack.c.l.b16 %v470
        %v1314 = vunpack.c.h.b16 %v470
        %v1315 = vunpack.c.l.b16 %v471
        %v1316 = vunpack.c.h.b16 %v471
        %v1317 = vunpack.c.l.b16 %v472
        %v1318 = vunpack.c.h.b16 %v472
        %v1319 = vunpack.c.l.b16 %v473
        %v1320 = vunpack.c.h.b16 %v473
        %v1321 = vunpack.c.l.b16 %v474
        %v1322 = vunpack.c.h.b16 %v474
        %v1323 = vunpack.c.l.b16 %v475
        %v1324 = vunpack.c.h.b16 %v475
        %v1325 = vunpack.c.l.b16 %v476
        %v1326 = vunpack.c.h.b16 %v476
        %v1327 = vunpack.c.l.b16 %v477
        %v1328 = vunpack.c.h.b16 %v477
        %v1329 = vunpack.c.l.b16 %v478
        %v1330 = vunpack.c.h.b16 %v478
        %v1331 = vunpack.c.l.b16 %v479
        %v1332 = vunpack.c.h.b16 %v479
        %v1333 = vunpack.c.l.b16 %v480
        %v1334 = vunpack.c.h.b16 %v480
        %v1335 = vunpack.c.l.b16 %v481
        %v1336 = vunpack.c.h.b16 %v481
        %v1337 = vunpack.c.l.b16 %v482
        %v1338 = vunpack.c.h.b16 %v482
        %v1339 = vunpack.c.l.b16 %v483
        %v1340 = vunpack.c.h.b16 %v483
        %v1341 = vunpack.c.l.b16 %v484
        %v1342 = vunpack.c.h.b16 %v484
        %v1343 = vunpack.c.l.b16 %v485
        %v1344 = vunpack.c.h.b16 %v485
        %v1345 = vunpack.c.l.b16 %v486
        %v1346 = vunpack.c.h.b16 %v486
        %v1347 = vunpack.c.l.b16 %v487
        %v1348 = vunpack.c.h.b16 %v487
        %v1349 = vunpack.c.l.b16 %v488
        %v1350 = vunpack.c.h.b16 %v488
        %v1351 = vunpack.c.l.b16 %v489
        %v1352 = vunpack.c.h.b16 %v489
        %v1353 = vunpack.c.l.b16 %v490
        %v1354 = vunpack.c.h.b16 %v490
        %v1355 = vunpack.c.l.b16 %v491
        %v1356 = vunpack.c.h.b16 %v491
        %v1357 = vunpack.c.l.b16 %v492
        %v1358 = vunpack.c.h.b16 %v492
        %v1359 = vunpack.c.l.b16 %v493
        %v1360 = vunpack.c.h.b16 %v493
        %v1361 = vunpack.c.l.b16 %v494
        %v1362 = vunpack.c.h.b16 %v494
        %v1363 = vunpack.c.l.b16 %v495
        %v1364 = vunpack.c.h.b16 %v495
        %v1365 = vunpack.c.l.b16 %v496
        %v1366 = vunpack.c.h.b16 %v496
        %v1367 = vunpack.c.l.b16 %v497
        %v1368 = vunpack.c.h.b16 %v497
        %v1369 = vunpack.c.l.b16 %v498
        %v1370 = vunpack.c.h.b16 %v498
        %v1371 = vunpack.c.l.b16 %v499
        %v1372 = vunpack.c.h.b16 %v499
        %v1373 = vunpack.c.l.b16 %v500
        %v1374 = vunpack.c.h.b16 %v500
        %v1375 = vunpack.c.l.b16 %v501
        %v1376 = vunpack.c.h.b16 %v501
        %v1377 = vunpack.c.l.b16 %v502
        %v1378 = vunpack.c.h.b16 %v502
        %v1379 = vunpack.c.l.b16 %v503
        %v1380 = vunpack.c.h.b16 %v503
        %v1381 = vunpack.c.l.b16 %v504
        %v1382 = vunpack.c.h.b16 %v504
        %v1383 = vunpack.c.l.b16 %v505
        %v1384 = vunpack.c.h.b16 %v505
        %v1385 = vunpack.c.l.b16 %v506
        %v1386 = vunpack.c.h.b16 %v506
        %v1387 = vunpack.c.l.b16 %v507
        %v1388 = vunpack.c.h.b16 %v507
        %v1389 = vunpack.c.l.b16 %v508
        %v1390 = vunpack.c.h.b16 %v508
        %v1391 = vunpack.c.l.b16 %v509
        %v1392 = vunpack.c.h.b16 %v509
        %v1393 = vunpack.c.l.b16 %v510
        %v1394 = vunpack.c.h.b16 %v510
        %v1395 = vunpack.c.l.b16 %v511
        %v1396 = vunpack.c.h.b16 %v511
        %v1397 = vunpack.c.l.b16 %v512
        %v1398 = vunpack.c.h.b16 %v512
        %v1399 = vunpack.c.l.b16 %v513
        %v1400 = vunpack.c.h.b16 %v513
        %v1401 = vunpack.c.l.b16 %v514
        %v1402 = vunpack.c.h.b16 %v514
        %v1403 = vunpack.c.l.b16 %v515
        %v1404 = vunpack.c.h.b16 %v515
        %v1405 = vunpack.c.l.b16 %v516
        %v1406 = vunpack.c.h.b16 %v516
        %v1407 = vunpack.c.l.b16 %v517
        %v1408 = vunpack.c.h.b16 %v517
        %v1409 = vunpack.c.l.b16 %v518
        %v1410 = vunpack.c.h.b16 %v518
        %v1411 = vunpack.c.l.b16 %v519
        %v1412 = vunpack.c.h.b16 %v519
        %v1413 = vunpack.c.l.b16 %v520
        %v1414 = vunpack.c.h.b16 %v520
        %v1415 = vunpack.c.l.b16 %v521
        %v1416 = vunpack.c.h.b16 %v521
        %v1417 = vunpack.c.l.b16 %v522
        %v1418 = vunpack.c.h.b16 %v522
        %v1419 = vunpack.c.l.b16 %v523
        %v1420 = vunpack.c.h.b16 %v523
        %v1421 = vunpack.c.l.b16 %v524
        %v1422 = vunpack.c.h.b16 %v524
        %v1423 = vunpack.c.l.b16 %v525
        %v1424 = vunpack.c.h.b16 %v525
        %v1425 = vunpack.c.l.b16 %v526
        %v1426 = vunpack.c.h.b16 %v526
        %v1427 = vunpack.c.l.b16 %v527
        %v1428 = vunpack.c.h.b16 %v527
        %v1429 = vunpack.c.l.b16 %v528
        %v1430 = vunpack.c.h.b16 %v528
        %v1431 = vunpack.c.l.b16 %v529
        %v1432 = vunpack.c.h.b16 %v529
        %v1433 = vunpack.c.l.b16 %v530
        %v1434 = vunpack.c.h.b16 %v530
        %v1435 = vunpack.c.l.b16 %v531
        %v1436 = vunpack.c.h.b16 %v531
        %v1437 = vunpack.c.l.b16 %v532
        %v1438 = vunpack.c.h.b16 %v532
        %v1439 = vunpack.c.l.b16 %v533
        %v1440 = vunpack.c.h.b16 %v533
        %v1441 = vunpack.c.l.b16 %v534
        %v1442 = vunpack.c.h.b16 %v534
        %v1443 = vunpack.c.l.b16 %v535
        %v1444 = vunpack.c.h.b16 %v535
        %v1445 = vunpack.c.l.b16 %v536
        %v1446 = vunpack.c.h.b16 %v536
        %v1447 = vunpack.c.l.b16 %v537
        %v1448 = vunpack.c.h.b16 %v537
        %v1449 = vunpack.c.l.b16 %v538
        %v1450 = vunpack.c.h.b16 %v538
        %v1451 = vunpack.c.l.b16 %v539
        %v1452 = vunpack.c.h.b16 %v539
        %v1453 = vunpack.c.l.b16 %v540
        %v1454 = vunpack.c.h.b16 %v540
        %v1455 = vunpack.c.l.b16 %v541
        %v1456 = vunpack.c.h.b16 %v541
        %v1457 = vunpack.c.l.b16 %v542
        %v1458 = vunpack.c.h.b16 %v542
        %v1459 = vunpack.c.l.b16 %v543
        %v1460 = vunpack.c.h.b16 %v543
        %v1461 = vunpack.c.l.b16 %v544
        %v1462 = vunpack.c.h.b16 %v544
        %v1463 = vunpack.c.l.b16 %v545
        %v1464 = vunpack.c.h.b16 %v545
        %v1465 = vunpack.c.l.b16 %v546
        %v1466 = vunpack.c.h.b16 %v546
        %v1467 = vunpack.c.l.b16 %v547
        %v1468 = vunpack.c.h.b16 %v547
        %v1469 = vunpack.c.l.b16 %v548
        %v1470 = vunpack.c.h.b16 %v548
        %v1471 = vunpack.c.l.b16 %v549
        %v1472 = vunpack.c.h.b16 %v549
        %v1473 = vunpack.c.l.b16 %v550
        %v1474 = vunpack.c.h.b16 %v550
        %v1475 = vunpack.c.l.b16 %v551
        %v1476 = vunpack.c.h.b16 %v551
        %v1477 = vunpack.c.l.b16 %v552
        %v1478 = vunpack.c.h.b16 %v552
        %v1479 = vunpack.c.l.b16 %v553
        %v1480 = vunpack.c.h.b16 %v553
        %v1481 = vunpack.c.l.b16 %v554
        %v1482 = vunpack.c.h.b16 %v554
        %v1483 = vunpack.c.l.b16 %v555
        %v1484 = vunpack.c.h.b16 %v555
        %v1485 = vunpack.c.l.b16 %v556
        %v1486 = vunpack.c.h.b16 %v556
        %v1487 = vunpack.c.l.b16 %v557
        %v1488 = vunpack.c.h.b16 %v557
        %v1489 = vunpack.c.l.b16 %v558
        %v1490 = vunpack.c.h.b16 %v558
        %v1491 = vunpack.c.l.b16 %v559
        %v1492 = vunpack.c.h.b16 %v559
        %v1493 = vunpack.c.l.b16 %v560
        %v1494 = vunpack.c.h.b16 %v560
        %v1495 = vunpack.c.l.b16 %v561
        %v1496 = vunpack.c.h.b16 %v561
        %v1497 = vunpack.c.l.b16 %v562
        %v1498 = vunpack.c.h.b16 %v562
        %v1499 = vunpack.c.l.b16 %v563
        %v1500 = vunpack.c.h.b16 %v563
        %v1501 = vunpack.c.l.b16 %v564
        %v1502 = vunpack.c.h.b16 %v564
        %v1503 = vunpack.c.l.b16 %v565
        %v1504 = vunpack.c.h.b16 %v565
        %v1505 = vunpack.c.l.b16 %v566
        %v1506 = vunpack.c.h.b16 %v566
        %v1507 = vunpack.c.l.b16 %v567
        %v1508 = vunpack.c.h.b16 %v567
        %v1509 = vunpack.c.l.b16 %v568
        %v1510 = vunpack.c.h.b16 %v568
        %v1511 = vunpack.c.l.b16 %v569
        %v1512 = vunpack.c.h.b16 %v569
        %v1513 = vunpack.c.l.b16 %v570
        %v1514 = vunpack.c.h.b16 %v570
        %v1515 = vunpack.c.l.b16 %v571
        %v1516 = vunpack.c.h.b16 %v571
        %v1517 = vunpack.c.l.b16 %v572
        %v1518 = vunpack.c.h.b16 %v572
        %v1519 = vunpack.c.l.b16 %v573
        %v1520 = vunpack.c.h.b16 %v573
        %v1521 = vunpack.c.l.b16 %v574
        %v1522 = vunpack.c.h.b16 %v574
        %v1523 = vunpack.c.l.b16 %v575
        %v1524 = vunpack.c.h.b16 %v575
        %v1525 = vunpack.c.l.b16 %v576
        %v1526 = vunpack.c.h.b16 %v576
        %v1527 = vunpack.c.l.b16 %v577
        %v1528 = vunpack.c.h.b16 %v577
        %v1529 = vunpack.c.l.b16 %v578
        %v1530 = vunpack.c.h.b16 %v578
        %v1531 = vunpack.c.l.b16 %v579
        %v1532 = vunpack.c.h.b16 %v579
        %v1533 = vunpack.c.l.b16 %v580
        %v1534 = vunpack.c.h.b16 %v580
        %v1535 = vunpack.c.l.b16 %v581
        %v1536 = vunpack.c.h.b16 %v581
        %v1537 = vunpack.c.l.b16 %v582
        %v1538 = vunpack.c.h.b16 %v582
        %v1539 = vunpack.c.l.b16 %v583
        %v1540 = vunpack.c.h.b16 %v583
        %v1541 = vunpack.c.l.b16 %v584
        %v1542 = vunpack.c.h.b16 %v584
        %v1543 = vunpack.c.l.b16 %v585
        %v1544 = vunpack.c.h.b16 %v585
        %v1545 = vunpack.c.l.b16 %v586
        %v1546 = vunpack.c.h.b16 %v586
        %v1547 = vunpack.c.l.b16 %v587
        %v1548 = vunpack.c.h.b16 %v587
        %v1549 = vunpack.c.l.b16 %v588
        %v1550 = vunpack.c.h.b16 %v588
        %v1551 = vunpack.c.l.b16 %v589
        %v1552 = vunpack.c.h.b16 %v589
        %v1553 = vunpack.c.l.b16 %v590
        %v1554 = vunpack.c.h.b16 %v590
        %v1555 = vunpack.c.l.b16 %v591
        %v1556 = vunpack.c.h.b16 %v591
        %v1557 = vunpack.c.l.b16 %v592
        %v1558 = vunpack.c.h.b16 %v592
        %v1559 = vunpack.c.l.b16 %v593
        %v1560 = vunpack.c.h.b16 %v593
        %v1561 = vunpack.c.l.b16 %v594
        %v1562 = vunpack.c.h.b16 %v594
        %v1563 = vunpack.c.l.b16 %v595
        %v1564 = vunpack.c.h.b16 %v595
        %v1565 = vunpack.c.l.b16 %v596
        %v1566 = vunpack.c.h.b16 %v596
        %v1567 = vunpack.c.l.b16 %v597
        %v1568 = vunpack.c.h.b16 %v597
        %v1569 = vunpack.c.l.b16 %v598
        %v1570 = vunpack.c.h.b16 %v598
        %v1571 = vunpack.c.l.b16 %v599
        %v1572 = vunpack.c.h.b16 %v599
        %v1573 = vunpack.c.l.b16 %v600
        %v1574 = vunpack.c.h.b16 %v600
        %v1575 = vunpack.c.l.b16 %v601
        %v1576 = vunpack.c.h.b16 %v601
        %v1577 = vunpack.c.l.b16 %v602
        %v1578 = vunpack.c.h.b16 %v602
        %v1579 = vunpack.c.l.b16 %v603
        %v1580 = vunpack.c.h.b16 %v603
        %v1581 = vunpack.c.l.b16 %v604
        %v1582 = vunpack.c.h.b16 %v604
        %v1583 = vunpack.c.l.b16 %v605
        %v1584 = vunpack.c.h.b16 %v605
        %v1585 = vunpack.c.l.b16 %v606
        %v1586 = vunpack.c.h.b16 %v606
        %v1587 = vunpack.c.l.b16 %v607
        %v1588 = vunpack.c.h.b16 %v607
        %v1589 = vunpack.c.l.b16 %v608
        %v1590 = vunpack.c.h.b16 %v608
        %v1591 = vunpack.c.l.b16 %v609
        %v1592 = vunpack.c.h.b16 %v609
        %v1593 = vunpack.c.l.b16 %v610
        %v1594 = vunpack.c.h.b16 %v610
        %v1595 = vunpack.c.l.b16 %v611
        %v1596 = vunpack.c.h.b16 %v611
        %v1597 = vunpack.c.l.b16 %v612
        %v1598 = vunpack.c.h.b16 %v612
        %v1599 = vunpack.c.l.b16 %v613
        %v1600 = vunpack.c.h.b16 %v613
        %v1601 = vunpack.c.l.b16 %v614
        %v1602 = vunpack.c.h.b16 %v614
        %v1603 = vunpack.c.l.b16 %v615
        %v1604 = vunpack.c.h.b16 %v615
        %v1605 = vunpack.c.l.b16 %v616
        %v1606 = vunpack.c.h.b16 %v616
        %v1607 = vunpack.c.l.b16 %v617
        %v1608 = vunpack.c.h.b16 %v617
        %v1609 = vunpack.c.l.b16 %v618
        %v1610 = vunpack.c.h.b16 %v618
        %v1611 = vunpack.c.l.b16 %v619
        %v1612 = vunpack.c.h.b16 %v619
        %v1613 = vunpack.c.l.b16 %v620
        %v1614 = vunpack.c.h.b16 %v620
        %v1615 = vunpack.c.l.b16 %v621
        %v1616 = vunpack.c.h.b16 %v621
        %v1617 = vunpack.c.l.b16 %v622
        %v1618 = vunpack.c.h.b16 %v622
        %v1619 = vunpack.c.l.b16 %v623
        %v1620 = vunpack.c.h.b16 %v623
        %v1621 = vunpack.c.l.b16 %v624
        %v1622 = vunpack.c.h.b16 %v624
        %v1623 = vunpack.c.l.b16 %v625
        %v1624 = vunpack.c.h.b16 %v625
        %v1625 = vunpack.c.l.b16 %v626
        %v1626 = vunpack.c.h.b16 %v626
        %v1627 = vunpack.c.l.b16 %v627
        %v1628 = vunpack.c.h.b16 %v627
        %v1629 = vunpack.c.l.b16 %v628
        %v1630 = vunpack.c.h.b16 %v628
        %v1631 = vunpack.c.l.b16 %v629
        %v1632 = vunpack.c.h.b16 %v629
        %v1633 = vunpack.c.l.b16 %v630
        %v1634 = vunpack.c.h.b16 %v630
        %v1635 = vunpack.c.l.b16 %v631
        %v1636 = vunpack.c.h.b16 %v631
        %v1637 = vunpack.c.l.b16 %v632
        %v1638 = vunpack.c.h.b16 %v632
        %v1639 = vunpack.c.l.b16 %v633
        %v1640 = vunpack.c.h.b16 %v633
        %v1641 = vunpack.c.l.b16 %v634
        %v1642 = vunpack.c.h.b16 %v634
        %v1643 = vunpack.c.l.b16 %v635
        %v1644 = vunpack.c.h.b16 %v635
        %v1645 = vunpack.c.l.b16 %v636
        %v1646 = vunpack.c.h.b16 %v636
        %v1647 = vunpack.c.l.b16 %v637
        %v1648 = vunpack.c.h.b16 %v637
        %v1649 = vunpack.c.l.b16 %v638
        %v1650 = vunpack.c.h.b16 %v638
        %v1651 = vunpack.c.l.b16 %v639
        %v1652 = vunpack.c.h.b16 %v639
        %v1653 = vunpack.c.l.b16 %v640
        %v1654 = vunpack.c.h.b16 %v640
        %v1655 = vunpack.c.l.b16 %v641
        %v1656 = vunpack.c.h.b16 %v641
        %v1657 = vunpack.c.l.b16 %v642
        %v1658 = vunpack.c.h.b16 %v642
        %v1659 = vunpack.c.l.b16 %v643
        %v1660 = vunpack.c.h.b16 %v643
        %v1661 = vunpack.c.l.b16 %v644
        %v1662 = vunpack.c.h.b16 %v644
        %v1663 = vunpack.c.l.b16 %v645
        %v1664 = vunpack.c.h.b16 %v645
        %v1665 = vunpack.c.l.b16 %v646
        %v1666 = vunpack.c.h.b16 %v646
        %v1667 = vunpack.c.l.b16 %v647
        %v1668 = vunpack.c.h.b16 %v647
        %v1669 = vunpack.c.l.b16 %v648
        %v1670 = vunpack.c.h.b16 %v648
        %v1671 = vunpack.c.l.b16 %v649
        %v1672 = vunpack.c.h.b16 %v649
        %v1673 = vunpack.c.l.b16 %v650
        %v1674 = vunpack.c.h.b16 %v650
        %v1675 = vunpack.c.l.b16 %v651
        %v1676 = vunpack.c.h.b16 %v651
        %v1677 = vunpack.c.l.b16 %v652
        %v1678 = vunpack.c.h.b16 %v652
        %v1679 = vunpack.c.l.b16 %v653
        %v1680 = vunpack.c.h.b16 %v653
        %v1681 = vunpack.c.l.b16 %v654
        %v1682 = vunpack.c.h.b16 %v654
        %v1683 = vunpack.c.l.b16 %v655
        %v1684 = vunpack.c.h.b16 %v655
        %v1685 = vunpack.c.l.b16 %v656
        %v1686 = vunpack.c.h.b16 %v656
        %v1687 = vunpack.c.l.b16 %v657
        %v1688 = vunpack.c.h.b16 %v657
        %v1689 = vunpack.c.l.b16 %v658
        %v1690 = vunpack.c.h.b16 %v658
        %v1691 = vunpack.c.l.b16 %v659
        %v1692 = vunpack.c.h.b16 %v659
        %v1693 = vunpack.c.l.b16 %v660
        %v1694 = vunpack.c.h.b16 %v660
        %v1695 = vunpack.c.l.b16 %v661
        %v1696 = vunpack.c.h.b16 %v661
        %v1697 = vunpack.c.l.b16 %v662
        %v1698 = vunpack.c.h.b16 %v662
        %v1699 = vunpack.c.l.b16 %v663
        %v1700 = vunpack.c.h.b16 %v663
        %v1701 = vunpack.c.l.b16 %v664
        %v1702 = vunpack.c.h.b16 %v664
        %v1703 = vunpack.c.l.b16 %v665
        %v1704 = vunpack.c.h.b16 %v665
        %v1705 = vunpack.c.l.b16 %v666
        %v1706 = vunpack.c.h.b16 %v666
        %v1707 = vunpack.c.l.b16 %v667
        %v1708 = vunpack.c.h.b16 %v667
        %v1709 = vunpack.c.l.b16 %v668
        %v1710 = vunpack.c.h.b16 %v668
        %v1711 = vunpack.c.l.b16 %v669
        %v1712 = vunpack.c.h.b16 %v669
        %v1713 = vunpack.c.l.b16 %v670
        %v1714 = vunpack.c.h.b16 %v670
        %v1715 = vunpack.c.l.b16 %v671
        %v1716 = vunpack.c.h.b16 %v671
        %v1717 = vunpack.c.l.b16 %v672
        %v1718 = vunpack.c.h.b16 %v672
        %v1719 = vunpack.c.l.b16 %v673
        %v1720 = vunpack.c.h.b16 %v673
        %v1721 = vunpack.c.l.b16 %v674
        %v1722 = vunpack.c.h.b16 %v674
        %v1723 = vunpack.c.l.b16 %v675
        %v1724 = vunpack.c.h.b16 %v675
        %v1725 = vunpack.c.l.b16 %v676
        %v1726 = vunpack.c.h.b16 %v676
        %v1727 = vunpack.c.l.b16 %v677
        %v1728 = vunpack.c.h.b16 %v677
        %v1729 = vunpack.c.l.b16 %v678
        %v1730 = vunpack.c.h.b16 %v678
        %v1731 = vunpack.c.l.b16 %v679
        %v1732 = vunpack.c.h.b16 %v679
        %v1733 = vunpack.c.l.b16 %v680
        %v1734 = vunpack.c.h.b16 %v680
        %v1735 = vunpack.c.l.b16 %v681
        %v1736 = vunpack.c.h.b16 %v681
        %v1737 = vunpack.c.l.b16 %v682
        %v1738 = vunpack.c.h.b16 %v682
        %v1739 = vunpack.c.l.b16 %v683
        %v1740 = vunpack.c.h.b16 %v683
        %v1741 = vunpack.c.l.b16 %v684
        %v1742 = vunpack.c.h.b16 %v684
        %v1743 = vunpack.c.l.b16 %v685
        %v1744 = vunpack.c.h.b16 %v685
        %v1745 = vunpack.c.l.b16 %v686
        %v1746 = vunpack.c.h.b16 %v686
        %v1747 = vunpack.c.l.b16 %v687
        %v1748 = vunpack.c.h.b16 %v687
        %v1749 = vunpack.c.l.b16 %v688
        %v1750 = vunpack.c.h.b16 %v688
        %v1751 = vunpack.c.l.b16 %v689
        %v1752 = vunpack.c.h.b16 %v689
        %v1753 = vunpack.c.l.b16 %v690
        %v1754 = vunpack.c.h.b16 %v690
        %v1755 = vunpack.c.l.b16 %v691
        %v1756 = vunpack.c.h.b16 %v691
        %v1757 = vunpack.c.l.b16 %v692
        %v1758 = vunpack.c.h.b16 %v692
        %v1759 = vunpack.c.l.b16 %v693
        %v1760 = vunpack.c.h.b16 %v693
        %v1761 = vunpack.c.l.b16 %v694
        %v1762 = vunpack.c.h.b16 %v694
        %v1763 = vunpack.c.l.b16 %v695
        %v1764 = vunpack.c.h.b16 %v695
        %v1765 = vunpack.c.l.b16 %v696
        %v1766 = vunpack.c.h.b16 %v696
        %v1767 = vunpack.c.l.b16 %v697
        %v1768 = vunpack.c.h.b16 %v697
        %v1769 = vunpack.c.l.b16 %v698
        %v1770 = vunpack.c.h.b16 %v698
        %v1771 = vunpack.c.l.b16 %v699
        %v1772 = vunpack.c.h.b16 %v699
        %v1773 = vunpack.c.l.b16 %v700
        %v1774 = vunpack.c.h.b16 %v700
        %v1775 = vunpack.c.l.b16 %v701
        %v1776 = vunpack.c.h.b16 %v701
        %v1777 = vunpack.c.l.b16 %v702
        %v1778 = vunpack.c.h.b16 %v702
        %v1779 = vunpack.c.l.b16 %v703
        %v1780 = vunpack.c.h.b16 %v703
        %v1781 = vunpack.c.l.b16 %v704
        %v1782 = vunpack.c.h.b16 %v704
        %v1783 = vunpack.c.l.b16 %v705
        %v1784 = vunpack.c.h.b16 %v705
        %v1785 = vunpack.c.l.b16 %v706
        %v1786 = vunpack.c.h.b16 %v706
        %v1787 = vunpack.c.l.b16 %v707
        %v1788 = vunpack.c.h.b16 %v707
        %v1789 = vunpack.c.l.b16 %v708
        %v1790 = vunpack.c.h.b16 %v708
        %v1791 = vunpack.c.l.b16 %v709
        %v1792 = vunpack.c.h.b16 %v709
        %v1793 = vunpack.c.l.b16 %v710
        %v1794 = vunpack.c.h.b16 %v710
        %v1795 = vunpack.c.l.b16 %v711
        %v1796 = vunpack.c.h.b16 %v711
        %v1797 = vunpack.c.l.b16 %v712
        %v1798 = vunpack.c.h.b16 %v712
        %v1799 = vunpack.c.l.b16 %v713
        %v1800 = vunpack.c.h.b16 %v713
        %v1801 = vunpack.c.l.b16 %v714
        %v1802 = vunpack.c.h.b16 %v714
        %v1803 = vunpack.c.l.b16 %v715
        %v1804 = vunpack.c.h.b16 %v715
        %v1805 = vunpack.c.l.b16 %v716
        %v1806 = vunpack.c.h.b16 %v716
        %v1807 = vunpack.c.l.b16 %v717
        %v1808 = vunpack.c.h.b16 %v717
        %v1809 = vunpack.c.l.b16 %v718
        %v1810 = vunpack.c.h.b16 %v718
        %v1811 = vunpack.c.l.b16 %v719
        %v1812 = vunpack.c.h.b16 %v719
        %v1813 = vunpack.c.l.b16 %v720
        %v1814 = vunpack.c.h.b16 %v720
        %v1815 = vunpack.c.l.b16 %v721
        %v1816 = vunpack.c.h.b16 %v721
        %v1817 = vunpack.c.l.b16 %v722
        %v1818 = vunpack.c.h.b16 %v722
        %v1819 = vunpack.c.l.b16 %v723
        %v1820 = vunpack.c.h.b16 %v723
        %v1821 = vunpack.c.l.b16 %v724
        %v1822 = vunpack.c.h.b16 %v724
        %v1823 = vunpack.c.l.b16 %v725
        %v1824 = vunpack.c.h.b16 %v725
        %v1825 = vunpack.c.l.b16 %v726
        %v1826 = vunpack.c.h.b16 %v726
        %v1827 = vunpack.c.l.b16 %v727
        %v1828 = vunpack.c.h.b16 %v727
        %v1829 = vunpack.c.l.b16 %v728
        %v1830 = vunpack.c.h.b16 %v728
        %v1831 = vunpack.c.l.b16 %v729
        %v1832 = vunpack.c.h.b16 %v729
        %v1833 = vunpack.c.l.b16 %v730
        %v1834 = vunpack.c.h.b16 %v730
        %v1835 = vunpack.c.l.b16 %v731
        %v1836 = vunpack.c.h.b16 %v731
        %v1837 = vunpack.c.l.b16 %v732
        %v1838 = vunpack.c.h.b16 %v732
        %v1839 = vunpack.c.l.b16 %v733
        %v1840 = vunpack.c.h.b16 %v733
        %v1841 = vunpack.c.l.b16 %v734
        %v1842 = vunpack.c.h.b16 %v734
        %v1843 = vunpack.c.l.b16 %v735
        %v1844 = vunpack.c.h.b16 %v735
        %v1845 = vunpack.c.l.b16 %v736
        %v1846 = vunpack.c.h.b16 %v736
        %v1847 = vunpack.c.l.b16 %v737
        %v1848 = vunpack.c.h.b16 %v737
        %v1849 = vunpack.c.l.b16 %v738
        %v1850 = vunpack.c.h.b16 %v738
        %v1851 = vunpack.c.l.b16 %v739
        %v1852 = vunpack.c.h.b16 %v739
        %v1853 = vunpack.c.l.b16 %v740
        %v1854 = vunpack.c.h.b16 %v740
        %v1855 = vunpack.c.l.b16 %v741
        %v1856 = vunpack.c.h.b16 %v741
        %v1857 = vunpack.c.l.b16 %v742
        %v1858 = vunpack.c.h.b16 %v742
        %v1859 = vunpack.c.l.b16 %v743
        %v1860 = vunpack.c.h.b16 %v743
        %v1861 = vunpack.c.l.b16 %v744
        %v1862 = vunpack.c.h.b16 %v744
        %v1863 = vunpack.c.l.b16 %v745
        %v1864 = vunpack.c.h.b16 %v745
        %v1865 = vunpack.c.l.b16 %v746
        %v1866 = vunpack.c.h.b16 %v746
        %v1867 = vunpack.c.l.b16 %v747
        %v1868 = vunpack.c.h.b16 %v747
        %v1869 = vunpack.c.l.b16 %v748
        %v1870 = vunpack.c.h.b16 %v748
        %v1871 = vunpack.c.l.b16 %v749
        %v1872 = vunpack.c.h.b16 %v749
        %v1873 = vunpack.c.l.b16 %v750
        %v1874 = vunpack.c.h.b16 %v750
        %v1875 = vunpack.c.l.b16 %v751
        %v1876 = vunpack.c.h.b16 %v751
        %v1877 = vunpack.c.l.b16 %v752
        %v1878 = vunpack.c.h.b16 %v752
        %v1879 = vunpack.c.l.b16 %v753
        %v1880 = vunpack.c.h.b16 %v753
        %v1881 = vunpack.c.l.b16 %v754
        %v1882 = vunpack.c.h.b16 %v754
        %v1883 = vunpack.c.l.b16 %v755
        %v1884 = vunpack.c.h.b16 %v755
        %v1885 = vunpack.c.l.b16 %v756
        %v1886 = vunpack.c.h.b16 %v756
        %v1887 = vunpack.c.l.b16 %v757
        %v1888 = vunpack.c.h.b16 %v757
        %v1889 = vunpack.c.l.b16 %v758
        %v1890 = vunpack.c.h.b16 %v758
        %v1891 = vunpack.c.l.b16 %v759
        %v1892 = vunpack.c.h.b16 %v759
        %v1893 = vunpack.c.l.b16 %v760
        %v1894 = vunpack.c.h.b16 %v760
        %v1895 = vunpack.c.l.b16 %v761
        %v1896 = vunpack.c.h.b16 %v761
        %v1897 = vunpack.c.l.b16 %v762
        %v1898 = vunpack.c.h.b16 %v762
        %v1899 = vunpack.c.l.b16 %v763
        %v1900 = vunpack.c.h.b16 %v763
        %v1901 = vunpack.c.l.b16 %v764
        %v1902 = vunpack.c.h.b16 %v764
        %v1903 = vunpack.c.l.b16 %v765
        %v1904 = vunpack.c.h.b16 %v765
        %v1905 = vunpack.c.l.b16 %v766
        %v1906 = vunpack.c.h.b16 %v766
        %v1907 = vunpack.c.l.b16 %v767
        %v1908 = vunpack.c.h.b16 %v767
        %v1909 = vunpack.c.l.b16 %v768
        %v1910 = vunpack.c.h.b16 %v768
        %v1911 = vunpack.c.l.b16 %v769
        %v1912 = vunpack.c.h.b16 %v769
        %v1913 = vunpack.c.l.b16 %v770
        %v1914 = vunpack.c.h.b16 %v770
        %v1915 = vunpack.c.l.b16 %v771
        %v1916 = vunpack.c.h.b16 %v771
        %v1917 = vunpack.c.l.b16 %v772
        %v1918 = vunpack.c.h.b16 %v772
        %v1919 = vunpack.c.l.b16 %v773
        %v1920 = vunpack.c.h.b16 %v773
        %v1921 = vunpack.c.l.b16 %v774
        %v1922 = vunpack.c.h.b16 %v774
        %v1923 = vunpack.c.l.b16 %v775
        %v1924 = vunpack.c.h.b16 %v775
        %v1925 = vunpack.c.l.b16 %v776
        %v1926 = vunpack.c.h.b16 %v776
        %v1927 = vunpack.c.l.b16 %v777
        %v1928 = vunpack.c.h.b16 %v777
        %v1929 = vunpack.c.l.b16 %v778
        %v1930 = vunpack.c.h.b16 %v778
        %v1931 = vpack.c.b16 %v1171, %v1163
        %v1932 = vpack.c.b16 %v1172, %v1164
        %v1933 = vpack.c.b16 %v1173, %v1165
        %v1934 = vpack.c.b16 %v1174, %v1166
        %v1935 = vpack.c.b16 %v1175, %v1167
        %v1936 = vpack.c.b16 %v1176, %v1168
        %v1937 = vpack.c.b16 %v1177, %v1169
        %v1938 = vpack.c.b16 %v1178, %v1170
        %v1939 = vpack.c.b16 %v1187, %v1179
        %v1940 = vpack.c.b16 %v1188, %v1180
        %v1941 = vpack.c.b16 %v1189, %v1181
        %v1942 = vpack.c.b16 %v1190, %v1182
        %v1943 = vpack.c.b16 %v1191, %v1183
        %v1944 = vpack.c.b16 %v1192, %v1184
        %v1945 = vpack.c.b16 %v1193, %v1185
        %v1946 = vpack.c.b16 %v1194, %v1186
        %v1947 = vpack.c.b16 %v1203, %v1195
        %v1948 = vpack.c.b16 %v1204, %v1196
        %v1949 = vpack.c.b16 %v1205, %v1197
        %v1950 = vpack.c.b16 %v1206, %v1198
        %v1951 = vpack.c.b16 %v1207, %v1199
        %v1952 = vpack.c.b16 %v1208, %v1200
        %v1953 = vpack.c.b16 %v1209, %v1201
        %v1954 = vpack.c.b16 %v1210, %v1202
        %v1955 = vpack.c.b16 %v1219, %v1211
        %v1956 = vpack.c.b16 %v1220, %v1212
        %v1957 = vpack.c.b16 %v1221, %v1213
        %v1958 = vpack.c.b16 %v1222, %v1214
        %v1959 = vpack.c.b16 %v1223, %v1215
        %v1960 = vpack.c.b16 %v1224, %v1216
        %v1961 = vpack.c.b16 %v1225, %v1217
        %v1962 = vpack.c.b16 %v1226, %v1218
        %v1963 = vpack.c.b16 %v1235, %v1227
        %v1964 = vpack.c.b16 %v1236, %v1228
        %v1965 = vpack.c.b16 %v1237, %v1229
        %v1966 = vpack.c.b16 %v1238, %v1230
        %v1967 = vpack.c.b16 %v1239, %v1231
        %v1968 = vpack.c.b16 %v1240, %v1232
        %v1969 = vpack.c.b16 %v1241, %v1233
        %v1970 = vpack.c.b16 %v1242, %v1234
        %v1971 = vpack.c.b16 %v1251, %v1243
        %v1972 = vpack.c.b16 %v1252, %v1244
        %v1973 = vpack.c.b16 %v1253, %v1245
        %v1974 = vpack.c.b16 %v1254, %v1246
        %v1975 = vpack.c.b16 %v1255, %v1247
        %v1976 = vpack.c.b16 %v1256, %v1248
        %v1977 = vpack.c.b16 %v1257, %v1249
        %v1978 = vpack.c.b16 %v1258, %v1250
        %v1979 = vpack.c.b16 %v1267, %v1259
        %v1980 = vpack.c.b16 %v1268, %v1260
        %v1981 = vpack.c.b16 %v1269, %v1261
        %v1982 = vpack.c.b16 %v1270, %v1262
        %v1983 = vpack.c.b16 %v1271, %v1263
        %v1984 = vpack.c.b16 %v1272, %v1264
        %v1985 = vpack.c.b16 %v1273, %v1265
        %v1986 = vpack.c.b16 %v1274, %v1266
        %v1987 = vpack.c.b16 %v1283, %v1275
        %v1988 = vpack.c.b16 %v1284, %v1276
        %v1989 = vpack.c.b16 %v1285, %v1277
        %v1990 = vpack.c.b16 %v1286, %v1278
        %v1991 = vpack.c.b16 %v1287, %v1279
        %v1992 = vpack.c.b16 %v1288, %v1280
        %v1993 = vpack.c.b16 %v1289, %v1281
        %v1994 = vpack.c.b16 %v1290, %v1282
        %v1995 = vpack.c.b16 %v1299, %v1291
        %v1996 = vpack.c.b16 %v1300, %v1292
        %v1997 = vpack.c.b16 %v1301, %v1293
        %v1998 = vpack.c.b16 %v1302, %v1294
        %v1999 = vpack.c.b16 %v1303, %v1295
        %v2000 = vpack.c.b16 %v1304, %v1296
        %v2001 = vpack.c.b16 %v1305, %v1297
        %v2002 = vpack.c.b16 %v1306, %v1298
        %v2003 = vpack.c.b16 %v1315, %v1307
        %v2004 = vpack.c.b16 %v1316, %v1308
        %v2005 = vpack.c.b16 %v1317, %v1309
        %v2006 = vpack.c.b16 %v1318, %v1310
        %v2007 = vpack.c.b16 %v1319, %v1311
        %v2008 = vpack.c.b16 %v1320, %v1312
        %v2009 = vpack.c.b16 %v1321, %v1313
        %v2010 = vpack.c.b16 %v1322, %v1314
        %v2011 = vpack.c.b16 %v1331, %v1323
        %v2012 = vpack.c.b16 %v1332, %v1324
        %v2013 = vpack.c.b16 %v1333, %v1325
        %v2014 = vpack.c.b16 %v1334, %v1326
        %v2015 = vpack.c.b16 %v1335, %v1327
        %v2016 = vpack.c.b16 %v1336, %v1328
        %v2017 = vpack.c.b16 %v1337, %v1329
        %v2018 = vpack.c.b16 %v1338, %v1330
        %v2019 = vpack.c.b16 %v1347, %v1339
        %v2020 = vpack.c.b16 %v1348, %v1340
        %v2021 = vpack.c.b16 %v1349, %v1341
        %v2022 = vpack.c.b16 %v1350, %v1342
        %v2023 = vpack.c.b16 %v1351, %v1343
        %v2024 = vpack.c.b16 %v1352, %v1344
        %v2025 = vpack.c.b16 %v1353, %v1345
        %v2026 = vpack.c.b16 %v1354, %v1346
        %v2027 = vpack.c.b16 %v1363, %v1355
        %v2028 = vpack.c.b16 %v1364, %v1356
        %v2029 = vpack.c.b16 %v1365, %v1357
        %v2030 = vpack.c.b16 %v1366, %v1358
        %v2031 = vpack.c.b16 %v1367, %v1359
        %v2032 = vpack.c.b16 %v1368, %v1360
        %v2033 = vpack.c.b16 %v1369, %v1361
        %v2034 = vpack.c.b16 %v1370, %v1362
        %v2035 = vpack.c.b16 %v1379, %v1371
        %v2036 = vpack.c.b16 %v1380, %v1372
        %v2037 = vpack.c.b16 %v1381, %v1373
        %v2038 = vpack.c.b16 %v1382, %v1374
        %v2039 = vpack.c.b16 %v1383, %v1375
        %v2040 = vpack.c.b16 %v1384, %v1376
        %v2041 = vpack.c.b16 %v1385, %v1377
        %v2042 = vpack.c.b16 %v1386, %v1378
        %v2043 = vpack.c.b16 %v1395, %v1387
        %v2044 = vpack.c.b16 %v1396, %v1388
        %v2045 = vpack.c.b16 %v1397, %v1389
        %v2046 = vpack.c.b16 %v1398, %v1390
        %v2047 = vpack.c.b16 %v1399, %v1391
        %v2048 = vpack.c.b16 %v1400, %v1392
        %v2049 = vpack.c.b16 %v1401, %v1393
        %v2050 = vpack.c.b16 %v1402, %v1394
        %v2051 = vpack.c.b16 %v1411, %v1403
        %v2052 = vpack.c.b16 %v1412, %v1404
        %v2053 = vpack.c.b16 %v1413, %v1405
        %v2054 = vpack.c.b16 %v1414, %v1406
        %v2055 = vpack.c.b16 %v1415, %v1407
        %v2056 = vpack.c.b16 %v1416, %v1408
        %v2057 = vpack.c.b16 %v1417, %v1409
        %v2058 = vpack.c.b16 %v1418, %v1410
        %v2059 = vpack.c.b16 %v1427, %v1419
        %v2060 = vpack.c.b16 %v1428, %v1420
        %v2061 = vpack.c.b16 %v1429, %v1421
        %v2062 = vpack.c.b16 %v1430, %v1422
        %v2063 = vpack.c.b16 %v1431, %v1423
        %v2064 = vpack.c.b16 %v1432, %v1424
        %v2065 = vpack.c.b16 %v1433, %v1425
        %v2066 = vpack.c.b16 %v1434, %v1426
        %v2067 = vpack.c.b16 %v1443, %v1435
        %v2068 = vpack.c.b16 %v1444, %v1436
        %v2069 = vpack.c.b16 %v1445, %v1437
        %v2070 = vpack.c.b16 %v1446, %v1438
        %v2071 = vpack.c.b16 %v1447, %v1439
        %v2072 = vpack.c.b16 %v1448, %v1440
        %v2073 = vpack.c.b16 %v1449, %v1441
        %v2074 = vpack.c.b16 %v1450, %v1442
        %v2075 = vpack.c.b16 %v1459, %v1451
        %v2076 = vpack.c.b16 %v1460, %v1452
        %v2077 = vpack.c.b16 %v1461, %v1453
        %v2078 = vpack.c.b16 %v1462, %v1454
        %v2079 = vpack.c.b16 %v1463, %v1455
        %v2080 = vpack.c.b16 %v1464, %v1456
        %v2081 = vpack.c.b16 %v1465, %v1457
        %v2082 = vpack.c.b16 %v1466, %v1458
        %v2083 = vpack.c.b16 %v1475, %v1467
        %v2084 = vpack.c.b16 %v1476, %v1468
        %v2085 = vpack.c.b16 %v1477, %v1469
        %v2086 = vpack.c.b16 %v1478, %v1470
        %v2087 = vpack.c.b16 %v1479, %v1471
        %v2088 = vpack.c.b16 %v1480, %v1472
        %v2089 = vpack.c.b16 %v1481, %v1473
        %v2090 = vpack.c.b16 %v1482, %v1474
        %v2091 = vpack.c.b16 %v1491, %v1483
        %v2092 = vpack.c.b16 %v1492, %v1484
        %v2093 = vpack.c.b16 %v1493, %v1485
        %v2094 = vpack.c.b16 %v1494, %v1486
        %v2095 = vpack.c.b16 %v1495, %v1487
        %v2096 = vpack.c.b16 %v1496, %v1488
        %v2097 = vpack.c.b16 %v1497, %v1489
        %v2098 = vpack.c.b16 %v1498, %v1490
        %v2099 = vpack.c.b16 %v1507, %v1499
        %v2100 = vpack.c.b16 %v1508, %v1500
        %v2101 = vpack.c.b16 %v1509, %v1501
        %v2102 = vpack.c.b16 %v1510, %v1502
        %v2103 = vpack.c.b16 %v1511, %v1503
        %v2104 = vpack.c.b16 %v1512, %v1504
        %v2105 = vpack.c.b16 %v1513, %v1505
        %v2106 = vpack.c.b16 %v1514, %v1506
        %v2107 = vpack.c.b16 %v1523, %v1515
        %v2108 = vpack.c.b16 %v1524, %v1516
        %v2109 = vpack.c.b16 %v1525, %v1517
        %v2110 = vpack.c.b16 %v1526, %v1518
        %v2111 = vpack.c.b16 %v1527, %v1519
        %v2112 = vpack.c.b16 %v1528, %v1520
        %v2113 = vpack.c.b16 %v1529, %v1521
        %v2114 = vpack.c.b16 %v1530, %v1522
        %v2115 = vpack.c.b16 %v1539, %v1531
        %v2116 = vpack.c.b16 %v1540, %v1532
        %v2117 = vpack.c.b16 %v1541, %v1533
        %v2118 = vpack.c.b16 %v1542, %v1534
        %v2119 = vpack.c.b16 %v1543, %v1535
        %v2120 = vpack.c.b16 %v1544, %v1536
        %v2121 = vpack.c.b16 %v1545, %v1537
        %v2122 = vpack.c.b16 %v1546, %v1538
        %v2123 = vpack.c.b16 %v1555, %v1547
        %v2124 = vpack.c.b16 %v1556, %v1548
        %v2125 = vpack.c.b16 %v1557, %v1549
        %v2126 = vpack.c.b16 %v1558, %v1550
        %v2127 = vpack.c.b16 %v1559, %v1551
        %v2128 = vpack.c.b16 %v1560, %v1552
        %v2129 = vpack.c.b16 %v1561, %v1553
        %v2130 = vpack.c.b16 %v1562, %v1554
        %v2131 = vpack.c.b16 %v1571, %v1563
        %v2132 = vpack.c.b16 %v1572, %v1564
        %v2133 = vpack.c.b16 %v1573, %v1565
        %v2134 = vpack.c.b16 %v1574, %v1566
        %v2135 = vpack.c.b16 %v1575, %v1567
        %v2136 = vpack.c.b16 %v1576, %v1568
        %v2137 = vpack.c.b16 %v1577, %v1569
        %v2138 = vpack.c.b16 %v1578, %v1570
        %v2139 = vpack.c.b16 %v1587, %v1579
        %v2140 = vpack.c.b16 %v1588, %v1580
        %v2141 = vpack.c.b16 %v1589, %v1581
        %v2142 = vpack.c.b16 %v1590, %v1582
        %v2143 = vpack.c.b16 %v1591, %v1583
        %v2144 = vpack.c.b16 %v1592, %v1584
        %v2145 = vpack.c.b16 %v1593, %v1585
        %v2146 = vpack.c.b16 %v1594, %v1586
        %v2147 = vpack.c.b16 %v1603, %v1595
        %v2148 = vpack.c.b16 %v1604, %v1596
        %v2149 = vpack.c.b16 %v1605, %v1597
        %v2150 = vpack.c.b16 %v1606, %v1598
        %v2151 = vpack.c.b16 %v1607, %v1599
        %v2152 = vpack.c.b16 %v1608, %v1600
        %v2153 = vpack.c.b16 %v1609, %v1601
        %v2154 = vpack.c.b16 %v1610, %v1602
        %v2155 = vpack.c.b16 %v1619, %v1611
        %v2156 = vpack.c.b16 %v1620, %v1612
        %v2157 = vpack.c.b16 %v1621, %v1613
        %v2158 = vpack.c.b16 %v1622, %v1614
        %v2159 = vpack.c.b16 %v1623, %v1615
        %v2160 = vpack.c.b16 %v1624, %v1616
        %v2161 = vpack.c.b16 %v1625, %v1617
        %v2162 = vpack.c.b16 %v1626, %v1618
        %v2163 = vpack.c.b16 %v1635, %v1627
        %v2164 = vpack.c.b16 %v1636, %v1628
        %v2165 = vpack.c.b16 %v1637, %v1629
        %v2166 = vpack.c.b16 %v1638, %v1630
        %v2167 = vpack.c.b16 %v1639, %v1631
        %v2168 = vpack.c.b16 %v1640, %v1632
        %v2169 = vpack.c.b16 %v1641, %v1633
        %v2170 = vpack.c.b16 %v1642, %v1634
        %v2171 = vpack.c.b16 %v1651, %v1643
        %v2172 = vpack.c.b16 %v1652, %v1644
        %v2173 = vpack.c.b16 %v1653, %v1645
        %v2174 = vpack.c.b16 %v1654, %v1646
        %v2175 = vpack.c.b16 %v1655, %v1647
        %v2176 = vpack.c.b16 %v1656, %v1648
        %v2177 = vpack.c.b16 %v1657, %v1649
        %v2178 = vpack.c.b16 %v1658, %v1650
        %v2179 = vpack.c.b16 %v1667, %v1659
        %v2180 = vpack.c.b16 %v1668, %v1660
        %v2181 = vpack.c.b16 %v1669, %v1661
        %v2182 = vpack.c.b16 %v1670, %v1662
        %v2183 = vpack.c.b16 %v1671, %v1663
        %v2184 = vpack.c.b16 %v1672, %v1664
        %v2185 = vpack.c.b16 %v1673, %v1665
        %v2186 = vpack.c.b16 %v1674, %v1666
        %v2187 = vpack.c.b16 %v1683, %v1675
        %v2188 = vpack.c.b16 %v1684, %v1676
        %v2189 = vpack.c.b16 %v1685, %v1677
        %v2190 = vpack.c.b16 %v1686, %v1678
        %v2191 = vpack.c.b16 %v1687, %v1679
        %v2192 = vpack.c.b16 %v1688, %v1680
        %v2193 = vpack.c.b16 %v1689, %v1681
        %v2194 = vpack.c.b16 %v1690, %v1682
        %v2195 = vpack.c.b16 %v1699, %v1691
        %v2196 = vpack.c.b16 %v1700, %v1692
        %v2197 = vpack.c.b16 %v1701, %v1693
        %v2198 = vpack.c.b16 %v1702, %v1694
        %v2199 = vpack.c.b16 %v1703, %v1695
        %v2200 = vpack.c.b16 %v1704, %v1696
        %v2201 = vpack.c.b16 %v1705, %v1697
        %v2202 = vpack.c.b16 %v1706, %v1698
        %v2203 = vpack.c.b16 %v1715, %v1707
        %v2204 = vpack.c.b16 %v1716, %v1708
        %v2205 = vpack.c.b16 %v1717, %v1709
        %v2206 = vpack.c.b16 %v1718, %v1710
        %v2207 = vpack.c.b16 %v1719, %v1711
        %v2208 = vpack.c.b16 %v1720, %v1712
        %v2209 = vpack.c.b16 %v1721, %v1713
        %v2210 = vpack.c.b16 %v1722, %v1714
        %v2211 = vpack.c.b16 %v1731, %v1723
        %v2212 = vpack.c.b16 %v1732, %v1724
        %v2213 = vpack.c.b16 %v1733, %v1725
        %v2214 = vpack.c.b16 %v1734, %v1726
        %v2215 = vpack.c.b16 %v1735, %v1727
        %v2216 = vpack.c.b16 %v1736, %v1728
        %v2217 = vpack.c.b16 %v1737, %v1729
        %v2218 = vpack.c.b16 %v1738, %v1730
        %v2219 = vpack.c.b16 %v1747, %v1739
        %v2220 = vpack.c.b16 %v1748, %v1740
        %v2221 = vpack.c.b16 %v1749, %v1741
        %v2222 = vpack.c.b16 %v1750, %v1742
        %v2223 = vpack.c.b16 %v1751, %v1743
        %v2224 = vpack.c.b16 %v1752, %v1744
        %v2225 = vpack.c.b16 %v1753, %v1745
        %v2226 = vpack.c.b16 %v1754, %v1746
        %v2227 = vpack.c.b16 %v1763, %v1755
        %v2228 = vpack.c.b16 %v1764, %v1756
        %v2229 = vpack.c.b16 %v1765, %v1757
        %v2230 = vpack.c.b16 %v1766, %v1758
        %v2231 = vpack.c.b16 %v1767, %v1759
        %v2232 = vpack.c.b16 %v1768, %v1760
        %v2233 = vpack.c.b16 %v1769, %v1761
        %v2234 = vpack.c.b16 %v1770, %v1762
        %v2235 = vpack.c.b16 %v1779, %v1771
        %v2236 = vpack.c.b16 %v1780, %v1772
        %v2237 = vpack.c.b16 %v1781, %v1773
        %v2238 = vpack.c.b16 %v1782, %v1774
        %v2239 = vpack.c.b16 %v1783, %v1775
        %v2240 = vpack.c.b16 %v1784, %v1776
        %v2241 = vpack.c.b16 %v1785, %v1777
        %v2242 = vpack.c.b16 %v1786, %v1778
        %v2243 = vpack.c.b16 %v1795, %v1787
        %v2244 = vpack.c.b16 %v1796, %v1788
        %v2245 = vpack.c.b16 %v1797, %v1789
        %v2246 = vpack.c.b16 %v1798, %v1790
        %v2247 = vpack.c.b16 %v1799, %v1791
        %v2248 = vpack.c.b16 %v1800, %v1792
        %v2249 = vpack.c.b16 %v1801, %v1793
        %v2250 = vpack.c.b16 %v1802, %v1794
        %v2251 = vpack.c.b16 %v1811, %v1803
        %v2252 = vpack.c.b16 %v1812, %v1804
        %v2253 = vpack.c.b16 %v1813, %v1805
        %v2254 = vpack.c.b16 %v1814, %v1806
        %v2255 = vpack.c.b16 %v1815, %v1807
        %v2256 = vpack.c.b16 %v1816, %v1808
        %v2257 = vpack.c.b16 %v1817, %v1809
        %v2258 = vpack.c.b16 %v1818, %v1810
        %v2259 = vpack.c.b16 %v1827, %v1819
        %v2260 = vpack.c.b16 %v1828, %v1820
        %v2261 = vpack.c.b16 %v1829, %v1821
        %v2262 = vpack.c.b16 %v1830, %v1822
        %v2263 = vpack.c.b16 %v1831, %v1823
        %v2264 = vpack.c.b16 %v1832, %v1824
        %v2265 = vpack.c.b16 %v1833, %v1825
        %v2266 = vpack.c.b16 %v1834, %v1826
        %v2267 = vpack.c.b16 %v1843, %v1835
        %v2268 = vpack.c.b16 %v1844, %v1836
        %v2269 = vpack.c.b16 %v1845, %v1837
        %v2270 = vpack.c.b16 %v1846, %v1838
        %v2271 = vpack.c.b16 %v1847, %v1839
        %v2272 = vpack.c.b16 %v1848, %v1840
        %v2273 = vpack.c.b16 %v1849, %v1841
        %v2274 = vpack.c.b16 %v1850, %v1842
        %v2275 = vpack.c.b16 %v1859, %v1851
        %v2276 = vpack.c.b16 %v1860, %v1852
        %v2277 = vpack.c.b16 %v1861, %v1853
        %v2278 = vpack.c.b16 %v1862, %v1854
        %v2279 = vpack.c.b16 %v1863, %v1855
        %v2280 = vpack.c.b16 %v1864, %v1856
        %v2281 = vpack.c.b16 %v1865, %v1857
        %v2282 = vpack.c.b16 %v1866, %v1858
        %v2283 = vpack.c.b16 %v1875, %v1867
        %v2284 = vpack.c.b16 %v1876, %v1868
        %v2285 = vpack.c.b16 %v1877, %v1869
        %v2286 = vpack.c.b16 %v1878, %v1870
        %v2287 = vpack.c.b16 %v1879, %v1871
        %v2288 = vpack.c.b16 %v1880, %v1872
        %v2289 = vpack.c.b16 %v1881, %v1873
        %v2290 = vpack.c.b16 %v1882, %v1874
        %v2291 = vpack.c.b16 %v1891, %v1883
        %v2292 = vpack.c.b16 %v1892, %v1884
        %v2293 = vpack.c.b16 %v1893, %v1885
        %v2294 = vpack.c.b16 %v1894, %v1886
        %v2295 = vpack.c.b16 %v1895, %v1887
        %v2296 = vpack.c.b16 %v1896, %v1888
        %v2297 = vpack.c.b16 %v1897, %v1889
        %v2298 = vpack.c.b16 %v1898, %v1890
        %v2299 = vpack.c.b16 %v1907, %v1899
        %v2300 = vpack.c.b16 %v1908, %v1900
        %v2301 = vpack.c.b16 %v1909, %v1901
        %v2302 = vpack.c.b16 %v1910, %v1902
        %v2303 = vpack.c.b16 %v1911, %v1903
        %v2304 = vpack.c.b16 %v1912, %v1904
        %v2305 = vpack.c.b16 %v1913, %v1905
        %v2306 = vpack.c.b16 %v1914, %v1906
        %v2307 = vpack.c.b16 %v1923, %v1915
        %v2308 = vpack.c.b16 %v1924, %v1916
        %v2309 = vpack.c.b16 %v1925, %v1917
        %v2310 = vpack.c.b16 %v1926, %v1918
        %v2311 = vpack.c.b16 %v1927, %v1919
        %v2312 = vpack.c.b16 %v1928, %v1920
        %v2313 = vpack.c.b16 %v1929, %v1921
        %v2314 = vpack.c.b16 %v1930, %v1922
        %2699 = vmatpush.bf16.msra.mxu0 %v1987
        %2700 = vmatpush.bf16.msra.mxu0 %v1979
        %2701 = vmatpush.bf16.msra.mxu0 %v1971
        %2702 = vmatpush.bf16.msra.mxu0 %v1963
        %2703 = vmatpush.bf16.msra.mxu0 %v1955
        %2704 = vmatpush.bf16.msra.mxu0 %v1947
        %2705 = vmatpush.bf16.msra.mxu0 %v1939
        %2706 = vmatpush.bf16.msra.mxu0 %v1931
        %2707 = vmatmul.bf16.gmra.mxu0 %v347
        %v2708 = vpop.f32.mrf.mxu0
        %v2709 = vadd.f32 0.0, %v2708
        %v2710 = vpop.f32.mrf.mxu0
        %v2711 = vadd.f32 0.0, %v2710
        %2712 = vmatmul.bf16.gmra.mxu0 %v353
        %v2713 = vpop.f32.mrf.mxu0
        %v2714 = vadd.f32 0.0, %v2713
        %v2715 = vpop.f32.mrf.mxu0
        %v2716 = vadd.f32 0.0, %v2715
        %2717 = vmatmul.bf16.gmra.mxu0 %v359
        %v2718 = vpop.f32.mrf.mxu0
        %v2719 = vadd.f32 0.0, %v2718
        %v2720 = vpop.f32.mrf.mxu0
        %v2721 = vadd.f32 0.0, %v2720
        %2722 = vmatmul.bf16.gmra.mxu0 %v365
        %v2723 = vpop.f32.mrf.mxu0
        %v2724 = vadd.f32 0.0, %v2723
        %v2725 = vpop.f32.mrf.mxu0
        %v2726 = vadd.f32 0.0, %v2725
        %2727 = vmatmul.bf16.gmra.mxu0 %v371
        %v2728 = vpop.f32.mrf.mxu0
        %v2729 = vadd.f32 0.0, %v2728
        %v2730 = vpop.f32.mrf.mxu0
        %v2731 = vadd.f32 0.0, %v2730
        %2732 = vmatmul.bf16.gmra.mxu0 %v377
        %v2733 = vpop.f32.mrf.mxu0
        %v2734 = vadd.f32 0.0, %v2733
        %v2735 = vpop.f32.mrf.mxu0
        %v2736 = vadd.f32 0.0, %v2735
        %2737 = vmatmul.bf16.gmra.mxu0 %v383
        %v2738 = vpop.f32.mrf.mxu0
        %v2739 = vadd.f32 0.0, %v2738
        %v2740 = vpop.f32.mrf.mxu0
        %v2741 = vadd.f32 0.0, %v2740
        %2742 = vmatmul.bf16.gmra.mxu0 %v389
        %v2743 = vpop.f32.mrf.mxu0
        %v2744 = vadd.f32 0.0, %v2743
        %v2745 = vpop.f32.mrf.mxu0
        %v2746 = vadd.f32 0.0, %v2745
        %2747 = vdwg.mxu0
        %2748 = vmatpush.bf16.msra.mxu0 %v2051
        %2749 = vmatpush.bf16.msra.mxu0 %v2043
        %2750 = vmatpush.bf16.msra.mxu0 %v2035
        %2751 = vmatpush.bf16.msra.mxu0 %v2027
        %2752 = vmatpush.bf16.msra.mxu0 %v2019
        %2753 = vmatpush.bf16.msra.mxu0 %v2011
        %2754 = vmatpush.bf16.msra.mxu0 %v2003
        %2755 = vmatpush.bf16.msra.mxu0 %v1995
        %2756 = vmatmul.bf16.gmra.mxu0 %v348
        %v2757 = vpop.f32.mrf.mxu0
        %v2758 = vadd.f32 %v2709, %v2757
        %v2759 = vpop.f32.mrf.mxu0
        %v2760 = vadd.f32 %v2711, %v2759
        %2761 = vmatmul.bf16.gmra.mxu0 %v354
        %v2762 = vpop.f32.mrf.mxu0
        %v2763 = vadd.f32 %v2714, %v2762
        %v2764 = vpop.f32.mrf.mxu0
        %v2765 = vadd.f32 %v2716, %v2764
        %2766 = vmatmul.bf16.gmra.mxu0 %v360
        %v2767 = vpop.f32.mrf.mxu0
        %v2768 = vadd.f32 %v2719, %v2767
        %v2769 = vpop.f32.mrf.mxu0
        %v2770 = vadd.f32 %v2721, %v2769
        %2771 = vmatmul.bf16.gmra.mxu0 %v366
        %v2772 = vpop.f32.mrf.mxu0
        %v2773 = vadd.f32 %v2724, %v2772
        %v2774 = vpop.f32.mrf.mxu0
        %v2775 = vadd.f32 %v2726, %v2774
        %2776 = vmatmul.bf16.gmra.mxu0 %v372
        %v2777 = vpop.f32.mrf.mxu0
        %v2778 = vadd.f32 %v2729, %v2777
        %v2779 = vpop.f32.mrf.mxu0
        %v2780 = vadd.f32 %v2731, %v2779
        %2781 = vmatmul.bf16.gmra.mxu0 %v378
        %v2782 = vpop.f32.mrf.mxu0
        %v2783 = vadd.f32 %v2734, %v2782
        %v2784 = vpop.f32.mrf.mxu0
        %v2785 = vadd.f32 %v2736, %v2784
        %2786 = vmatmul.bf16.gmra.mxu0 %v384
        %v2787 = vpop.f32.mrf.mxu0
        %v2788 = vadd.f32 %v2739, %v2787
        %v2789 = vpop.f32.mrf.mxu0
        %v2790 = vadd.f32 %v2741, %v2789
        %2791 = vmatmul.bf16.gmra.mxu0 %v390
        %v2792 = vpop.f32.mrf.mxu0
        %v2793 = vadd.f32 %v2744, %v2792
        %v2794 = vpop.f32.mrf.mxu0
        %v2795 = vadd.f32 %v2746, %v2794
        %2796 = vdwg.mxu0
        %2797 = vmatpush.bf16.msra.mxu0 %v2115
        %2798 = vmatpush.bf16.msra.mxu0 %v2107
        %2799 = vmatpush.bf16.msra.mxu0 %v2099
        %2800 = vmatpush.bf16.msra.mxu0 %v2091
        %2801 = vmatpush.bf16.msra.mxu0 %v2083
        %2802 = vmatpush.bf16.msra.mxu0 %v2075
        %2803 = vmatpush.bf16.msra.mxu0 %v2067
        %2804 = vmatpush.bf16.msra.mxu0 %v2059
        %2805 = vmatmul.bf16.gmra.mxu0 %v349
        %v2806 = vpop.f32.mrf.mxu0
        %v2807 = vadd.f32 %v2758, %v2806
        %v2808 = vpop.f32.mrf.mxu0
        %v2809 = vadd.f32 %v2760, %v2808
        %2810 = vmatmul.bf16.gmra.mxu0 %v355
        %v2811 = vpop.f32.mrf.mxu0
        %v2812 = vadd.f32 %v2763, %v2811
        %v2813 = vpop.f32.mrf.mxu0
        %v2814 = vadd.f32 %v2765, %v2813
        %2815 = vmatmul.bf16.gmra.mxu0 %v361
        %v2816 = vpop.f32.mrf.mxu0
        %v2817 = vadd.f32 %v2768, %v2816
        %v2818 = vpop.f32.mrf.mxu0
        %v2819 = vadd.f32 %v2770, %v2818
        %2820 = vmatmul.bf16.gmra.mxu0 %v367
        %v2821 = vpop.f32.mrf.mxu0
        %v2822 = vadd.f32 %v2773, %v2821
        %v2823 = vpop.f32.mrf.mxu0
        %v2824 = vadd.f32 %v2775, %v2823
        %2825 = vmatmul.bf16.gmra.mxu0 %v373
        %v2826 = vpop.f32.mrf.mxu0
        %v2827 = vadd.f32 %v2778, %v2826
        %v2828 = vpop.f32.mrf.mxu0
        %v2829 = vadd.f32 %v2780, %v2828
        %2830 = vmatmul.bf16.gmra.mxu0 %v379
        %v2831 = vpop.f32.mrf.mxu0
        %v2832 = vadd.f32 %v2783, %v2831
        %v2833 = vpop.f32.mrf.mxu0
        %v2834 = vadd.f32 %v2785, %v2833
        %2835 = vmatmul.bf16.gmra.mxu0 %v385
        %v2836 = vpop.f32.mrf.mxu0
        %v2837 = vadd.f32 %v2788, %v2836
        %v2838 = vpop.f32.mrf.mxu0
        %v2839 = vadd.f32 %v2790, %v2838
        %2840 = vmatmul.bf16.gmra.mxu0 %v391
        %v2841 = vpop.f32.mrf.mxu0
        %v2842 = vadd.f32 %v2793, %v2841
        %v2843 = vpop.f32.mrf.mxu0
        %v2844 = vadd.f32 %v2795, %v2843
        %2845 = vdwg.mxu0
        %2846 = vmatpush.bf16.msra.mxu0 %v2179
        %2847 = vmatpush.bf16.msra.mxu0 %v2171
        %2848 = vmatpush.bf16.msra.mxu0 %v2163
        %2849 = vmatpush.bf16.msra.mxu0 %v2155
        %2850 = vmatpush.bf16.msra.mxu0 %v2147
        %2851 = vmatpush.bf16.msra.mxu0 %v2139
        %2852 = vmatpush.bf16.msra.mxu0 %v2131
        %2853 = vmatpush.bf16.msra.mxu0 %v2123
        %2854 = vmatmul.bf16.gmra.mxu0 %v350
        %v2855 = vpop.f32.mrf.mxu0
        %v2856 = vadd.f32 %v2807, %v2855
        %v2857 = vpop.f32.mrf.mxu0
        %v2858 = vadd.f32 %v2809, %v2857
        %2859 = vmatmul.bf16.gmra.mxu0 %v356
        %v2860 = vpop.f32.mrf.mxu0
        %v2861 = vadd.f32 %v2812, %v2860
        %v2862 = vpop.f32.mrf.mxu0
        %v2863 = vadd.f32 %v2814, %v2862
        %2864 = vmatmul.bf16.gmra.mxu0 %v362
        %v2865 = vpop.f32.mrf.mxu0
        %v2866 = vadd.f32 %v2817, %v2865
        %v2867 = vpop.f32.mrf.mxu0
        %v2868 = vadd.f32 %v2819, %v2867
        %2869 = vmatmul.bf16.gmra.mxu0 %v368
        %v2870 = vpop.f32.mrf.mxu0
        %v2871 = vadd.f32 %v2822, %v2870
        %v2872 = vpop.f32.mrf.mxu0
        %v2873 = vadd.f32 %v2824, %v2872
        %2874 = vmatmul.bf16.gmra.mxu0 %v374
        %v2875 = vpop.f32.mrf.mxu0
        %v2876 = vadd.f32 %v2827, %v2875
        %v2877 = vpop.f32.mrf.mxu0
        %v2878 = vadd.f32 %v2829, %v2877
        %2879 = vmatmul.bf16.gmra.mxu0 %v380
        %v2880 = vpop.f32.mrf.mxu0
        %v2881 = vadd.f32 %v2832, %v2880
        %v2882 = vpop.f32.mrf.mxu0
        %v2883 = vadd.f32 %v2834, %v2882
        %2884 = vmatmul.bf16.gmra.mxu0 %v386
        %v2885 = vpop.f32.mrf.mxu0
        %v2886 = vadd.f32 %v2837, %v2885
        %v2887 = vpop.f32.mrf.mxu0
        %v2888 = vadd.f32 %v2839, %v2887
        %2889 = vmatmul.bf16.gmra.mxu0 %v392
        %v2890 = vpop.f32.mrf.mxu0
        %v2891 = vadd.f32 %v2842, %v2890
        %v2892 = vpop.f32.mrf.mxu0
        %v2893 = vadd.f32 %v2844, %v2892
        %2894 = vdwg.mxu0
        %2895 = vmatpush.bf16.msra.mxu0 %v2243
        %2896 = vmatpush.bf16.msra.mxu0 %v2235
        %2897 = vmatpush.bf16.msra.mxu0 %v2227
        %2898 = vmatpush.bf16.msra.mxu0 %v2219
        %2899 = vmatpush.bf16.msra.mxu0 %v2211
        %2900 = vmatpush.bf16.msra.mxu0 %v2203
        %2901 = vmatpush.bf16.msra.mxu0 %v2195
        %2902 = vmatpush.bf16.msra.mxu0 %v2187
        %2903 = vmatmul.bf16.gmra.mxu0 %v351
        %v2904 = vpop.f32.mrf.mxu0
        %v2905 = vadd.f32 %v2856, %v2904
        %v2906 = vpop.f32.mrf.mxu0
        %v2907 = vadd.f32 %v2858, %v2906
        %2908 = vmatmul.bf16.gmra.mxu0 %v357
        %v2909 = vpop.f32.mrf.mxu0
        %v2910 = vadd.f32 %v2861, %v2909
        %v2911 = vpop.f32.mrf.mxu0
        %v2912 = vadd.f32 %v2863, %v2911
        %2913 = vmatmul.bf16.gmra.mxu0 %v363
        %v2914 = vpop.f32.mrf.mxu0
        %v2915 = vadd.f32 %v2866, %v2914
        %v2916 = vpop.f32.mrf.mxu0
        %v2917 = vadd.f32 %v2868, %v2916
        %2918 = vmatmul.bf16.gmra.mxu0 %v369
        %v2919 = vpop.f32.mrf.mxu0
        %v2920 = vadd.f32 %v2871, %v2919
        %v2921 = vpop.f32.mrf.mxu0
        %v2922 = vadd.f32 %v2873, %v2921
        %2923 = vmatmul.bf16.gmra.mxu0 %v375
        %v2924 = vpop.f32.mrf.mxu0
        %v2925 = vadd.f32 %v2876, %v2924
        %v2926 = vpop.f32.mrf.mxu0
        %v2927 = vadd.f32 %v2878, %v2926
        %2928 = vmatmul.bf16.gmra.mxu0 %v381
        %v2929 = vpop.f32.mrf.mxu0
        %v2930 = vadd.f32 %v2881, %v2929
        %v2931 = vpop.f32.mrf.mxu0
        %v2932 = vadd.f32 %v2883, %v2931
        %2933 = vmatmul.bf16.gmra.mxu0 %v387
        %v2934 = vpop.f32.mrf.mxu0
        %v2935 = vadd.f32 %v2886, %v2934
        %v2936 = vpop.f32.mrf.mxu0
        %v2937 = vadd.f32 %v2888, %v2936
        %2938 = vmatmul.bf16.gmra.mxu0 %v393
        %v2939 = vpop.f32.mrf.mxu0
        %v2940 = vadd.f32 %v2891, %v2939
        %v2941 = vpop.f32.mrf.mxu0
        %v2942 = vadd.f32 %v2893, %v2941
        %2943 = vdwg.mxu0
        %2944 = vmatpush.bf16.msra.mxu0 %v2307
        %2945 = vmatpush.bf16.msra.mxu0 %v2299
        %2946 = vmatpush.bf16.msra.mxu0 %v2291
        %2947 = vmatpush.bf16.msra.mxu0 %v2283
        %2948 = vmatpush.bf16.msra.mxu0 %v2275
        %2949 = vmatpush.bf16.msra.mxu0 %v2267
        %2950 = vmatpush.bf16.msra.mxu0 %v2259
        %2951 = vmatpush.bf16.msra.mxu0 %v2251
        %2952 = vmatmul.bf16.gmra.mxu0 %v352
        %v2953 = vpop.f32.mrf.mxu0
        %v2954 = vadd.f32 %v2905, %v2953
        %v2955 = vpop.f32.mrf.mxu0
        %v2956 = vadd.f32 %v2907, %v2955
        %2957 = vmatmul.bf16.gmra.mxu0 %v358
        %v2958 = vpop.f32.mrf.mxu0
        %v2959 = vadd.f32 %v2910, %v2958
        %v2960 = vpop.f32.mrf.mxu0
        %v2961 = vadd.f32 %v2912, %v2960
        %2962 = vmatmul.bf16.gmra.mxu0 %v364
        %v2963 = vpop.f32.mrf.mxu0
        %v2964 = vadd.f32 %v2915, %v2963
        %v2965 = vpop.f32.mrf.mxu0
        %v2966 = vadd.f32 %v2917, %v2965
        %2967 = vmatmul.bf16.gmra.mxu0 %v370
        %v2968 = vpop.f32.mrf.mxu0
        %v2969 = vadd.f32 %v2920, %v2968
        %v2970 = vpop.f32.mrf.mxu0
        %v2971 = vadd.f32 %v2922, %v2970
        %2972 = vmatmul.bf16.gmra.mxu0 %v376
        %v2973 = vpop.f32.mrf.mxu0
        %v2974 = vadd.f32 %v2925, %v2973
        %v2975 = vpop.f32.mrf.mxu0
        %v2976 = vadd.f32 %v2927, %v2975
        %2977 = vmatmul.bf16.gmra.mxu0 %v382
        %v2978 = vpop.f32.mrf.mxu0
        %v2979 = vadd.f32 %v2930, %v2978
        %v2980 = vpop.f32.mrf.mxu0
        %v2981 = vadd.f32 %v2932, %v2980
        %2982 = vmatmul.bf16.gmra.mxu0 %v388
        %v2983 = vpop.f32.mrf.mxu0
        %v2984 = vadd.f32 %v2935, %v2983
        %v2985 = vpop.f32.mrf.mxu0
        %v2986 = vadd.f32 %v2937, %v2985
        %2987 = vmatmul.bf16.gmra.mxu0 %v394
        %v2988 = vpop.f32.mrf.mxu0
        %v2989 = vadd.f32 %v2940, %v2988
        %v2990 = vpop.f32.mrf.mxu0
        %v2991 = vadd.f32 %v2942, %v2990
        %2992 = vdwg.mxu0
        %2993 = vmatpush.bf16.msra.mxu0 %v1988
        %2994 = vmatpush.bf16.msra.mxu0 %v1980
        %2995 = vmatpush.bf16.msra.mxu0 %v1972
        %2996 = vmatpush.bf16.msra.mxu0 %v1964
        %2997 = vmatpush.bf16.msra.mxu0 %v1956
        %2998 = vmatpush.bf16.msra.mxu0 %v1948
        %2999 = vmatpush.bf16.msra.mxu0 %v1940
        %3000 = vmatpush.bf16.msra.mxu0 %v1932
        %3001 = vmatmul.bf16.gmra.mxu0 %v347
        %v3002 = vpop.f32.mrf.mxu0
        %v3003 = vadd.f32 0.0, %v3002
        %v3004 = vpop.f32.mrf.mxu0
        %v3005 = vadd.f32 0.0, %v3004
        %3006 = vmatmul.bf16.gmra.mxu0 %v353
        %v3007 = vpop.f32.mrf.mxu0
        %v3008 = vadd.f32 0.0, %v3007
        %v3009 = vpop.f32.mrf.mxu0
        %v3010 = vadd.f32 0.0, %v3009
        %3011 = vmatmul.bf16.gmra.mxu0 %v359
        %v3012 = vpop.f32.mrf.mxu0
        %v3013 = vadd.f32 0.0, %v3012
        %v3014 = vpop.f32.mrf.mxu0
        %v3015 = vadd.f32 0.0, %v3014
        %3016 = vmatmul.bf16.gmra.mxu0 %v365
        %v3017 = vpop.f32.mrf.mxu0
        %v3018 = vadd.f32 0.0, %v3017
        %v3019 = vpop.f32.mrf.mxu0
        %v3020 = vadd.f32 0.0, %v3019
        %3021 = vmatmul.bf16.gmra.mxu0 %v371
        %v3022 = vpop.f32.mrf.mxu0
        %v3023 = vadd.f32 0.0, %v3022
        %v3024 = vpop.f32.mrf.mxu0
        %v3025 = vadd.f32 0.0, %v3024
        %3026 = vmatmul.bf16.gmra.mxu0 %v377
        %v3027 = vpop.f32.mrf.mxu0
        %v3028 = vadd.f32 0.0, %v3027
        %v3029 = vpop.f32.mrf.mxu0
        %v3030 = vadd.f32 0.0, %v3029
        %3031 = vmatmul.bf16.gmra.mxu0 %v383
        %v3032 = vpop.f32.mrf.mxu0
        %v3033 = vadd.f32 0.0, %v3032
        %v3034 = vpop.f32.mrf.mxu0
        %v3035 = vadd.f32 0.0, %v3034
        %3036 = vmatmul.bf16.gmra.mxu0 %v389
        %v3037 = vpop.f32.mrf.mxu0
        %v3038 = vadd.f32 0.0, %v3037
        %v3039 = vpop.f32.mrf.mxu0
        %v3040 = vadd.f32 0.0, %v3039
        %3041 = vdwg.mxu0
        %3042 = vmatpush.bf16.msra.mxu0 %v2052
        %3043 = vmatpush.bf16.msra.mxu0 %v2044
        %3044 = vmatpush.bf16.msra.mxu0 %v2036
        %3045 = vmatpush.bf16.msra.mxu0 %v2028
        %3046 = vmatpush.bf16.msra.mxu0 %v2020
        %3047 = vmatpush.bf16.msra.mxu0 %v2012
        %3048 = vmatpush.bf16.msra.mxu0 %v2004
        %3049 = vmatpush.bf16.msra.mxu0 %v1996
        %3050 = vmatmul.bf16.gmra.mxu0 %v348
        %v3051 = vpop.f32.mrf.mxu0
        %v3052 = vadd.f32 %v3003, %v3051
        %v3053 = vpop.f32.mrf.mxu0
        %v3054 = vadd.f32 %v3005, %v3053
        %3055 = vmatmul.bf16.gmra.mxu0 %v354
        %v3056 = vpop.f32.mrf.mxu0
        %v3057 = vadd.f32 %v3008, %v3056
        %v3058 = vpop.f32.mrf.mxu0
        %v3059 = vadd.f32 %v3010, %v3058
        %3060 = vmatmul.bf16.gmra.mxu0 %v360
        %v3061 = vpop.f32.mrf.mxu0
        %v3062 = vadd.f32 %v3013, %v3061
        %v3063 = vpop.f32.mrf.mxu0
        %v3064 = vadd.f32 %v3015, %v3063
        %3065 = vmatmul.bf16.gmra.mxu0 %v366
        %v3066 = vpop.f32.mrf.mxu0
        %v3067 = vadd.f32 %v3018, %v3066
        %v3068 = vpop.f32.mrf.mxu0
        %v3069 = vadd.f32 %v3020, %v3068
        %3070 = vmatmul.bf16.gmra.mxu0 %v372
        %v3071 = vpop.f32.mrf.mxu0
        %v3072 = vadd.f32 %v3023, %v3071
        %v3073 = vpop.f32.mrf.mxu0
        %v3074 = vadd.f32 %v3025, %v3073
        %3075 = vmatmul.bf16.gmra.mxu0 %v378
        %v3076 = vpop.f32.mrf.mxu0
        %v3077 = vadd.f32 %v3028, %v3076
        %v3078 = vpop.f32.mrf.mxu0
        %v3079 = vadd.f32 %v3030, %v3078
        %3080 = vmatmul.bf16.gmra.mxu0 %v384
        %v3081 = vpop.f32.mrf.mxu0
        %v3082 = vadd.f32 %v3033, %v3081
        %v3083 = vpop.f32.mrf.mxu0
        %v3084 = vadd.f32 %v3035, %v3083
        %3085 = vmatmul.bf16.gmra.mxu0 %v390
        %v3086 = vpop.f32.mrf.mxu0
        %v3087 = vadd.f32 %v3038, %v3086
        %v3088 = vpop.f32.mrf.mxu0
        %v3089 = vadd.f32 %v3040, %v3088
        %3090 = vdwg.mxu0
        %3091 = vmatpush.bf16.msra.mxu0 %v2116
        %3092 = vmatpush.bf16.msra.mxu0 %v2108
        %3093 = vmatpush.bf16.msra.mxu0 %v2100
        %3094 = vmatpush.bf16.msra.mxu0 %v2092
        %3095 = vmatpush.bf16.msra.mxu0 %v2084
        %3096 = vmatpush.bf16.msra.mxu0 %v2076
        %3097 = vmatpush.bf16.msra.mxu0 %v2068
        %3098 = vmatpush.bf16.msra.mxu0 %v2060
        %3099 = vmatmul.bf16.gmra.mxu0 %v349
        %v3100 = vpop.f32.mrf.mxu0
        %v3101 = vadd.f32 %v3052, %v3100
        %v3102 = vpop.f32.mrf.mxu0
        %v3103 = vadd.f32 %v3054, %v3102
        %3104 = vmatmul.bf16.gmra.mxu0 %v355
        %v3105 = vpop.f32.mrf.mxu0
        %v3106 = vadd.f32 %v3057, %v3105
        %v3107 = vpop.f32.mrf.mxu0
        %v3108 = vadd.f32 %v3059, %v3107
        %3109 = vmatmul.bf16.gmra.mxu0 %v361
        %v3110 = vpop.f32.mrf.mxu0
        %v3111 = vadd.f32 %v3062, %v3110
        %v3112 = vpop.f32.mrf.mxu0
        %v3113 = vadd.f32 %v3064, %v3112
        %3114 = vmatmul.bf16.gmra.mxu0 %v367
        %v3115 = vpop.f32.mrf.mxu0
        %v3116 = vadd.f32 %v3067, %v3115
        %v3117 = vpop.f32.mrf.mxu0
        %v3118 = vadd.f32 %v3069, %v3117
        %3119 = vmatmul.bf16.gmra.mxu0 %v373
        %v3120 = vpop.f32.mrf.mxu0
        %v3121 = vadd.f32 %v3072, %v3120
        %v3122 = vpop.f32.mrf.mxu0
        %v3123 = vadd.f32 %v3074, %v3122
        %3124 = vmatmul.bf16.gmra.mxu0 %v379
        %v3125 = vpop.f32.mrf.mxu0
        %v3126 = vadd.f32 %v3077, %v3125
        %v3127 = vpop.f32.mrf.mxu0
        %v3128 = vadd.f32 %v3079, %v3127
        %3129 = vmatmul.bf16.gmra.mxu0 %v385
        %v3130 = vpop.f32.mrf.mxu0
        %v3131 = vadd.f32 %v3082, %v3130
        %v3132 = vpop.f32.mrf.mxu0
        %v3133 = vadd.f32 %v3084, %v3132
        %3134 = vmatmul.bf16.gmra.mxu0 %v391
        %v3135 = vpop.f32.mrf.mxu0
        %v3136 = vadd.f32 %v3087, %v3135
        %v3137 = vpop.f32.mrf.mxu0
        %v3138 = vadd.f32 %v3089, %v3137
        %3139 = vdwg.mxu0
        %3140 = vmatpush.bf16.msra.mxu0 %v2180
        %3141 = vmatpush.bf16.msra.mxu0 %v2172
        %3142 = vmatpush.bf16.msra.mxu0 %v2164
        %3143 = vmatpush.bf16.msra.mxu0 %v2156
        %3144 = vmatpush.bf16.msra.mxu0 %v2148
        %3145 = vmatpush.bf16.msra.mxu0 %v2140
        %3146 = vmatpush.bf16.msra.mxu0 %v2132
        %3147 = vmatpush.bf16.msra.mxu0 %v2124
        %3148 = vmatmul.bf16.gmra.mxu0 %v350
        %v3149 = vpop.f32.mrf.mxu0
        %v3150 = vadd.f32 %v3101, %v3149
        %v3151 = vpop.f32.mrf.mxu0
        %v3152 = vadd.f32 %v3103, %v3151
        %3153 = vmatmul.bf16.gmra.mxu0 %v356
        %v3154 = vpop.f32.mrf.mxu0
        %v3155 = vadd.f32 %v3106, %v3154
        %v3156 = vpop.f32.mrf.mxu0
        %v3157 = vadd.f32 %v3108, %v3156
        %3158 = vmatmul.bf16.gmra.mxu0 %v362
        %v3159 = vpop.f32.mrf.mxu0
        %v3160 = vadd.f32 %v3111, %v3159
        %v3161 = vpop.f32.mrf.mxu0
        %v3162 = vadd.f32 %v3113, %v3161
        %3163 = vmatmul.bf16.gmra.mxu0 %v368
        %v3164 = vpop.f32.mrf.mxu0
        %v3165 = vadd.f32 %v3116, %v3164
        %v3166 = vpop.f32.mrf.mxu0
        %v3167 = vadd.f32 %v3118, %v3166
        %3168 = vmatmul.bf16.gmra.mxu0 %v374
        %v3169 = vpop.f32.mrf.mxu0
        %v3170 = vadd.f32 %v3121, %v3169
        %v3171 = vpop.f32.mrf.mxu0
        %v3172 = vadd.f32 %v3123, %v3171
        %3173 = vmatmul.bf16.gmra.mxu0 %v380
        %v3174 = vpop.f32.mrf.mxu0
        %v3175 = vadd.f32 %v3126, %v3174
        %v3176 = vpop.f32.mrf.mxu0
        %v3177 = vadd.f32 %v3128, %v3176
        %3178 = vmatmul.bf16.gmra.mxu0 %v386
        %v3179 = vpop.f32.mrf.mxu0
        %v3180 = vadd.f32 %v3131, %v3179
        %v3181 = vpop.f32.mrf.mxu0
        %v3182 = vadd.f32 %v3133, %v3181
        %3183 = vmatmul.bf16.gmra.mxu0 %v392
        %v3184 = vpop.f32.mrf.mxu0
        %v3185 = vadd.f32 %v3136, %v3184
        %v3186 = vpop.f32.mrf.mxu0
        %v3187 = vadd.f32 %v3138, %v3186
        %3188 = vdwg.mxu0
        %3189 = vmatpush.bf16.msra.mxu0 %v2244
        %3190 = vmatpush.bf16.msra.mxu0 %v2236
        %3191 = vmatpush.bf16.msra.mxu0 %v2228
        %3192 = vmatpush.bf16.msra.mxu0 %v2220
        %3193 = vmatpush.bf16.msra.mxu0 %v2212
        %3194 = vmatpush.bf16.msra.mxu0 %v2204
        %3195 = vmatpush.bf16.msra.mxu0 %v2196
        %3196 = vmatpush.bf16.msra.mxu0 %v2188
        %3197 = vmatmul.bf16.gmra.mxu0 %v351
        %v3198 = vpop.f32.mrf.mxu0
        %v3199 = vadd.f32 %v3150, %v3198
        %v3200 = vpop.f32.mrf.mxu0
        %v3201 = vadd.f32 %v3152, %v3200
        %3202 = vmatmul.bf16.gmra.mxu0 %v357
        %v3203 = vpop.f32.mrf.mxu0
        %v3204 = vadd.f32 %v3155, %v3203
        %v3205 = vpop.f32.mrf.mxu0
        %v3206 = vadd.f32 %v3157, %v3205
        %3207 = vmatmul.bf16.gmra.mxu0 %v363
        %v3208 = vpop.f32.mrf.mxu0
        %v3209 = vadd.f32 %v3160, %v3208
        %v3210 = vpop.f32.mrf.mxu0
        %v3211 = vadd.f32 %v3162, %v3210
        %3212 = vmatmul.bf16.gmra.mxu0 %v369
        %v3213 = vpop.f32.mrf.mxu0
        %v3214 = vadd.f32 %v3165, %v3213
        %v3215 = vpop.f32.mrf.mxu0
        %v3216 = vadd.f32 %v3167, %v3215
        %3217 = vmatmul.bf16.gmra.mxu0 %v375
        %v3218 = vpop.f32.mrf.mxu0
        %v3219 = vadd.f32 %v3170, %v3218
        %v3220 = vpop.f32.mrf.mxu0
        %v3221 = vadd.f32 %v3172, %v3220
        %3222 = vmatmul.bf16.gmra.mxu0 %v381
        %v3223 = vpop.f32.mrf.mxu0
        %v3224 = vadd.f32 %v3175, %v3223
        %v3225 = vpop.f32.mrf.mxu0
        %v3226 = vadd.f32 %v3177, %v3225
        %3227 = vmatmul.bf16.gmra.mxu0 %v387
        %v3228 = vpop.f32.mrf.mxu0
        %v3229 = vadd.f32 %v3180, %v3228
        %v3230 = vpop.f32.mrf.mxu0
        %v3231 = vadd.f32 %v3182, %v3230
        %3232 = vmatmul.bf16.gmra.mxu0 %v393
        %v3233 = vpop.f32.mrf.mxu0
        %v3234 = vadd.f32 %v3185, %v3233
        %v3235 = vpop.f32.mrf.mxu0
        %v3236 = vadd.f32 %v3187, %v3235
        %3237 = vdwg.mxu0
        %3238 = vmatpush.bf16.msra.mxu0 %v2308
        %3239 = vmatpush.bf16.msra.mxu0 %v2300
        %3240 = vmatpush.bf16.msra.mxu0 %v2292
        %3241 = vmatpush.bf16.msra.mxu0 %v2284
        %3242 = vmatpush.bf16.msra.mxu0 %v2276
        %3243 = vmatpush.bf16.msra.mxu0 %v2268
        %3244 = vmatpush.bf16.msra.mxu0 %v2260
        %3245 = vmatpush.bf16.msra.mxu0 %v2252
        %3246 = vmatmul.bf16.gmra.mxu0 %v352
        %v3247 = vpop.f32.mrf.mxu0
        %v3248 = vadd.f32 %v3199, %v3247
        %v3249 = vpop.f32.mrf.mxu0
        %v3250 = vadd.f32 %v3201, %v3249
        %3251 = vmatmul.bf16.gmra.mxu0 %v358
        %v3252 = vpop.f32.mrf.mxu0
        %v3253 = vadd.f32 %v3204, %v3252
        %v3254 = vpop.f32.mrf.mxu0
        %v3255 = vadd.f32 %v3206, %v3254
        %3256 = vmatmul.bf16.gmra.mxu0 %v364
        %v3257 = vpop.f32.mrf.mxu0
        %v3258 = vadd.f32 %v3209, %v3257
        %v3259 = vpop.f32.mrf.mxu0
        %v3260 = vadd.f32 %v3211, %v3259
        %3261 = vmatmul.bf16.gmra.mxu0 %v370
        %v3262 = vpop.f32.mrf.mxu0
        %v3263 = vadd.f32 %v3214, %v3262
        %v3264 = vpop.f32.mrf.mxu0
        %v3265 = vadd.f32 %v3216, %v3264
        %3266 = vmatmul.bf16.gmra.mxu0 %v376
        %v3267 = vpop.f32.mrf.mxu0
        %v3268 = vadd.f32 %v3219, %v3267
        %v3269 = vpop.f32.mrf.mxu0
        %v3270 = vadd.f32 %v3221, %v3269
        %3271 = vmatmul.bf16.gmra.mxu0 %v382
        %v3272 = vpop.f32.mrf.mxu0
        %v3273 = vadd.f32 %v3224, %v3272
        %v3274 = vpop.f32.mrf.mxu0
        %v3275 = vadd.f32 %v3226, %v3274
        %3276 = vmatmul.bf16.gmra.mxu0 %v388
        %v3277 = vpop.f32.mrf.mxu0
        %v3278 = vadd.f32 %v3229, %v3277
        %v3279 = vpop.f32.mrf.mxu0
        %v3280 = vadd.f32 %v3231, %v3279
        %3281 = vmatmul.bf16.gmra.mxu0 %v394
        %v3282 = vpop.f32.mrf.mxu0
        %v3283 = vadd.f32 %v3234, %v3282
        %v3284 = vpop.f32.mrf.mxu0
        %v3285 = vadd.f32 %v3236, %v3284
        %3286 = vdwg.mxu0
        %3287 = vmatpush.bf16.msra.mxu0 %v1989
        %3288 = vmatpush.bf16.msra.mxu0 %v1981
        %3289 = vmatpush.bf16.msra.mxu0 %v1973
        %3290 = vmatpush.bf16.msra.mxu0 %v1965
        %3291 = vmatpush.bf16.msra.mxu0 %v1957
        %3292 = vmatpush.bf16.msra.mxu0 %v1949
        %3293 = vmatpush.bf16.msra.mxu0 %v1941
        %3294 = vmatpush.bf16.msra.mxu0 %v1933
        %3295 = vmatmul.bf16.gmra.mxu0 %v347
        %v3296 = vpop.f32.mrf.mxu0
        %v3297 = vadd.f32 0.0, %v3296
        %v3298 = vpop.f32.mrf.mxu0
        %v3299 = vadd.f32 0.0, %v3298
        %3300 = vmatmul.bf16.gmra.mxu0 %v353
        %v3301 = vpop.f32.mrf.mxu0
        %v3302 = vadd.f32 0.0, %v3301
        %v3303 = vpop.f32.mrf.mxu0
        %v3304 = vadd.f32 0.0, %v3303
        %3305 = vmatmul.bf16.gmra.mxu0 %v359
        %v3306 = vpop.f32.mrf.mxu0
        %v3307 = vadd.f32 0.0, %v3306
        %v3308 = vpop.f32.mrf.mxu0
        %v3309 = vadd.f32 0.0, %v3308
        %3310 = vmatmul.bf16.gmra.mxu0 %v365
        %v3311 = vpop.f32.mrf.mxu0
        %v3312 = vadd.f32 0.0, %v3311
        %v3313 = vpop.f32.mrf.mxu0
        %v3314 = vadd.f32 0.0, %v3313
        %3315 = vmatmul.bf16.gmra.mxu0 %v371
        %v3316 = vpop.f32.mrf.mxu0
        %v3317 = vadd.f32 0.0, %v3316
        %v3318 = vpop.f32.mrf.mxu0
        %v3319 = vadd.f32 0.0, %v3318
        %3320 = vmatmul.bf16.gmra.mxu0 %v377
        %v3321 = vpop.f32.mrf.mxu0
        %v3322 = vadd.f32 0.0, %v3321
        %v3323 = vpop.f32.mrf.mxu0
        %v3324 = vadd.f32 0.0, %v3323
        %3325 = vmatmul.bf16.gmra.mxu0 %v383
        %v3326 = vpop.f32.mrf.mxu0
        %v3327 = vadd.f32 0.0, %v3326
        %v3328 = vpop.f32.mrf.mxu0
        %v3329 = vadd.f32 0.0, %v3328
        %3330 = vmatmul.bf16.gmra.mxu0 %v389
        %v3331 = vpop.f32.mrf.mxu0
        %v3332 = vadd.f32 0.0, %v3331
        %v3333 = vpop.f32.mrf.mxu0
        %v3334 = vadd.f32 0.0, %v3333
        %3335 = vdwg.mxu0
        %3336 = vmatpush.bf16.msra.mxu0 %v2053
        %3337 = vmatpush.bf16.msra.mxu0 %v2045
        %3338 = vmatpush.bf16.msra.mxu0 %v2037
        %3339 = vmatpush.bf16.msra.mxu0 %v2029
        %3340 = vmatpush.bf16.msra.mxu0 %v2021
        %3341 = vmatpush.bf16.msra.mxu0 %v2013
        %3342 = vmatpush.bf16.msra.mxu0 %v2005
        %3343 = vmatpush.bf16.msra.mxu0 %v1997
        %3344 = vmatmul.bf16.gmra.mxu0 %v348
        %v3345 = vpop.f32.mrf.mxu0
        %v3346 = vadd.f32 %v3297, %v3345
        %v3347 = vpop.f32.mrf.mxu0
        %v3348 = vadd.f32 %v3299, %v3347
        %3349 = vmatmul.bf16.gmra.mxu0 %v354
        %v3350 = vpop.f32.mrf.mxu0
        %v3351 = vadd.f32 %v3302, %v3350
        %v3352 = vpop.f32.mrf.mxu0
        %v3353 = vadd.f32 %v3304, %v3352
        %3354 = vmatmul.bf16.gmra.mxu0 %v360
        %v3355 = vpop.f32.mrf.mxu0
        %v3356 = vadd.f32 %v3307, %v3355
        %v3357 = vpop.f32.mrf.mxu0
        %v3358 = vadd.f32 %v3309, %v3357
        %3359 = vmatmul.bf16.gmra.mxu0 %v366
        %v3360 = vpop.f32.mrf.mxu0
        %v3361 = vadd.f32 %v3312, %v3360
        %v3362 = vpop.f32.mrf.mxu0
        %v3363 = vadd.f32 %v3314, %v3362
        %3364 = vmatmul.bf16.gmra.mxu0 %v372
        %v3365 = vpop.f32.mrf.mxu0
        %v3366 = vadd.f32 %v3317, %v3365
        %v3367 = vpop.f32.mrf.mxu0
        %v3368 = vadd.f32 %v3319, %v3367
        %3369 = vmatmul.bf16.gmra.mxu0 %v378
        %v3370 = vpop.f32.mrf.mxu0
        %v3371 = vadd.f32 %v3322, %v3370
        %v3372 = vpop.f32.mrf.mxu0
        %v3373 = vadd.f32 %v3324, %v3372
        %3374 = vmatmul.bf16.gmra.mxu0 %v384
        %v3375 = vpop.f32.mrf.mxu0
        %v3376 = vadd.f32 %v3327, %v3375
        %v3377 = vpop.f32.mrf.mxu0
        %v3378 = vadd.f32 %v3329, %v3377
        %3379 = vmatmul.bf16.gmra.mxu0 %v390
        %v3380 = vpop.f32.mrf.mxu0
        %v3381 = vadd.f32 %v3332, %v3380
        %v3382 = vpop.f32.mrf.mxu0
        %v3383 = vadd.f32 %v3334, %v3382
        %3384 = vdwg.mxu0
        %3385 = vmatpush.bf16.msra.mxu0 %v2117
        %3386 = vmatpush.bf16.msra.mxu0 %v2109
        %3387 = vmatpush.bf16.msra.mxu0 %v2101
        %3388 = vmatpush.bf16.msra.mxu0 %v2093
        %3389 = vmatpush.bf16.msra.mxu0 %v2085
        %3390 = vmatpush.bf16.msra.mxu0 %v2077
        %3391 = vmatpush.bf16.msra.mxu0 %v2069
        %3392 = vmatpush.bf16.msra.mxu0 %v2061
        %3393 = vmatmul.bf16.gmra.mxu0 %v349
        %v3394 = vpop.f32.mrf.mxu0
        %v3395 = vadd.f32 %v3346, %v3394
        %v3396 = vpop.f32.mrf.mxu0
        %v3397 = vadd.f32 %v3348, %v3396
        %3398 = vmatmul.bf16.gmra.mxu0 %v355
        %v3399 = vpop.f32.mrf.mxu0
        %v3400 = vadd.f32 %v3351, %v3399
        %v3401 = vpop.f32.mrf.mxu0
        %v3402 = vadd.f32 %v3353, %v3401
        %3403 = vmatmul.bf16.gmra.mxu0 %v361
        %v3404 = vpop.f32.mrf.mxu0
        %v3405 = vadd.f32 %v3356, %v3404
        %v3406 = vpop.f32.mrf.mxu0
        %v3407 = vadd.f32 %v3358, %v3406
        %3408 = vmatmul.bf16.gmra.mxu0 %v367
        %v3409 = vpop.f32.mrf.mxu0
        %v3410 = vadd.f32 %v3361, %v3409
        %v3411 = vpop.f32.mrf.mxu0
        %v3412 = vadd.f32 %v3363, %v3411
        %3413 = vmatmul.bf16.gmra.mxu0 %v373
        %v3414 = vpop.f32.mrf.mxu0
        %v3415 = vadd.f32 %v3366, %v3414
        %v3416 = vpop.f32.mrf.mxu0
        %v3417 = vadd.f32 %v3368, %v3416
        %3418 = vmatmul.bf16.gmra.mxu0 %v379
        %v3419 = vpop.f32.mrf.mxu0
        %v3420 = vadd.f32 %v3371, %v3419
        %v3421 = vpop.f32.mrf.mxu0
        %v3422 = vadd.f32 %v3373, %v3421
        %3423 = vmatmul.bf16.gmra.mxu0 %v385
        %v3424 = vpop.f32.mrf.mxu0
        %v3425 = vadd.f32 %v3376, %v3424
        %v3426 = vpop.f32.mrf.mxu0
        %v3427 = vadd.f32 %v3378, %v3426
        %3428 = vmatmul.bf16.gmra.mxu0 %v391
        %v3429 = vpop.f32.mrf.mxu0
        %v3430 = vadd.f32 %v3381, %v3429
        %v3431 = vpop.f32.mrf.mxu0
        %v3432 = vadd.f32 %v3383, %v3431
        %3433 = vdwg.mxu0
        %3434 = vmatpush.bf16.msra.mxu0 %v2181
        %3435 = vmatpush.bf16.msra.mxu0 %v2173
        %3436 = vmatpush.bf16.msra.mxu0 %v2165
        %3437 = vmatpush.bf16.msra.mxu0 %v2157
        %3438 = vmatpush.bf16.msra.mxu0 %v2149
        %3439 = vmatpush.bf16.msra.mxu0 %v2141
        %3440 = vmatpush.bf16.msra.mxu0 %v2133
        %3441 = vmatpush.bf16.msra.mxu0 %v2125
        %3442 = vmatmul.bf16.gmra.mxu0 %v350
        %v3443 = vpop.f32.mrf.mxu0
        %v3444 = vadd.f32 %v3395, %v3443
        %v3445 = vpop.f32.mrf.mxu0
        %v3446 = vadd.f32 %v3397, %v3445
        %3447 = vmatmul.bf16.gmra.mxu0 %v356
        %v3448 = vpop.f32.mrf.mxu0
        %v3449 = vadd.f32 %v3400, %v3448
        %v3450 = vpop.f32.mrf.mxu0
        %v3451 = vadd.f32 %v3402, %v3450
        %3452 = vmatmul.bf16.gmra.mxu0 %v362
        %v3453 = vpop.f32.mrf.mxu0
        %v3454 = vadd.f32 %v3405, %v3453
        %v3455 = vpop.f32.mrf.mxu0
        %v3456 = vadd.f32 %v3407, %v3455
        %3457 = vmatmul.bf16.gmra.mxu0 %v368
        %v3458 = vpop.f32.mrf.mxu0
        %v3459 = vadd.f32 %v3410, %v3458
        %v3460 = vpop.f32.mrf.mxu0
        %v3461 = vadd.f32 %v3412, %v3460
        %3462 = vmatmul.bf16.gmra.mxu0 %v374
        %v3463 = vpop.f32.mrf.mxu0
        %v3464 = vadd.f32 %v3415, %v3463
        %v3465 = vpop.f32.mrf.mxu0
        %v3466 = vadd.f32 %v3417, %v3465
        %3467 = vmatmul.bf16.gmra.mxu0 %v380
        %v3468 = vpop.f32.mrf.mxu0
        %v3469 = vadd.f32 %v3420, %v3468
        %v3470 = vpop.f32.mrf.mxu0
        %v3471 = vadd.f32 %v3422, %v3470
        %3472 = vmatmul.bf16.gmra.mxu0 %v386
        %v3473 = vpop.f32.mrf.mxu0
        %v3474 = vadd.f32 %v3425, %v3473
        %v3475 = vpop.f32.mrf.mxu0
        %v3476 = vadd.f32 %v3427, %v3475
        %3477 = vmatmul.bf16.gmra.mxu0 %v392
        %v3478 = vpop.f32.mrf.mxu0
        %v3479 = vadd.f32 %v3430, %v3478
        %v3480 = vpop.f32.mrf.mxu0
        %v3481 = vadd.f32 %v3432, %v3480
        %3482 = vdwg.mxu0
        %3483 = vmatpush.bf16.msra.mxu0 %v2245
        %3484 = vmatpush.bf16.msra.mxu0 %v2237
        %3485 = vmatpush.bf16.msra.mxu0 %v2229
        %3486 = vmatpush.bf16.msra.mxu0 %v2221
        %3487 = vmatpush.bf16.msra.mxu0 %v2213
        %3488 = vmatpush.bf16.msra.mxu0 %v2205
        %3489 = vmatpush.bf16.msra.mxu0 %v2197
        %3490 = vmatpush.bf16.msra.mxu0 %v2189
        %3491 = vmatmul.bf16.gmra.mxu0 %v351
        %v3492 = vpop.f32.mrf.mxu0
        %v3493 = vadd.f32 %v3444, %v3492
        %v3494 = vpop.f32.mrf.mxu0
        %v3495 = vadd.f32 %v3446, %v3494
        %3496 = vmatmul.bf16.gmra.mxu0 %v357
        %v3497 = vpop.f32.mrf.mxu0
        %v3498 = vadd.f32 %v3449, %v3497
        %v3499 = vpop.f32.mrf.mxu0
        %v3500 = vadd.f32 %v3451, %v3499
        %3501 = vmatmul.bf16.gmra.mxu0 %v363
        %v3502 = vpop.f32.mrf.mxu0
        %v3503 = vadd.f32 %v3454, %v3502
        %v3504 = vpop.f32.mrf.mxu0
        %v3505 = vadd.f32 %v3456, %v3504
        %3506 = vmatmul.bf16.gmra.mxu0 %v369
        %v3507 = vpop.f32.mrf.mxu0
        %v3508 = vadd.f32 %v3459, %v3507
        %v3509 = vpop.f32.mrf.mxu0
        %v3510 = vadd.f32 %v3461, %v3509
        %3511 = vmatmul.bf16.gmra.mxu0 %v375
        %v3512 = vpop.f32.mrf.mxu0
        %v3513 = vadd.f32 %v3464, %v3512
        %v3514 = vpop.f32.mrf.mxu0
        %v3515 = vadd.f32 %v3466, %v3514
        %3516 = vmatmul.bf16.gmra.mxu0 %v381
        %v3517 = vpop.f32.mrf.mxu0
        %v3518 = vadd.f32 %v3469, %v3517
        %v3519 = vpop.f32.mrf.mxu0
        %v3520 = vadd.f32 %v3471, %v3519
        %3521 = vmatmul.bf16.gmra.mxu0 %v387
        %v3522 = vpop.f32.mrf.mxu0
        %v3523 = vadd.f32 %v3474, %v3522
        %v3524 = vpop.f32.mrf.mxu0
        %v3525 = vadd.f32 %v3476, %v3524
        %3526 = vmatmul.bf16.gmra.mxu0 %v393
        %v3527 = vpop.f32.mrf.mxu0
        %v3528 = vadd.f32 %v3479, %v3527
        %v3529 = vpop.f32.mrf.mxu0
        %v3530 = vadd.f32 %v3481, %v3529
        %3531 = vdwg.mxu0
        %3532 = vmatpush.bf16.msra.mxu0 %v2309
        %3533 = vmatpush.bf16.msra.mxu0 %v2301
        %3534 = vmatpush.bf16.msra.mxu0 %v2293
        %3535 = vmatpush.bf16.msra.mxu0 %v2285
        %3536 = vmatpush.bf16.msra.mxu0 %v2277
        %3537 = vmatpush.bf16.msra.mxu0 %v2269
        %3538 = vmatpush.bf16.msra.mxu0 %v2261
        %3539 = vmatpush.bf16.msra.mxu0 %v2253
        %3540 = vmatmul.bf16.gmra.mxu0 %v352
        %v3541 = vpop.f32.mrf.mxu0
        %v3542 = vadd.f32 %v3493, %v3541
        %v3543 = vpop.f32.mrf.mxu0
        %v3544 = vadd.f32 %v3495, %v3543
        %3545 = vmatmul.bf16.gmra.mxu0 %v358
        %v3546 = vpop.f32.mrf.mxu0
        %v3547 = vadd.f32 %v3498, %v3546
        %v3548 = vpop.f32.mrf.mxu0
        %v3549 = vadd.f32 %v3500, %v3548
        %3550 = vmatmul.bf16.gmra.mxu0 %v364
        %v3551 = vpop.f32.mrf.mxu0
        %v3552 = vadd.f32 %v3503, %v3551
        %v3553 = vpop.f32.mrf.mxu0
        %v3554 = vadd.f32 %v3505, %v3553
        %3555 = vmatmul.bf16.gmra.mxu0 %v370
        %v3556 = vpop.f32.mrf.mxu0
        %v3557 = vadd.f32 %v3508, %v3556
        %v3558 = vpop.f32.mrf.mxu0
        %v3559 = vadd.f32 %v3510, %v3558
        %3560 = vmatmul.bf16.gmra.mxu0 %v376
        %v3561 = vpop.f32.mrf.mxu0
        %v3562 = vadd.f32 %v3513, %v3561
        %v3563 = vpop.f32.mrf.mxu0
        %v3564 = vadd.f32 %v3515, %v3563
        %3565 = vmatmul.bf16.gmra.mxu0 %v382
        %v3566 = vpop.f32.mrf.mxu0
        %v3567 = vadd.f32 %v3518, %v3566
        %v3568 = vpop.f32.mrf.mxu0
        %v3569 = vadd.f32 %v3520, %v3568
        %3570 = vmatmul.bf16.gmra.mxu0 %v388
        %v3571 = vpop.f32.mrf.mxu0
        %v3572 = vadd.f32 %v3523, %v3571
        %v3573 = vpop.f32.mrf.mxu0
        %v3574 = vadd.f32 %v3525, %v3573
        %3575 = vmatmul.bf16.gmra.mxu0 %v394
        %v3576 = vpop.f32.mrf.mxu0
        %v3577 = vadd.f32 %v3528, %v3576
        %v3578 = vpop.f32.mrf.mxu0
        %v3579 = vadd.f32 %v3530, %v3578
        %3580 = vdwg.mxu0
        %3581 = vmatpush.bf16.msra.mxu0 %v1990
        %3582 = vmatpush.bf16.msra.mxu0 %v1982
        %3583 = vmatpush.bf16.msra.mxu0 %v1974
        %3584 = vmatpush.bf16.msra.mxu0 %v1966
        %3585 = vmatpush.bf16.msra.mxu0 %v1958
        %3586 = vmatpush.bf16.msra.mxu0 %v1950
        %3587 = vmatpush.bf16.msra.mxu0 %v1942
        %3588 = vmatpush.bf16.msra.mxu0 %v1934
        %3589 = vmatmul.bf16.gmra.mxu0 %v347
        %v3590 = vpop.f32.mrf.mxu0
        %v3591 = vadd.f32 0.0, %v3590
        %v3592 = vpop.f32.mrf.mxu0
        %v3593 = vadd.f32 0.0, %v3592
        %3594 = vmatmul.bf16.gmra.mxu0 %v353
        %v3595 = vpop.f32.mrf.mxu0
        %v3596 = vadd.f32 0.0, %v3595
        %v3597 = vpop.f32.mrf.mxu0
        %v3598 = vadd.f32 0.0, %v3597
        %3599 = vmatmul.bf16.gmra.mxu0 %v359
        %v3600 = vpop.f32.mrf.mxu0
        %v3601 = vadd.f32 0.0, %v3600
        %v3602 = vpop.f32.mrf.mxu0
        %v3603 = vadd.f32 0.0, %v3602
        %3604 = vmatmul.bf16.gmra.mxu0 %v365
        %v3605 = vpop.f32.mrf.mxu0
        %v3606 = vadd.f32 0.0, %v3605
        %v3607 = vpop.f32.mrf.mxu0
        %v3608 = vadd.f32 0.0, %v3607
        %3609 = vmatmul.bf16.gmra.mxu0 %v371
        %v3610 = vpop.f32.mrf.mxu0
        %v3611 = vadd.f32 0.0, %v3610
        %v3612 = vpop.f32.mrf.mxu0
        %v3613 = vadd.f32 0.0, %v3612
        %3614 = vmatmul.bf16.gmra.mxu0 %v377
        %v3615 = vpop.f32.mrf.mxu0
        %v3616 = vadd.f32 0.0, %v3615
        %v3617 = vpop.f32.mrf.mxu0
        %v3618 = vadd.f32 0.0, %v3617
        %3619 = vmatmul.bf16.gmra.mxu0 %v383
        %v3620 = vpop.f32.mrf.mxu0
        %v3621 = vadd.f32 0.0, %v3620
        %v3622 = vpop.f32.mrf.mxu0
        %v3623 = vadd.f32 0.0, %v3622
        %3624 = vmatmul.bf16.gmra.mxu0 %v389
        %v3625 = vpop.f32.mrf.mxu0
        %v3626 = vadd.f32 0.0, %v3625
        %v3627 = vpop.f32.mrf.mxu0
        %v3628 = vadd.f32 0.0, %v3627
        %3629 = vdwg.mxu0
        %3630 = vmatpush.bf16.msra.mxu0 %v2054
        %3631 = vmatpush.bf16.msra.mxu0 %v2046
        %3632 = vmatpush.bf16.msra.mxu0 %v2038
        %3633 = vmatpush.bf16.msra.mxu0 %v2030
        %3634 = vmatpush.bf16.msra.mxu0 %v2022
        %3635 = vmatpush.bf16.msra.mxu0 %v2014
        %3636 = vmatpush.bf16.msra.mxu0 %v2006
        %3637 = vmatpush.bf16.msra.mxu0 %v1998
        %3638 = vmatmul.bf16.gmra.mxu0 %v348
        %v3639 = vpop.f32.mrf.mxu0
        %v3640 = vadd.f32 %v3591, %v3639
        %v3641 = vpop.f32.mrf.mxu0
        %v3642 = vadd.f32 %v3593, %v3641
        %3643 = vmatmul.bf16.gmra.mxu0 %v354
        %v3644 = vpop.f32.mrf.mxu0
        %v3645 = vadd.f32 %v3596, %v3644
        %v3646 = vpop.f32.mrf.mxu0
        %v3647 = vadd.f32 %v3598, %v3646
        %3648 = vmatmul.bf16.gmra.mxu0 %v360
        %v3649 = vpop.f32.mrf.mxu0
        %v3650 = vadd.f32 %v3601, %v3649
        %v3651 = vpop.f32.mrf.mxu0
        %v3652 = vadd.f32 %v3603, %v3651
        %3653 = vmatmul.bf16.gmra.mxu0 %v366
        %v3654 = vpop.f32.mrf.mxu0
        %v3655 = vadd.f32 %v3606, %v3654
        %v3656 = vpop.f32.mrf.mxu0
        %v3657 = vadd.f32 %v3608, %v3656
        %3658 = vmatmul.bf16.gmra.mxu0 %v372
        %v3659 = vpop.f32.mrf.mxu0
        %v3660 = vadd.f32 %v3611, %v3659
        %v3661 = vpop.f32.mrf.mxu0
        %v3662 = vadd.f32 %v3613, %v3661
        %3663 = vmatmul.bf16.gmra.mxu0 %v378
        %v3664 = vpop.f32.mrf.mxu0
        %v3665 = vadd.f32 %v3616, %v3664
        %v3666 = vpop.f32.mrf.mxu0
        %v3667 = vadd.f32 %v3618, %v3666
        %3668 = vmatmul.bf16.gmra.mxu0 %v384
        %v3669 = vpop.f32.mrf.mxu0
        %v3670 = vadd.f32 %v3621, %v3669
        %v3671 = vpop.f32.mrf.mxu0
        %v3672 = vadd.f32 %v3623, %v3671
        %3673 = vmatmul.bf16.gmra.mxu0 %v390
        %v3674 = vpop.f32.mrf.mxu0
        %v3675 = vadd.f32 %v3626, %v3674
        %v3676 = vpop.f32.mrf.mxu0
        %v3677 = vadd.f32 %v3628, %v3676
        %3678 = vdwg.mxu0
        %3679 = vmatpush.bf16.msra.mxu0 %v2118
        %3680 = vmatpush.bf16.msra.mxu0 %v2110
        %3681 = vmatpush.bf16.msra.mxu0 %v2102
        %3682 = vmatpush.bf16.msra.mxu0 %v2094
        %3683 = vmatpush.bf16.msra.mxu0 %v2086
        %3684 = vmatpush.bf16.msra.mxu0 %v2078
        %3685 = vmatpush.bf16.msra.mxu0 %v2070
        %3686 = vmatpush.bf16.msra.mxu0 %v2062
        %3687 = vmatmul.bf16.gmra.mxu0 %v349
        %v3688 = vpop.f32.mrf.mxu0
        %v3689 = vadd.f32 %v3640, %v3688
        %v3690 = vpop.f32.mrf.mxu0
        %v3691 = vadd.f32 %v3642, %v3690
        %3692 = vmatmul.bf16.gmra.mxu0 %v355
        %v3693 = vpop.f32.mrf.mxu0
        %v3694 = vadd.f32 %v3645, %v3693
        %v3695 = vpop.f32.mrf.mxu0
        %v3696 = vadd.f32 %v3647, %v3695
        %3697 = vmatmul.bf16.gmra.mxu0 %v361
        %v3698 = vpop.f32.mrf.mxu0
        %v3699 = vadd.f32 %v3650, %v3698
        %v3700 = vpop.f32.mrf.mxu0
        %v3701 = vadd.f32 %v3652, %v3700
        %3702 = vmatmul.bf16.gmra.mxu0 %v367
        %v3703 = vpop.f32.mrf.mxu0
        %v3704 = vadd.f32 %v3655, %v3703
        %v3705 = vpop.f32.mrf.mxu0
        %v3706 = vadd.f32 %v3657, %v3705
        %3707 = vmatmul.bf16.gmra.mxu0 %v373
        %v3708 = vpop.f32.mrf.mxu0
        %v3709 = vadd.f32 %v3660, %v3708
        %v3710 = vpop.f32.mrf.mxu0
        %v3711 = vadd.f32 %v3662, %v3710
        %3712 = vmatmul.bf16.gmra.mxu0 %v379
        %v3713 = vpop.f32.mrf.mxu0
        %v3714 = vadd.f32 %v3665, %v3713
        %v3715 = vpop.f32.mrf.mxu0
        %v3716 = vadd.f32 %v3667, %v3715
        %3717 = vmatmul.bf16.gmra.mxu0 %v385
        %v3718 = vpop.f32.mrf.mxu0
        %v3719 = vadd.f32 %v3670, %v3718
        %v3720 = vpop.f32.mrf.mxu0
        %v3721 = vadd.f32 %v3672, %v3720
        %3722 = vmatmul.bf16.gmra.mxu0 %v391
        %v3723 = vpop.f32.mrf.mxu0
        %v3724 = vadd.f32 %v3675, %v3723
        %v3725 = vpop.f32.mrf.mxu0
        %v3726 = vadd.f32 %v3677, %v3725
        %3727 = vdwg.mxu0
        %3728 = vmatpush.bf16.msra.mxu0 %v2182
        %3729 = vmatpush.bf16.msra.mxu0 %v2174
        %3730 = vmatpush.bf16.msra.mxu0 %v2166
        %3731 = vmatpush.bf16.msra.mxu0 %v2158
        %3732 = vmatpush.bf16.msra.mxu0 %v2150
        %3733 = vmatpush.bf16.msra.mxu0 %v2142
        %3734 = vmatpush.bf16.msra.mxu0 %v2134
        %3735 = vmatpush.bf16.msra.mxu0 %v2126
        %3736 = vmatmul.bf16.gmra.mxu0 %v350
        %v3737 = vpop.f32.mrf.mxu0
        %v3738 = vadd.f32 %v3689, %v3737
        %v3739 = vpop.f32.mrf.mxu0
        %v3740 = vadd.f32 %v3691, %v3739
        %3741 = vmatmul.bf16.gmra.mxu0 %v356
        %v3742 = vpop.f32.mrf.mxu0
        %v3743 = vadd.f32 %v3694, %v3742
        %v3744 = vpop.f32.mrf.mxu0
        %v3745 = vadd.f32 %v3696, %v3744
        %3746 = vmatmul.bf16.gmra.mxu0 %v362
        %v3747 = vpop.f32.mrf.mxu0
        %v3748 = vadd.f32 %v3699, %v3747
        %v3749 = vpop.f32.mrf.mxu0
        %v3750 = vadd.f32 %v3701, %v3749
        %3751 = vmatmul.bf16.gmra.mxu0 %v368
        %v3752 = vpop.f32.mrf.mxu0
        %v3753 = vadd.f32 %v3704, %v3752
        %v3754 = vpop.f32.mrf.mxu0
        %v3755 = vadd.f32 %v3706, %v3754
        %3756 = vmatmul.bf16.gmra.mxu0 %v374
        %v3757 = vpop.f32.mrf.mxu0
        %v3758 = vadd.f32 %v3709, %v3757
        %v3759 = vpop.f32.mrf.mxu0
        %v3760 = vadd.f32 %v3711, %v3759
        %3761 = vmatmul.bf16.gmra.mxu0 %v380
        %v3762 = vpop.f32.mrf.mxu0
        %v3763 = vadd.f32 %v3714, %v3762
        %v3764 = vpop.f32.mrf.mxu0
        %v3765 = vadd.f32 %v3716, %v3764
        %3766 = vmatmul.bf16.gmra.mxu0 %v386
        %v3767 = vpop.f32.mrf.mxu0
        %v3768 = vadd.f32 %v3719, %v3767
        %v3769 = vpop.f32.mrf.mxu0
        %v3770 = vadd.f32 %v3721, %v3769
        %3771 = vmatmul.bf16.gmra.mxu0 %v392
        %v3772 = vpop.f32.mrf.mxu0
        %v3773 = vadd.f32 %v3724, %v3772
        %v3774 = vpop.f32.mrf.mxu0
        %v3775 = vadd.f32 %v3726, %v3774
        %3776 = vdwg.mxu0
        %3777 = vmatpush.bf16.msra.mxu0 %v2246
        %3778 = vmatpush.bf16.msra.mxu0 %v2238
        %3779 = vmatpush.bf16.msra.mxu0 %v2230
        %3780 = vmatpush.bf16.msra.mxu0 %v2222
        %3781 = vmatpush.bf16.msra.mxu0 %v2214
        %3782 = vmatpush.bf16.msra.mxu0 %v2206
        %3783 = vmatpush.bf16.msra.mxu0 %v2198
        %3784 = vmatpush.bf16.msra.mxu0 %v2190
        %3785 = vmatmul.bf16.gmra.mxu0 %v351
        %v3786 = vpop.f32.mrf.mxu0
        %v3787 = vadd.f32 %v3738, %v3786
        %v3788 = vpop.f32.mrf.mxu0
        %v3789 = vadd.f32 %v3740, %v3788
        %3790 = vmatmul.bf16.gmra.mxu0 %v357
        %v3791 = vpop.f32.mrf.mxu0
        %v3792 = vadd.f32 %v3743, %v3791
        %v3793 = vpop.f32.mrf.mxu0
        %v3794 = vadd.f32 %v3745, %v3793
        %3795 = vmatmul.bf16.gmra.mxu0 %v363
        %v3796 = vpop.f32.mrf.mxu0
        %v3797 = vadd.f32 %v3748, %v3796
        %v3798 = vpop.f32.mrf.mxu0
        %v3799 = vadd.f32 %v3750, %v3798
        %3800 = vmatmul.bf16.gmra.mxu0 %v369
        %v3801 = vpop.f32.mrf.mxu0
        %v3802 = vadd.f32 %v3753, %v3801
        %v3803 = vpop.f32.mrf.mxu0
        %v3804 = vadd.f32 %v3755, %v3803
        %3805 = vmatmul.bf16.gmra.mxu0 %v375
        %v3806 = vpop.f32.mrf.mxu0
        %v3807 = vadd.f32 %v3758, %v3806
        %v3808 = vpop.f32.mrf.mxu0
        %v3809 = vadd.f32 %v3760, %v3808
        %3810 = vmatmul.bf16.gmra.mxu0 %v381
        %v3811 = vpop.f32.mrf.mxu0
        %v3812 = vadd.f32 %v3763, %v3811
        %v3813 = vpop.f32.mrf.mxu0
        %v3814 = vadd.f32 %v3765, %v3813
        %3815 = vmatmul.bf16.gmra.mxu0 %v387
        %v3816 = vpop.f32.mrf.mxu0
        %v3817 = vadd.f32 %v3768, %v3816
        %v3818 = vpop.f32.mrf.mxu0
        %v3819 = vadd.f32 %v3770, %v3818
        %3820 = vmatmul.bf16.gmra.mxu0 %v393
        %v3821 = vpop.f32.mrf.mxu0
        %v3822 = vadd.f32 %v3773, %v3821
        %v3823 = vpop.f32.mrf.mxu0
        %v3824 = vadd.f32 %v3775, %v3823
        %3825 = vdwg.mxu0
        %3826 = vmatpush.bf16.msra.mxu0 %v2310
        %3827 = vmatpush.bf16.msra.mxu0 %v2302
        %3828 = vmatpush.bf16.msra.mxu0 %v2294
        %3829 = vmatpush.bf16.msra.mxu0 %v2286
        %3830 = vmatpush.bf16.msra.mxu0 %v2278
        %3831 = vmatpush.bf16.msra.mxu0 %v2270
        %3832 = vmatpush.bf16.msra.mxu0 %v2262
        %3833 = vmatpush.bf16.msra.mxu0 %v2254
        %3834 = vmatmul.bf16.gmra.mxu0 %v352
        %v3835 = vpop.f32.mrf.mxu0
        %v3836 = vadd.f32 %v3787, %v3835
        %v3837 = vpop.f32.mrf.mxu0
        %v3838 = vadd.f32 %v3789, %v3837
        %3839 = vmatmul.bf16.gmra.mxu0 %v358
        %v3840 = vpop.f32.mrf.mxu0
        %v3841 = vadd.f32 %v3792, %v3840
        %v3842 = vpop.f32.mrf.mxu0
        %v3843 = vadd.f32 %v3794, %v3842
        %3844 = vmatmul.bf16.gmra.mxu0 %v364
        %v3845 = vpop.f32.mrf.mxu0
        %v3846 = vadd.f32 %v3797, %v3845
        %v3847 = vpop.f32.mrf.mxu0
        %v3848 = vadd.f32 %v3799, %v3847
        %3849 = vmatmul.bf16.gmra.mxu0 %v370
        %v3850 = vpop.f32.mrf.mxu0
        %v3851 = vadd.f32 %v3802, %v3850
        %v3852 = vpop.f32.mrf.mxu0
        %v3853 = vadd.f32 %v3804, %v3852
        %3854 = vmatmul.bf16.gmra.mxu0 %v376
        %v3855 = vpop.f32.mrf.mxu0
        %v3856 = vadd.f32 %v3807, %v3855
        %v3857 = vpop.f32.mrf.mxu0
        %v3858 = vadd.f32 %v3809, %v3857
        %3859 = vmatmul.bf16.gmra.mxu0 %v382
        %v3860 = vpop.f32.mrf.mxu0
        %v3861 = vadd.f32 %v3812, %v3860
        %v3862 = vpop.f32.mrf.mxu0
        %v3863 = vadd.f32 %v3814, %v3862
        %3864 = vmatmul.bf16.gmra.mxu0 %v388
        %v3865 = vpop.f32.mrf.mxu0
        %v3866 = vadd.f32 %v3817, %v3865
        %v3867 = vpop.f32.mrf.mxu0
        %v3868 = vadd.f32 %v3819, %v3867
        %3869 = vmatmul.bf16.gmra.mxu0 %v394
        %v3870 = vpop.f32.mrf.mxu0
        %v3871 = vadd.f32 %v3822, %v3870
        %v3872 = vpop.f32.mrf.mxu0
        %v3873 = vadd.f32 %v3824, %v3872
        %3874 = vdwg.mxu0
        %3875 = vmatpush.bf16.msra.mxu0 %v1991
        %3876 = vmatpush.bf16.msra.mxu0 %v1983
        %3877 = vmatpush.bf16.msra.mxu0 %v1975
        %3878 = vmatpush.bf16.msra.mxu0 %v1967
        %3879 = vmatpush.bf16.msra.mxu0 %v1959
        %3880 = vmatpush.bf16.msra.mxu0 %v1951
        %3881 = vmatpush.bf16.msra.mxu0 %v1943
        %3882 = vmatpush.bf16.msra.mxu0 %v1935
        %3883 = vmatmul.bf16.gmra.mxu0 %v347
        %v3884 = vpop.f32.mrf.mxu0
        %v3885 = vadd.f32 0.0, %v3884
        %v3886 = vpop.f32.mrf.mxu0
        %v3887 = vadd.f32 0.0, %v3886
        %3888 = vmatmul.bf16.gmra.mxu0 %v353
        %v3889 = vpop.f32.mrf.mxu0
        %v3890 = vadd.f32 0.0, %v3889
        %v3891 = vpop.f32.mrf.mxu0
        %v3892 = vadd.f32 0.0, %v3891
        %3893 = vmatmul.bf16.gmra.mxu0 %v359
        %v3894 = vpop.f32.mrf.mxu0
        %v3895 = vadd.f32 0.0, %v3894
        %v3896 = vpop.f32.mrf.mxu0
        %v3897 = vadd.f32 0.0, %v3896
        %3898 = vmatmul.bf16.gmra.mxu0 %v365
        %v3899 = vpop.f32.mrf.mxu0
        %v3900 = vadd.f32 0.0, %v3899
        %v3901 = vpop.f32.mrf.mxu0
        %v3902 = vadd.f32 0.0, %v3901
        %3903 = vmatmul.bf16.gmra.mxu0 %v371
        %v3904 = vpop.f32.mrf.mxu0
        %v3905 = vadd.f32 0.0, %v3904
        %v3906 = vpop.f32.mrf.mxu0
        %v3907 = vadd.f32 0.0, %v3906
        %3908 = vmatmul.bf16.gmra.mxu0 %v377
        %v3909 = vpop.f32.mrf.mxu0
        %v3910 = vadd.f32 0.0, %v3909
        %v3911 = vpop.f32.mrf.mxu0
        %v3912 = vadd.f32 0.0, %v3911
        %3913 = vmatmul.bf16.gmra.mxu0 %v383
        %v3914 = vpop.f32.mrf.mxu0
        %v3915 = vadd.f32 0.0, %v3914
        %v3916 = vpop.f32.mrf.mxu0
        %v3917 = vadd.f32 0.0, %v3916
        %3918 = vmatmul.bf16.gmra.mxu0 %v389
        %v3919 = vpop.f32.mrf.mxu0
        %v3920 = vadd.f32 0.0, %v3919
        %v3921 = vpop.f32.mrf.mxu0
        %v3922 = vadd.f32 0.0, %v3921
        %3923 = vdwg.mxu0
        %3924 = vmatpush.bf16.msra.mxu0 %v2055
        %3925 = vmatpush.bf16.msra.mxu0 %v2047
        %3926 = vmatpush.bf16.msra.mxu0 %v2039
        %3927 = vmatpush.bf16.msra.mxu0 %v2031
        %3928 = vmatpush.bf16.msra.mxu0 %v2023
        %3929 = vmatpush.bf16.msra.mxu0 %v2015
        %3930 = vmatpush.bf16.msra.mxu0 %v2007
        %3931 = vmatpush.bf16.msra.mxu0 %v1999
        %3932 = vmatmul.bf16.gmra.mxu0 %v348
        %v3933 = vpop.f32.mrf.mxu0
        %v3934 = vadd.f32 %v3885, %v3933
        %v3935 = vpop.f32.mrf.mxu0
        %v3936 = vadd.f32 %v3887, %v3935
        %3937 = vmatmul.bf16.gmra.mxu0 %v354
        %v3938 = vpop.f32.mrf.mxu0
        %v3939 = vadd.f32 %v3890, %v3938
        %v3940 = vpop.f32.mrf.mxu0
        %v3941 = vadd.f32 %v3892, %v3940
        %3942 = vmatmul.bf16.gmra.mxu0 %v360
        %v3943 = vpop.f32.mrf.mxu0
        %v3944 = vadd.f32 %v3895, %v3943
        %v3945 = vpop.f32.mrf.mxu0
        %v3946 = vadd.f32 %v3897, %v3945
        %3947 = vmatmul.bf16.gmra.mxu0 %v366
        %v3948 = vpop.f32.mrf.mxu0
        %v3949 = vadd.f32 %v3900, %v3948
        %v3950 = vpop.f32.mrf.mxu0
        %v3951 = vadd.f32 %v3902, %v3950
        %3952 = vmatmul.bf16.gmra.mxu0 %v372
        %v3953 = vpop.f32.mrf.mxu0
        %v3954 = vadd.f32 %v3905, %v3953
        %v3955 = vpop.f32.mrf.mxu0
        %v3956 = vadd.f32 %v3907, %v3955
        %3957 = vmatmul.bf16.gmra.mxu0 %v378
        %v3958 = vpop.f32.mrf.mxu0
        %v3959 = vadd.f32 %v3910, %v3958
        %v3960 = vpop.f32.mrf.mxu0
        %v3961 = vadd.f32 %v3912, %v3960
        %3962 = vmatmul.bf16.gmra.mxu0 %v384
        %v3963 = vpop.f32.mrf.mxu0
        %v3964 = vadd.f32 %v3915, %v3963
        %v3965 = vpop.f32.mrf.mxu0
        %v3966 = vadd.f32 %v3917, %v3965
        %3967 = vmatmul.bf16.gmra.mxu0 %v390
        %v3968 = vpop.f32.mrf.mxu0
        %v3969 = vadd.f32 %v3920, %v3968
        %v3970 = vpop.f32.mrf.mxu0
        %v3971 = vadd.f32 %v3922, %v3970
        %3972 = vdwg.mxu0
        %3973 = vmatpush.bf16.msra.mxu0 %v2119
        %3974 = vmatpush.bf16.msra.mxu0 %v2111
        %3975 = vmatpush.bf16.msra.mxu0 %v2103
        %3976 = vmatpush.bf16.msra.mxu0 %v2095
        %3977 = vmatpush.bf16.msra.mxu0 %v2087
        %3978 = vmatpush.bf16.msra.mxu0 %v2079
        %3979 = vmatpush.bf16.msra.mxu0 %v2071
        %3980 = vmatpush.bf16.msra.mxu0 %v2063
        %3981 = vmatmul.bf16.gmra.mxu0 %v349
        %v3982 = vpop.f32.mrf.mxu0
        %v3983 = vadd.f32 %v3934, %v3982
        %v3984 = vpop.f32.mrf.mxu0
        %v3985 = vadd.f32 %v3936, %v3984
        %3986 = vmatmul.bf16.gmra.mxu0 %v355
        %v3987 = vpop.f32.mrf.mxu0
        %v3988 = vadd.f32 %v3939, %v3987
        %v3989 = vpop.f32.mrf.mxu0
        %v3990 = vadd.f32 %v3941, %v3989
        %3991 = vmatmul.bf16.gmra.mxu0 %v361
        %v3992 = vpop.f32.mrf.mxu0
        %v3993 = vadd.f32 %v3944, %v3992
        %v3994 = vpop.f32.mrf.mxu0
        %v3995 = vadd.f32 %v3946, %v3994
        %3996 = vmatmul.bf16.gmra.mxu0 %v367
        %v3997 = vpop.f32.mrf.mxu0
        %v3998 = vadd.f32 %v3949, %v3997
        %v3999 = vpop.f32.mrf.mxu0
        %v4000 = vadd.f32 %v3951, %v3999
        %4001 = vmatmul.bf16.gmra.mxu0 %v373
        %v4002 = vpop.f32.mrf.mxu0
        %v4003 = vadd.f32 %v3954, %v4002
        %v4004 = vpop.f32.mrf.mxu0
        %v4005 = vadd.f32 %v3956, %v4004
        %4006 = vmatmul.bf16.gmra.mxu0 %v379
        %v4007 = vpop.f32.mrf.mxu0
        %v4008 = vadd.f32 %v3959, %v4007
        %v4009 = vpop.f32.mrf.mxu0
        %v4010 = vadd.f32 %v3961, %v4009
        %4011 = vmatmul.bf16.gmra.mxu0 %v385
        %v4012 = vpop.f32.mrf.mxu0
        %v4013 = vadd.f32 %v3964, %v4012
        %v4014 = vpop.f32.mrf.mxu0
        %v4015 = vadd.f32 %v3966, %v4014
        %4016 = vmatmul.bf16.gmra.mxu0 %v391
        %v4017 = vpop.f32.mrf.mxu0
        %v4018 = vadd.f32 %v3969, %v4017
        %v4019 = vpop.f32.mrf.mxu0
        %v4020 = vadd.f32 %v3971, %v4019
        %4021 = vdwg.mxu0
        %4022 = vmatpush.bf16.msra.mxu0 %v2183
        %4023 = vmatpush.bf16.msra.mxu0 %v2175
        %4024 = vmatpush.bf16.msra.mxu0 %v2167
        %4025 = vmatpush.bf16.msra.mxu0 %v2159
        %4026 = vmatpush.bf16.msra.mxu0 %v2151
        %4027 = vmatpush.bf16.msra.mxu0 %v2143
        %4028 = vmatpush.bf16.msra.mxu0 %v2135
        %4029 = vmatpush.bf16.msra.mxu0 %v2127
        %4030 = vmatmul.bf16.gmra.mxu0 %v350
        %v4031 = vpop.f32.mrf.mxu0
        %v4032 = vadd.f32 %v3983, %v4031
        %v4033 = vpop.f32.mrf.mxu0
        %v4034 = vadd.f32 %v3985, %v4033
        %4035 = vmatmul.bf16.gmra.mxu0 %v356
        %v4036 = vpop.f32.mrf.mxu0
        %v4037 = vadd.f32 %v3988, %v4036
        %v4038 = vpop.f32.mrf.mxu0
        %v4039 = vadd.f32 %v3990, %v4038
        %4040 = vmatmul.bf16.gmra.mxu0 %v362
        %v4041 = vpop.f32.mrf.mxu0
        %v4042 = vadd.f32 %v3993, %v4041
        %v4043 = vpop.f32.mrf.mxu0
        %v4044 = vadd.f32 %v3995, %v4043
        %4045 = vmatmul.bf16.gmra.mxu0 %v368
        %v4046 = vpop.f32.mrf.mxu0
        %v4047 = vadd.f32 %v3998, %v4046
        %v4048 = vpop.f32.mrf.mxu0
        %v4049 = vadd.f32 %v4000, %v4048
        %4050 = vmatmul.bf16.gmra.mxu0 %v374
        %v4051 = vpop.f32.mrf.mxu0
        %v4052 = vadd.f32 %v4003, %v4051
        %v4053 = vpop.f32.mrf.mxu0
        %v4054 = vadd.f32 %v4005, %v4053
        %4055 = vmatmul.bf16.gmra.mxu0 %v380
        %v4056 = vpop.f32.mrf.mxu0
        %v4057 = vadd.f32 %v4008, %v4056
        %v4058 = vpop.f32.mrf.mxu0
        %v4059 = vadd.f32 %v4010, %v4058
        %4060 = vmatmul.bf16.gmra.mxu0 %v386
        %v4061 = vpop.f32.mrf.mxu0
        %v4062 = vadd.f32 %v4013, %v4061
        %v4063 = vpop.f32.mrf.mxu0
        %v4064 = vadd.f32 %v4015, %v4063
        %4065 = vmatmul.bf16.gmra.mxu0 %v392
        %v4066 = vpop.f32.mrf.mxu0
        %v4067 = vadd.f32 %v4018, %v4066
        %v4068 = vpop.f32.mrf.mxu0
        %v4069 = vadd.f32 %v4020, %v4068
        %4070 = vdwg.mxu0
        %4071 = vmatpush.bf16.msra.mxu0 %v2247
        %4072 = vmatpush.bf16.msra.mxu0 %v2239
        %4073 = vmatpush.bf16.msra.mxu0 %v2231
        %4074 = vmatpush.bf16.msra.mxu0 %v2223
        %4075 = vmatpush.bf16.msra.mxu0 %v2215
        %4076 = vmatpush.bf16.msra.mxu0 %v2207
        %4077 = vmatpush.bf16.msra.mxu0 %v2199
        %4078 = vmatpush.bf16.msra.mxu0 %v2191
        %4079 = vmatmul.bf16.gmra.mxu0 %v351
        %v4080 = vpop.f32.mrf.mxu0
        %v4081 = vadd.f32 %v4032, %v4080
        %v4082 = vpop.f32.mrf.mxu0
        %v4083 = vadd.f32 %v4034, %v4082
        %4084 = vmatmul.bf16.gmra.mxu0 %v357
        %v4085 = vpop.f32.mrf.mxu0
        %v4086 = vadd.f32 %v4037, %v4085
        %v4087 = vpop.f32.mrf.mxu0
        %v4088 = vadd.f32 %v4039, %v4087
        %4089 = vmatmul.bf16.gmra.mxu0 %v363
        %v4090 = vpop.f32.mrf.mxu0
        %v4091 = vadd.f32 %v4042, %v4090
        %v4092 = vpop.f32.mrf.mxu0
        %v4093 = vadd.f32 %v4044, %v4092
        %4094 = vmatmul.bf16.gmra.mxu0 %v369
        %v4095 = vpop.f32.mrf.mxu0
        %v4096 = vadd.f32 %v4047, %v4095
        %v4097 = vpop.f32.mrf.mxu0
        %v4098 = vadd.f32 %v4049, %v4097
        %4099 = vmatmul.bf16.gmra.mxu0 %v375
        %v4100 = vpop.f32.mrf.mxu0
        %v4101 = vadd.f32 %v4052, %v4100
        %v4102 = vpop.f32.mrf.mxu0
        %v4103 = vadd.f32 %v4054, %v4102
        %4104 = vmatmul.bf16.gmra.mxu0 %v381
        %v4105 = vpop.f32.mrf.mxu0
        %v4106 = vadd.f32 %v4057, %v4105
        %v4107 = vpop.f32.mrf.mxu0
        %v4108 = vadd.f32 %v4059, %v4107
        %4109 = vmatmul.bf16.gmra.mxu0 %v387
        %v4110 = vpop.f32.mrf.mxu0
        %v4111 = vadd.f32 %v4062, %v4110
        %v4112 = vpop.f32.mrf.mxu0
        %v4113 = vadd.f32 %v4064, %v4112
        %4114 = vmatmul.bf16.gmra.mxu0 %v393
        %v4115 = vpop.f32.mrf.mxu0
        %v4116 = vadd.f32 %v4067, %v4115
        %v4117 = vpop.f32.mrf.mxu0
        %v4118 = vadd.f32 %v4069, %v4117
        %4119 = vdwg.mxu0
        %4120 = vmatpush.bf16.msra.mxu0 %v2311
        %4121 = vmatpush.bf16.msra.mxu0 %v2303
        %4122 = vmatpush.bf16.msra.mxu0 %v2295
        %4123 = vmatpush.bf16.msra.mxu0 %v2287
        %4124 = vmatpush.bf16.msra.mxu0 %v2279
        %4125 = vmatpush.bf16.msra.mxu0 %v2271
        %4126 = vmatpush.bf16.msra.mxu0 %v2263
        %4127 = vmatpush.bf16.msra.mxu0 %v2255
        %4128 = vmatmul.bf16.gmra.mxu0 %v352
        %v4129 = vpop.f32.mrf.mxu0
        %v4130 = vadd.f32 %v4081, %v4129
        %v4131 = vpop.f32.mrf.mxu0
        %v4132 = vadd.f32 %v4083, %v4131
        %4133 = vmatmul.bf16.gmra.mxu0 %v358
        %v4134 = vpop.f32.mrf.mxu0
        %v4135 = vadd.f32 %v4086, %v4134
        %v4136 = vpop.f32.mrf.mxu0
        %v4137 = vadd.f32 %v4088, %v4136
        %4138 = vmatmul.bf16.gmra.mxu0 %v364
        %v4139 = vpop.f32.mrf.mxu0
        %v4140 = vadd.f32 %v4091, %v4139
        %v4141 = vpop.f32.mrf.mxu0
        %v4142 = vadd.f32 %v4093, %v4141
        %4143 = vmatmul.bf16.gmra.mxu0 %v370
        %v4144 = vpop.f32.mrf.mxu0
        %v4145 = vadd.f32 %v4096, %v4144
        %v4146 = vpop.f32.mrf.mxu0
        %v4147 = vadd.f32 %v4098, %v4146
        %4148 = vmatmul.bf16.gmra.mxu0 %v376
        %v4149 = vpop.f32.mrf.mxu0
        %v4150 = vadd.f32 %v4101, %v4149
        %v4151 = vpop.f32.mrf.mxu0
        %v4152 = vadd.f32 %v4103, %v4151
        %4153 = vmatmul.bf16.gmra.mxu0 %v382
        %v4154 = vpop.f32.mrf.mxu0
        %v4155 = vadd.f32 %v4106, %v4154
        %v4156 = vpop.f32.mrf.mxu0
        %v4157 = vadd.f32 %v4108, %v4156
        %4158 = vmatmul.bf16.gmra.mxu0 %v388
        %v4159 = vpop.f32.mrf.mxu0
        %v4160 = vadd.f32 %v4111, %v4159
        %v4161 = vpop.f32.mrf.mxu0
        %v4162 = vadd.f32 %v4113, %v4161
        %4163 = vmatmul.bf16.gmra.mxu0 %v394
        %v4164 = vpop.f32.mrf.mxu0
        %v4165 = vadd.f32 %v4116, %v4164
        %v4166 = vpop.f32.mrf.mxu0
        %v4167 = vadd.f32 %v4118, %v4166
        %4168 = vdwg.mxu0
        %4169 = vmatpush.bf16.msra.mxu0 %v1992
        %4170 = vmatpush.bf16.msra.mxu0 %v1984
        %4171 = vmatpush.bf16.msra.mxu0 %v1976
        %4172 = vmatpush.bf16.msra.mxu0 %v1968
        %4173 = vmatpush.bf16.msra.mxu0 %v1960
        %4174 = vmatpush.bf16.msra.mxu0 %v1952
        %4175 = vmatpush.bf16.msra.mxu0 %v1944
        %4176 = vmatpush.bf16.msra.mxu0 %v1936
        %4177 = vmatmul.bf16.gmra.mxu0 %v347
        %v4178 = vpop.f32.mrf.mxu0
        %v4179 = vadd.f32 0.0, %v4178
        %v4180 = vpop.f32.mrf.mxu0
        %v4181 = vadd.f32 0.0, %v4180
        %4182 = vmatmul.bf16.gmra.mxu0 %v353
        %v4183 = vpop.f32.mrf.mxu0
        %v4184 = vadd.f32 0.0, %v4183
        %v4185 = vpop.f32.mrf.mxu0
        %v4186 = vadd.f32 0.0, %v4185
        %4187 = vmatmul.bf16.gmra.mxu0 %v359
        %v4188 = vpop.f32.mrf.mxu0
        %v4189 = vadd.f32 0.0, %v4188
        %v4190 = vpop.f32.mrf.mxu0
        %v4191 = vadd.f32 0.0, %v4190
        %4192 = vmatmul.bf16.gmra.mxu0 %v365
        %v4193 = vpop.f32.mrf.mxu0
        %v4194 = vadd.f32 0.0, %v4193
        %v4195 = vpop.f32.mrf.mxu0
        %v4196 = vadd.f32 0.0, %v4195
        %4197 = vmatmul.bf16.gmra.mxu0 %v371
        %v4198 = vpop.f32.mrf.mxu0
        %v4199 = vadd.f32 0.0, %v4198
        %v4200 = vpop.f32.mrf.mxu0
        %v4201 = vadd.f32 0.0, %v4200
        %4202 = vmatmul.bf16.gmra.mxu0 %v377
        %v4203 = vpop.f32.mrf.mxu0
        %v4204 = vadd.f32 0.0, %v4203
        %v4205 = vpop.f32.mrf.mxu0
        %v4206 = vadd.f32 0.0, %v4205
        %4207 = vmatmul.bf16.gmra.mxu0 %v383
        %v4208 = vpop.f32.mrf.mxu0
        %v4209 = vadd.f32 0.0, %v4208
        %v4210 = vpop.f32.mrf.mxu0
        %v4211 = vadd.f32 0.0, %v4210
        %4212 = vmatmul.bf16.gmra.mxu0 %v389
        %v4213 = vpop.f32.mrf.mxu0
        %v4214 = vadd.f32 0.0, %v4213
        %v4215 = vpop.f32.mrf.mxu0
        %v4216 = vadd.f32 0.0, %v4215
        %4217 = vdwg.mxu0
        %4218 = vmatpush.bf16.msra.mxu0 %v2056
        %4219 = vmatpush.bf16.msra.mxu0 %v2048
        %4220 = vmatpush.bf16.msra.mxu0 %v2040
        %4221 = vmatpush.bf16.msra.mxu0 %v2032
        %4222 = vmatpush.bf16.msra.mxu0 %v2024
        %4223 = vmatpush.bf16.msra.mxu0 %v2016
        %4224 = vmatpush.bf16.msra.mxu0 %v2008
        %4225 = vmatpush.bf16.msra.mxu0 %v2000
        %4226 = vmatmul.bf16.gmra.mxu0 %v348
        %v4227 = vpop.f32.mrf.mxu0
        %v4228 = vadd.f32 %v4179, %v4227
        %v4229 = vpop.f32.mrf.mxu0
        %v4230 = vadd.f32 %v4181, %v4229
        %4231 = vmatmul.bf16.gmra.mxu0 %v354
        %v4232 = vpop.f32.mrf.mxu0
        %v4233 = vadd.f32 %v4184, %v4232
        %v4234 = vpop.f32.mrf.mxu0
        %v4235 = vadd.f32 %v4186, %v4234
        %4236 = vmatmul.bf16.gmra.mxu0 %v360
        %v4237 = vpop.f32.mrf.mxu0
        %v4238 = vadd.f32 %v4189, %v4237
        %v4239 = vpop.f32.mrf.mxu0
        %v4240 = vadd.f32 %v4191, %v4239
        %4241 = vmatmul.bf16.gmra.mxu0 %v366
        %v4242 = vpop.f32.mrf.mxu0
        %v4243 = vadd.f32 %v4194, %v4242
        %v4244 = vpop.f32.mrf.mxu0
        %v4245 = vadd.f32 %v4196, %v4244
        %4246 = vmatmul.bf16.gmra.mxu0 %v372
        %v4247 = vpop.f32.mrf.mxu0
        %v4248 = vadd.f32 %v4199, %v4247
        %v4249 = vpop.f32.mrf.mxu0
        %v4250 = vadd.f32 %v4201, %v4249
        %4251 = vmatmul.bf16.gmra.mxu0 %v378
        %v4252 = vpop.f32.mrf.mxu0
        %v4253 = vadd.f32 %v4204, %v4252
        %v4254 = vpop.f32.mrf.mxu0
        %v4255 = vadd.f32 %v4206, %v4254
        %4256 = vmatmul.bf16.gmra.mxu0 %v384
        %v4257 = vpop.f32.mrf.mxu0
        %v4258 = vadd.f32 %v4209, %v4257
        %v4259 = vpop.f32.mrf.mxu0
        %v4260 = vadd.f32 %v4211, %v4259
        %4261 = vmatmul.bf16.gmra.mxu0 %v390
        %v4262 = vpop.f32.mrf.mxu0
        %v4263 = vadd.f32 %v4214, %v4262
        %v4264 = vpop.f32.mrf.mxu0
        %v4265 = vadd.f32 %v4216, %v4264
        %4266 = vdwg.mxu0
        %4267 = vmatpush.bf16.msra.mxu0 %v2120
        %4268 = vmatpush.bf16.msra.mxu0 %v2112
        %4269 = vmatpush.bf16.msra.mxu0 %v2104
        %4270 = vmatpush.bf16.msra.mxu0 %v2096
        %4271 = vmatpush.bf16.msra.mxu0 %v2088
        %4272 = vmatpush.bf16.msra.mxu0 %v2080
        %4273 = vmatpush.bf16.msra.mxu0 %v2072
        %4274 = vmatpush.bf16.msra.mxu0 %v2064
        %4275 = vmatmul.bf16.gmra.mxu0 %v349
        %v4276 = vpop.f32.mrf.mxu0
        %v4277 = vadd.f32 %v4228, %v4276
        %v4278 = vpop.f32.mrf.mxu0
        %v4279 = vadd.f32 %v4230, %v4278
        %4280 = vmatmul.bf16.gmra.mxu0 %v355
        %v4281 = vpop.f32.mrf.mxu0
        %v4282 = vadd.f32 %v4233, %v4281
        %v4283 = vpop.f32.mrf.mxu0
        %v4284 = vadd.f32 %v4235, %v4283
        %4285 = vmatmul.bf16.gmra.mxu0 %v361
        %v4286 = vpop.f32.mrf.mxu0
        %v4287 = vadd.f32 %v4238, %v4286
        %v4288 = vpop.f32.mrf.mxu0
        %v4289 = vadd.f32 %v4240, %v4288
        %4290 = vmatmul.bf16.gmra.mxu0 %v367
        %v4291 = vpop.f32.mrf.mxu0
        %v4292 = vadd.f32 %v4243, %v4291
        %v4293 = vpop.f32.mrf.mxu0
        %v4294 = vadd.f32 %v4245, %v4293
        %4295 = vmatmul.bf16.gmra.mxu0 %v373
        %v4296 = vpop.f32.mrf.mxu0
        %v4297 = vadd.f32 %v4248, %v4296
        %v4298 = vpop.f32.mrf.mxu0
        %v4299 = vadd.f32 %v4250, %v4298
        %4300 = vmatmul.bf16.gmra.mxu0 %v379
        %v4301 = vpop.f32.mrf.mxu0
        %v4302 = vadd.f32 %v4253, %v4301
        %v4303 = vpop.f32.mrf.mxu0
        %v4304 = vadd.f32 %v4255, %v4303
        %4305 = vmatmul.bf16.gmra.mxu0 %v385
        %v4306 = vpop.f32.mrf.mxu0
        %v4307 = vadd.f32 %v4258, %v4306
        %v4308 = vpop.f32.mrf.mxu0
        %v4309 = vadd.f32 %v4260, %v4308
        %4310 = vmatmul.bf16.gmra.mxu0 %v391
        %v4311 = vpop.f32.mrf.mxu0
        %v4312 = vadd.f32 %v4263, %v4311
        %v4313 = vpop.f32.mrf.mxu0
        %v4314 = vadd.f32 %v4265, %v4313
        %4315 = vdwg.mxu0
        %4316 = vmatpush.bf16.msra.mxu0 %v2184
        %4317 = vmatpush.bf16.msra.mxu0 %v2176
        %4318 = vmatpush.bf16.msra.mxu0 %v2168
        %4319 = vmatpush.bf16.msra.mxu0 %v2160
        %4320 = vmatpush.bf16.msra.mxu0 %v2152
        %4321 = vmatpush.bf16.msra.mxu0 %v2144
        %4322 = vmatpush.bf16.msra.mxu0 %v2136
        %4323 = vmatpush.bf16.msra.mxu0 %v2128
        %4324 = vmatmul.bf16.gmra.mxu0 %v350
        %v4325 = vpop.f32.mrf.mxu0
        %v4326 = vadd.f32 %v4277, %v4325
        %v4327 = vpop.f32.mrf.mxu0
        %v4328 = vadd.f32 %v4279, %v4327
        %4329 = vmatmul.bf16.gmra.mxu0 %v356
        %v4330 = vpop.f32.mrf.mxu0
        %v4331 = vadd.f32 %v4282, %v4330
        %v4332 = vpop.f32.mrf.mxu0
        %v4333 = vadd.f32 %v4284, %v4332
        %4334 = vmatmul.bf16.gmra.mxu0 %v362
        %v4335 = vpop.f32.mrf.mxu0
        %v4336 = vadd.f32 %v4287, %v4335
        %v4337 = vpop.f32.mrf.mxu0
        %v4338 = vadd.f32 %v4289, %v4337
        %4339 = vmatmul.bf16.gmra.mxu0 %v368
        %v4340 = vpop.f32.mrf.mxu0
        %v4341 = vadd.f32 %v4292, %v4340
        %v4342 = vpop.f32.mrf.mxu0
        %v4343 = vadd.f32 %v4294, %v4342
        %4344 = vmatmul.bf16.gmra.mxu0 %v374
        %v4345 = vpop.f32.mrf.mxu0
        %v4346 = vadd.f32 %v4297, %v4345
        %v4347 = vpop.f32.mrf.mxu0
        %v4348 = vadd.f32 %v4299, %v4347
        %4349 = vmatmul.bf16.gmra.mxu0 %v380
        %v4350 = vpop.f32.mrf.mxu0
        %v4351 = vadd.f32 %v4302, %v4350
        %v4352 = vpop.f32.mrf.mxu0
        %v4353 = vadd.f32 %v4304, %v4352
        %4354 = vmatmul.bf16.gmra.mxu0 %v386
        %v4355 = vpop.f32.mrf.mxu0
        %v4356 = vadd.f32 %v4307, %v4355
        %v4357 = vpop.f32.mrf.mxu0
        %v4358 = vadd.f32 %v4309, %v4357
        %4359 = vmatmul.bf16.gmra.mxu0 %v392
        %v4360 = vpop.f32.mrf.mxu0
        %v4361 = vadd.f32 %v4312, %v4360
        %v4362 = vpop.f32.mrf.mxu0
        %v4363 = vadd.f32 %v4314, %v4362
        %4364 = vdwg.mxu0
        %4365 = vmatpush.bf16.msra.mxu0 %v2248
        %4366 = vmatpush.bf16.msra.mxu0 %v2240
        %4367 = vmatpush.bf16.msra.mxu0 %v2232
        %4368 = vmatpush.bf16.msra.mxu0 %v2224
        %4369 = vmatpush.bf16.msra.mxu0 %v2216
        %4370 = vmatpush.bf16.msra.mxu0 %v2208
        %4371 = vmatpush.bf16.msra.mxu0 %v2200
        %4372 = vmatpush.bf16.msra.mxu0 %v2192
        %4373 = vmatmul.bf16.gmra.mxu0 %v351
        %v4374 = vpop.f32.mrf.mxu0
        %v4375 = vadd.f32 %v4326, %v4374
        %v4376 = vpop.f32.mrf.mxu0
        %v4377 = vadd.f32 %v4328, %v4376
        %4378 = vmatmul.bf16.gmra.mxu0 %v357
        %v4379 = vpop.f32.mrf.mxu0
        %v4380 = vadd.f32 %v4331, %v4379
        %v4381 = vpop.f32.mrf.mxu0
        %v4382 = vadd.f32 %v4333, %v4381
        %4383 = vmatmul.bf16.gmra.mxu0 %v363
        %v4384 = vpop.f32.mrf.mxu0
        %v4385 = vadd.f32 %v4336, %v4384
        %v4386 = vpop.f32.mrf.mxu0
        %v4387 = vadd.f32 %v4338, %v4386
        %4388 = vmatmul.bf16.gmra.mxu0 %v369
        %v4389 = vpop.f32.mrf.mxu0
        %v4390 = vadd.f32 %v4341, %v4389
        %v4391 = vpop.f32.mrf.mxu0
        %v4392 = vadd.f32 %v4343, %v4391
        %4393 = vmatmul.bf16.gmra.mxu0 %v375
        %v4394 = vpop.f32.mrf.mxu0
        %v4395 = vadd.f32 %v4346, %v4394
        %v4396 = vpop.f32.mrf.mxu0
        %v4397 = vadd.f32 %v4348, %v4396
        %4398 = vmatmul.bf16.gmra.mxu0 %v381
        %v4399 = vpop.f32.mrf.mxu0
        %v4400 = vadd.f32 %v4351, %v4399
        %v4401 = vpop.f32.mrf.mxu0
        %v4402 = vadd.f32 %v4353, %v4401
        %4403 = vmatmul.bf16.gmra.mxu0 %v387
        %v4404 = vpop.f32.mrf.mxu0
        %v4405 = vadd.f32 %v4356, %v4404
        %v4406 = vpop.f32.mrf.mxu0
        %v4407 = vadd.f32 %v4358, %v4406
        %4408 = vmatmul.bf16.gmra.mxu0 %v393
        %v4409 = vpop.f32.mrf.mxu0
        %v4410 = vadd.f32 %v4361, %v4409
        %v4411 = vpop.f32.mrf.mxu0
        %v4412 = vadd.f32 %v4363, %v4411
        %4413 = vdwg.mxu0
        %4414 = vmatpush.bf16.msra.mxu0 %v2312
        %4415 = vmatpush.bf16.msra.mxu0 %v2304
        %4416 = vmatpush.bf16.msra.mxu0 %v2296
        %4417 = vmatpush.bf16.msra.mxu0 %v2288
        %4418 = vmatpush.bf16.msra.mxu0 %v2280
        %4419 = vmatpush.bf16.msra.mxu0 %v2272
        %4420 = vmatpush.bf16.msra.mxu0 %v2264
        %4421 = vmatpush.bf16.msra.mxu0 %v2256
        %4422 = vmatmul.bf16.gmra.mxu0 %v352
        %v4423 = vpop.f32.mrf.mxu0
        %v4424 = vadd.f32 %v4375, %v4423
        %v4425 = vpop.f32.mrf.mxu0
        %v4426 = vadd.f32 %v4377, %v4425
        %4427 = vmatmul.bf16.gmra.mxu0 %v358
        %v4428 = vpop.f32.mrf.mxu0
        %v4429 = vadd.f32 %v4380, %v4428
        %v4430 = vpop.f32.mrf.mxu0
        %v4431 = vadd.f32 %v4382, %v4430
        %4432 = vmatmul.bf16.gmra.mxu0 %v364
        %v4433 = vpop.f32.mrf.mxu0
        %v4434 = vadd.f32 %v4385, %v4433
        %v4435 = vpop.f32.mrf.mxu0
        %v4436 = vadd.f32 %v4387, %v4435
        %4437 = vmatmul.bf16.gmra.mxu0 %v370
        %v4438 = vpop.f32.mrf.mxu0
        %v4439 = vadd.f32 %v4390, %v4438
        %v4440 = vpop.f32.mrf.mxu0
        %v4441 = vadd.f32 %v4392, %v4440
        %4442 = vmatmul.bf16.gmra.mxu0 %v376
        %v4443 = vpop.f32.mrf.mxu0
        %v4444 = vadd.f32 %v4395, %v4443
        %v4445 = vpop.f32.mrf.mxu0
        %v4446 = vadd.f32 %v4397, %v4445
        %4447 = vmatmul.bf16.gmra.mxu0 %v382
        %v4448 = vpop.f32.mrf.mxu0
        %v4449 = vadd.f32 %v4400, %v4448
        %v4450 = vpop.f32.mrf.mxu0
        %v4451 = vadd.f32 %v4402, %v4450
        %4452 = vmatmul.bf16.gmra.mxu0 %v388
        %v4453 = vpop.f32.mrf.mxu0
        %v4454 = vadd.f32 %v4405, %v4453
        %v4455 = vpop.f32.mrf.mxu0
        %v4456 = vadd.f32 %v4407, %v4455
        %4457 = vmatmul.bf16.gmra.mxu0 %v394
        %v4458 = vpop.f32.mrf.mxu0
        %v4459 = vadd.f32 %v4410, %v4458
        %v4460 = vpop.f32.mrf.mxu0
        %v4461 = vadd.f32 %v4412, %v4460
        %4462 = vdwg.mxu0
        %4463 = vmatpush.bf16.msra.mxu0 %v1993
        %4464 = vmatpush.bf16.msra.mxu0 %v1985
        %4465 = vmatpush.bf16.msra.mxu0 %v1977
        %4466 = vmatpush.bf16.msra.mxu0 %v1969
        %4467 = vmatpush.bf16.msra.mxu0 %v1961
        %4468 = vmatpush.bf16.msra.mxu0 %v1953
        %4469 = vmatpush.bf16.msra.mxu0 %v1945
        %4470 = vmatpush.bf16.msra.mxu0 %v1937
        %4471 = vmatmul.bf16.gmra.mxu0 %v347
        %v4472 = vpop.f32.mrf.mxu0
        %v4473 = vadd.f32 0.0, %v4472
        %v4474 = vpop.f32.mrf.mxu0
        %v4475 = vadd.f32 0.0, %v4474
        %4476 = vmatmul.bf16.gmra.mxu0 %v353
        %v4477 = vpop.f32.mrf.mxu0
        %v4478 = vadd.f32 0.0, %v4477
        %v4479 = vpop.f32.mrf.mxu0
        %v4480 = vadd.f32 0.0, %v4479
        %4481 = vmatmul.bf16.gmra.mxu0 %v359
        %v4482 = vpop.f32.mrf.mxu0
        %v4483 = vadd.f32 0.0, %v4482
        %v4484 = vpop.f32.mrf.mxu0
        %v4485 = vadd.f32 0.0, %v4484
        %4486 = vmatmul.bf16.gmra.mxu0 %v365
        %v4487 = vpop.f32.mrf.mxu0
        %v4488 = vadd.f32 0.0, %v4487
        %v4489 = vpop.f32.mrf.mxu0
        %v4490 = vadd.f32 0.0, %v4489
        %4491 = vmatmul.bf16.gmra.mxu0 %v371
        %v4492 = vpop.f32.mrf.mxu0
        %v4493 = vadd.f32 0.0, %v4492
        %v4494 = vpop.f32.mrf.mxu0
        %v4495 = vadd.f32 0.0, %v4494
        %4496 = vmatmul.bf16.gmra.mxu0 %v377
        %v4497 = vpop.f32.mrf.mxu0
        %v4498 = vadd.f32 0.0, %v4497
        %v4499 = vpop.f32.mrf.mxu0
        %v4500 = vadd.f32 0.0, %v4499
        %4501 = vmatmul.bf16.gmra.mxu0 %v383
        %v4502 = vpop.f32.mrf.mxu0
        %v4503 = vadd.f32 0.0, %v4502
        %v4504 = vpop.f32.mrf.mxu0
        %v4505 = vadd.f32 0.0, %v4504
        %4506 = vmatmul.bf16.gmra.mxu0 %v389
        %v4507 = vpop.f32.mrf.mxu0
        %v4508 = vadd.f32 0.0, %v4507
        %v4509 = vpop.f32.mrf.mxu0
        %v4510 = vadd.f32 0.0, %v4509
        %4511 = vdwg.mxu0
        %4512 = vmatpush.bf16.msra.mxu0 %v2057
        %4513 = vmatpush.bf16.msra.mxu0 %v2049
        %4514 = vmatpush.bf16.msra.mxu0 %v2041
        %4515 = vmatpush.bf16.msra.mxu0 %v2033
        %4516 = vmatpush.bf16.msra.mxu0 %v2025
        %4517 = vmatpush.bf16.msra.mxu0 %v2017
        %4518 = vmatpush.bf16.msra.mxu0 %v2009
        %4519 = vmatpush.bf16.msra.mxu0 %v2001
        %4520 = vmatmul.bf16.gmra.mxu0 %v348
        %v4521 = vpop.f32.mrf.mxu0
        %v4522 = vadd.f32 %v4473, %v4521
        %v4523 = vpop.f32.mrf.mxu0
        %v4524 = vadd.f32 %v4475, %v4523
        %4525 = vmatmul.bf16.gmra.mxu0 %v354
        %v4526 = vpop.f32.mrf.mxu0
        %v4527 = vadd.f32 %v4478, %v4526
        %v4528 = vpop.f32.mrf.mxu0
        %v4529 = vadd.f32 %v4480, %v4528
        %4530 = vmatmul.bf16.gmra.mxu0 %v360
        %v4531 = vpop.f32.mrf.mxu0
        %v4532 = vadd.f32 %v4483, %v4531
        %v4533 = vpop.f32.mrf.mxu0
        %v4534 = vadd.f32 %v4485, %v4533
        %4535 = vmatmul.bf16.gmra.mxu0 %v366
        %v4536 = vpop.f32.mrf.mxu0
        %v4537 = vadd.f32 %v4488, %v4536
        %v4538 = vpop.f32.mrf.mxu0
        %v4539 = vadd.f32 %v4490, %v4538
        %4540 = vmatmul.bf16.gmra.mxu0 %v372
        %v4541 = vpop.f32.mrf.mxu0
        %v4542 = vadd.f32 %v4493, %v4541
        %v4543 = vpop.f32.mrf.mxu0
        %v4544 = vadd.f32 %v4495, %v4543
        %4545 = vmatmul.bf16.gmra.mxu0 %v378
        %v4546 = vpop.f32.mrf.mxu0
        %v4547 = vadd.f32 %v4498, %v4546
        %v4548 = vpop.f32.mrf.mxu0
        %v4549 = vadd.f32 %v4500, %v4548
        %4550 = vmatmul.bf16.gmra.mxu0 %v384
        %v4551 = vpop.f32.mrf.mxu0
        %v4552 = vadd.f32 %v4503, %v4551
        %v4553 = vpop.f32.mrf.mxu0
        %v4554 = vadd.f32 %v4505, %v4553
        %4555 = vmatmul.bf16.gmra.mxu0 %v390
        %v4556 = vpop.f32.mrf.mxu0
        %v4557 = vadd.f32 %v4508, %v4556
        %v4558 = vpop.f32.mrf.mxu0
        %v4559 = vadd.f32 %v4510, %v4558
        %4560 = vdwg.mxu0
        %4561 = vmatpush.bf16.msra.mxu0 %v2121
        %4562 = vmatpush.bf16.msra.mxu0 %v2113
        %4563 = vmatpush.bf16.msra.mxu0 %v2105
        %4564 = vmatpush.bf16.msra.mxu0 %v2097
        %4565 = vmatpush.bf16.msra.mxu0 %v2089
        %4566 = vmatpush.bf16.msra.mxu0 %v2081
        %4567 = vmatpush.bf16.msra.mxu0 %v2073
        %4568 = vmatpush.bf16.msra.mxu0 %v2065
        %4569 = vmatmul.bf16.gmra.mxu0 %v349
        %v4570 = vpop.f32.mrf.mxu0
        %v4571 = vadd.f32 %v4522, %v4570
        %v4572 = vpop.f32.mrf.mxu0
        %v4573 = vadd.f32 %v4524, %v4572
        %4574 = vmatmul.bf16.gmra.mxu0 %v355
        %v4575 = vpop.f32.mrf.mxu0
        %v4576 = vadd.f32 %v4527, %v4575
        %v4577 = vpop.f32.mrf.mxu0
        %v4578 = vadd.f32 %v4529, %v4577
        %4579 = vmatmul.bf16.gmra.mxu0 %v361
        %v4580 = vpop.f32.mrf.mxu0
        %v4581 = vadd.f32 %v4532, %v4580
        %v4582 = vpop.f32.mrf.mxu0
        %v4583 = vadd.f32 %v4534, %v4582
        %4584 = vmatmul.bf16.gmra.mxu0 %v367
        %v4585 = vpop.f32.mrf.mxu0
        %v4586 = vadd.f32 %v4537, %v4585
        %v4587 = vpop.f32.mrf.mxu0
        %v4588 = vadd.f32 %v4539, %v4587
        %4589 = vmatmul.bf16.gmra.mxu0 %v373
        %v4590 = vpop.f32.mrf.mxu0
        %v4591 = vadd.f32 %v4542, %v4590
        %v4592 = vpop.f32.mrf.mxu0
        %v4593 = vadd.f32 %v4544, %v4592
        %4594 = vmatmul.bf16.gmra.mxu0 %v379
        %v4595 = vpop.f32.mrf.mxu0
        %v4596 = vadd.f32 %v4547, %v4595
        %v4597 = vpop.f32.mrf.mxu0
        %v4598 = vadd.f32 %v4549, %v4597
        %4599 = vmatmul.bf16.gmra.mxu0 %v385
        %v4600 = vpop.f32.mrf.mxu0
        %v4601 = vadd.f32 %v4552, %v4600
        %v4602 = vpop.f32.mrf.mxu0
        %v4603 = vadd.f32 %v4554, %v4602
        %4604 = vmatmul.bf16.gmra.mxu0 %v391
        %v4605 = vpop.f32.mrf.mxu0
        %v4606 = vadd.f32 %v4557, %v4605
        %v4607 = vpop.f32.mrf.mxu0
        %v4608 = vadd.f32 %v4559, %v4607
        %4609 = vdwg.mxu0
        %4610 = vmatpush.bf16.msra.mxu0 %v2185
        %4611 = vmatpush.bf16.msra.mxu0 %v2177
        %4612 = vmatpush.bf16.msra.mxu0 %v2169
        %4613 = vmatpush.bf16.msra.mxu0 %v2161
        %4614 = vmatpush.bf16.msra.mxu0 %v2153
        %4615 = vmatpush.bf16.msra.mxu0 %v2145
        %4616 = vmatpush.bf16.msra.mxu0 %v2137
        %4617 = vmatpush.bf16.msra.mxu0 %v2129
        %4618 = vmatmul.bf16.gmra.mxu0 %v350
        %v4619 = vpop.f32.mrf.mxu0
        %v4620 = vadd.f32 %v4571, %v4619
        %v4621 = vpop.f32.mrf.mxu0
        %v4622 = vadd.f32 %v4573, %v4621
        %4623 = vmatmul.bf16.gmra.mxu0 %v356
        %v4624 = vpop.f32.mrf.mxu0
        %v4625 = vadd.f32 %v4576, %v4624
        %v4626 = vpop.f32.mrf.mxu0
        %v4627 = vadd.f32 %v4578, %v4626
        %4628 = vmatmul.bf16.gmra.mxu0 %v362
        %v4629 = vpop.f32.mrf.mxu0
        %v4630 = vadd.f32 %v4581, %v4629
        %v4631 = vpop.f32.mrf.mxu0
        %v4632 = vadd.f32 %v4583, %v4631
        %4633 = vmatmul.bf16.gmra.mxu0 %v368
        %v4634 = vpop.f32.mrf.mxu0
        %v4635 = vadd.f32 %v4586, %v4634
        %v4636 = vpop.f32.mrf.mxu0
        %v4637 = vadd.f32 %v4588, %v4636
        %4638 = vmatmul.bf16.gmra.mxu0 %v374
        %v4639 = vpop.f32.mrf.mxu0
        %v4640 = vadd.f32 %v4591, %v4639
        %v4641 = vpop.f32.mrf.mxu0
        %v4642 = vadd.f32 %v4593, %v4641
        %4643 = vmatmul.bf16.gmra.mxu0 %v380
        %v4644 = vpop.f32.mrf.mxu0
        %v4645 = vadd.f32 %v4596, %v4644
        %v4646 = vpop.f32.mrf.mxu0
        %v4647 = vadd.f32 %v4598, %v4646
        %4648 = vmatmul.bf16.gmra.mxu0 %v386
        %v4649 = vpop.f32.mrf.mxu0
        %v4650 = vadd.f32 %v4601, %v4649
        %v4651 = vpop.f32.mrf.mxu0
        %v4652 = vadd.f32 %v4603, %v4651
        %4653 = vmatmul.bf16.gmra.mxu0 %v392
        %v4654 = vpop.f32.mrf.mxu0
        %v4655 = vadd.f32 %v4606, %v4654
        %v4656 = vpop.f32.mrf.mxu0
        %v4657 = vadd.f32 %v4608, %v4656
        %4658 = vdwg.mxu0
        %4659 = vmatpush.bf16.msra.mxu0 %v2249
        %4660 = vmatpush.bf16.msra.mxu0 %v2241
        %4661 = vmatpush.bf16.msra.mxu0 %v2233
        %4662 = vmatpush.bf16.msra.mxu0 %v2225
        %4663 = vmatpush.bf16.msra.mxu0 %v2217
        %4664 = vmatpush.bf16.msra.mxu0 %v2209
        %4665 = vmatpush.bf16.msra.mxu0 %v2201
        %4666 = vmatpush.bf16.msra.mxu0 %v2193
        %4667 = vmatmul.bf16.gmra.mxu0 %v351
        %v4668 = vpop.f32.mrf.mxu0
        %v4669 = vadd.f32 %v4620, %v4668
        %v4670 = vpop.f32.mrf.mxu0
        %v4671 = vadd.f32 %v4622, %v4670
        %4672 = vmatmul.bf16.gmra.mxu0 %v357
        %v4673 = vpop.f32.mrf.mxu0
        %v4674 = vadd.f32 %v4625, %v4673
        %v4675 = vpop.f32.mrf.mxu0
        %v4676 = vadd.f32 %v4627, %v4675
        %4677 = vmatmul.bf16.gmra.mxu0 %v363
        %v4678 = vpop.f32.mrf.mxu0
        %v4679 = vadd.f32 %v4630, %v4678
        %v4680 = vpop.f32.mrf.mxu0
        %v4681 = vadd.f32 %v4632, %v4680
        %4682 = vmatmul.bf16.gmra.mxu0 %v369
        %v4683 = vpop.f32.mrf.mxu0
        %v4684 = vadd.f32 %v4635, %v4683
        %v4685 = vpop.f32.mrf.mxu0
        %v4686 = vadd.f32 %v4637, %v4685
        %4687 = vmatmul.bf16.gmra.mxu0 %v375
        %v4688 = vpop.f32.mrf.mxu0
        %v4689 = vadd.f32 %v4640, %v4688
        %v4690 = vpop.f32.mrf.mxu0
        %v4691 = vadd.f32 %v4642, %v4690
        %4692 = vmatmul.bf16.gmra.mxu0 %v381
        %v4693 = vpop.f32.mrf.mxu0
        %v4694 = vadd.f32 %v4645, %v4693
        %v4695 = vpop.f32.mrf.mxu0
        %v4696 = vadd.f32 %v4647, %v4695
        %4697 = vmatmul.bf16.gmra.mxu0 %v387
        %v4698 = vpop.f32.mrf.mxu0
        %v4699 = vadd.f32 %v4650, %v4698
        %v4700 = vpop.f32.mrf.mxu0
        %v4701 = vadd.f32 %v4652, %v4700
        %4702 = vmatmul.bf16.gmra.mxu0 %v393
        %v4703 = vpop.f32.mrf.mxu0
        %v4704 = vadd.f32 %v4655, %v4703
        %v4705 = vpop.f32.mrf.mxu0
        %v4706 = vadd.f32 %v4657, %v4705
        %4707 = vdwg.mxu0
        %4708 = vmatpush.bf16.msra.mxu0 %v2313
        %4709 = vmatpush.bf16.msra.mxu0 %v2305
        %4710 = vmatpush.bf16.msra.mxu0 %v2297
        %4711 = vmatpush.bf16.msra.mxu0 %v2289
        %4712 = vmatpush.bf16.msra.mxu0 %v2281
        %4713 = vmatpush.bf16.msra.mxu0 %v2273
        %4714 = vmatpush.bf16.msra.mxu0 %v2265
        %4715 = vmatpush.bf16.msra.mxu0 %v2257
        %4716 = vmatmul.bf16.gmra.mxu0 %v352
        %v4717 = vpop.f32.mrf.mxu0
        %v4718 = vadd.f32 %v4669, %v4717
        %v4719 = vpop.f32.mrf.mxu0
        %v4720 = vadd.f32 %v4671, %v4719
        %4721 = vmatmul.bf16.gmra.mxu0 %v358
        %v4722 = vpop.f32.mrf.mxu0
        %v4723 = vadd.f32 %v4674, %v4722
        %v4724 = vpop.f32.mrf.mxu0
        %v4725 = vadd.f32 %v4676, %v4724
        %4726 = vmatmul.bf16.gmra.mxu0 %v364
        %v4727 = vpop.f32.mrf.mxu0
        %v4728 = vadd.f32 %v4679, %v4727
        %v4729 = vpop.f32.mrf.mxu0
        %v4730 = vadd.f32 %v4681, %v4729
        %4731 = vmatmul.bf16.gmra.mxu0 %v370
        %v4732 = vpop.f32.mrf.mxu0
        %v4733 = vadd.f32 %v4684, %v4732
        %v4734 = vpop.f32.mrf.mxu0
        %v4735 = vadd.f32 %v4686, %v4734
        %4736 = vmatmul.bf16.gmra.mxu0 %v376
        %v4737 = vpop.f32.mrf.mxu0
        %v4738 = vadd.f32 %v4689, %v4737
        %v4739 = vpop.f32.mrf.mxu0
        %v4740 = vadd.f32 %v4691, %v4739
        %4741 = vmatmul.bf16.gmra.mxu0 %v382
        %v4742 = vpop.f32.mrf.mxu0
        %v4743 = vadd.f32 %v4694, %v4742
        %v4744 = vpop.f32.mrf.mxu0
        %v4745 = vadd.f32 %v4696, %v4744
        %4746 = vmatmul.bf16.gmra.mxu0 %v388
        %v4747 = vpop.f32.mrf.mxu0
        %v4748 = vadd.f32 %v4699, %v4747
        %v4749 = vpop.f32.mrf.mxu0
        %v4750 = vadd.f32 %v4701, %v4749
        %4751 = vmatmul.bf16.gmra.mxu0 %v394
        %v4752 = vpop.f32.mrf.mxu0
        %v4753 = vadd.f32 %v4704, %v4752
        %v4754 = vpop.f32.mrf.mxu0
        %v4755 = vadd.f32 %v4706, %v4754
        %4756 = vdwg.mxu0
        %4757 = vmatpush.bf16.msra.mxu0 %v1994
        %4758 = vmatpush.bf16.msra.mxu0 %v1986
        %4759 = vmatpush.bf16.msra.mxu0 %v1978
        %4760 = vmatpush.bf16.msra.mxu0 %v1970
        %4761 = vmatpush.bf16.msra.mxu0 %v1962
        %4762 = vmatpush.bf16.msra.mxu0 %v1954
        %4763 = vmatpush.bf16.msra.mxu0 %v1946
        %4764 = vmatpush.bf16.msra.mxu0 %v1938
        %4765 = vmatmul.bf16.gmra.mxu0 %v347
        %v4766 = vpop.f32.mrf.mxu0
        %v4767 = vadd.f32 0.0, %v4766
        %v4768 = vpop.f32.mrf.mxu0
        %v4769 = vadd.f32 0.0, %v4768
        %4770 = vmatmul.bf16.gmra.mxu0 %v353
        %v4771 = vpop.f32.mrf.mxu0
        %v4772 = vadd.f32 0.0, %v4771
        %v4773 = vpop.f32.mrf.mxu0
        %v4774 = vadd.f32 0.0, %v4773
        %4775 = vmatmul.bf16.gmra.mxu0 %v359
        %v4776 = vpop.f32.mrf.mxu0
        %v4777 = vadd.f32 0.0, %v4776
        %v4778 = vpop.f32.mrf.mxu0
        %v4779 = vadd.f32 0.0, %v4778
        %4780 = vmatmul.bf16.gmra.mxu0 %v365
        %v4781 = vpop.f32.mrf.mxu0
        %v4782 = vadd.f32 0.0, %v4781
        %v4783 = vpop.f32.mrf.mxu0
        %v4784 = vadd.f32 0.0, %v4783
        %4785 = vmatmul.bf16.gmra.mxu0 %v371
        %v4786 = vpop.f32.mrf.mxu0
        %v4787 = vadd.f32 0.0, %v4786
        %v4788 = vpop.f32.mrf.mxu0
        %v4789 = vadd.f32 0.0, %v4788
        %4790 = vmatmul.bf16.gmra.mxu0 %v377
        %v4791 = vpop.f32.mrf.mxu0
        %v4792 = vadd.f32 0.0, %v4791
        %v4793 = vpop.f32.mrf.mxu0
        %v4794 = vadd.f32 0.0, %v4793
        %4795 = vmatmul.bf16.gmra.mxu0 %v383
        %v4796 = vpop.f32.mrf.mxu0
        %v4797 = vadd.f32 0.0, %v4796
        %v4798 = vpop.f32.mrf.mxu0
        %v4799 = vadd.f32 0.0, %v4798
        %4800 = vmatmul.bf16.gmra.mxu0 %v389
        %v4801 = vpop.f32.mrf.mxu0
        %v4802 = vadd.f32 0.0, %v4801
        %v4803 = vpop.f32.mrf.mxu0
        %v4804 = vadd.f32 0.0, %v4803
        %4805 = vdwg.mxu0
        %4806 = vmatpush.bf16.msra.mxu0 %v2058
        %4807 = vmatpush.bf16.msra.mxu0 %v2050
        %4808 = vmatpush.bf16.msra.mxu0 %v2042
        %4809 = vmatpush.bf16.msra.mxu0 %v2034
        %4810 = vmatpush.bf16.msra.mxu0 %v2026
        %4811 = vmatpush.bf16.msra.mxu0 %v2018
        %4812 = vmatpush.bf16.msra.mxu0 %v2010
        %4813 = vmatpush.bf16.msra.mxu0 %v2002
        %4814 = vmatmul.bf16.gmra.mxu0 %v348
        %v4815 = vpop.f32.mrf.mxu0
        %v4816 = vadd.f32 %v4767, %v4815
        %v4817 = vpop.f32.mrf.mxu0
        %v4818 = vadd.f32 %v4769, %v4817
        %4819 = vmatmul.bf16.gmra.mxu0 %v354
        %v4820 = vpop.f32.mrf.mxu0
        %v4821 = vadd.f32 %v4772, %v4820
        %v4822 = vpop.f32.mrf.mxu0
        %v4823 = vadd.f32 %v4774, %v4822
        %4824 = vmatmul.bf16.gmra.mxu0 %v360
        %v4825 = vpop.f32.mrf.mxu0
        %v4826 = vadd.f32 %v4777, %v4825
        %v4827 = vpop.f32.mrf.mxu0
        %v4828 = vadd.f32 %v4779, %v4827
        %4829 = vmatmul.bf16.gmra.mxu0 %v366
        %v4830 = vpop.f32.mrf.mxu0
        %v4831 = vadd.f32 %v4782, %v4830
        %v4832 = vpop.f32.mrf.mxu0
        %v4833 = vadd.f32 %v4784, %v4832
        %4834 = vmatmul.bf16.gmra.mxu0 %v372
        %v4835 = vpop.f32.mrf.mxu0
        %v4836 = vadd.f32 %v4787, %v4835
        %v4837 = vpop.f32.mrf.mxu0
        %v4838 = vadd.f32 %v4789, %v4837
        %4839 = vmatmul.bf16.gmra.mxu0 %v378
        %v4840 = vpop.f32.mrf.mxu0
        %v4841 = vadd.f32 %v4792, %v4840
        %v4842 = vpop.f32.mrf.mxu0
        %v4843 = vadd.f32 %v4794, %v4842
        %4844 = vmatmul.bf16.gmra.mxu0 %v384
        %v4845 = vpop.f32.mrf.mxu0
        %v4846 = vadd.f32 %v4797, %v4845
        %v4847 = vpop.f32.mrf.mxu0
        %v4848 = vadd.f32 %v4799, %v4847
        %4849 = vmatmul.bf16.gmra.mxu0 %v390
        %v4850 = vpop.f32.mrf.mxu0
        %v4851 = vadd.f32 %v4802, %v4850
        %v4852 = vpop.f32.mrf.mxu0
        %v4853 = vadd.f32 %v4804, %v4852
        %4854 = vdwg.mxu0
        %4855 = vmatpush.bf16.msra.mxu0 %v2122
        %4856 = vmatpush.bf16.msra.mxu0 %v2114
        %4857 = vmatpush.bf16.msra.mxu0 %v2106
        %4858 = vmatpush.bf16.msra.mxu0 %v2098
        %4859 = vmatpush.bf16.msra.mxu0 %v2090
        %4860 = vmatpush.bf16.msra.mxu0 %v2082
        %4861 = vmatpush.bf16.msra.mxu0 %v2074
        %4862 = vmatpush.bf16.msra.mxu0 %v2066
        %4863 = vmatmul.bf16.gmra.mxu0 %v349
        %v4864 = vpop.f32.mrf.mxu0
        %v4865 = vadd.f32 %v4816, %v4864
        %v4866 = vpop.f32.mrf.mxu0
        %v4867 = vadd.f32 %v4818, %v4866
        %4868 = vmatmul.bf16.gmra.mxu0 %v355
        %v4869 = vpop.f32.mrf.mxu0
        %v4870 = vadd.f32 %v4821, %v4869
        %v4871 = vpop.f32.mrf.mxu0
        %v4872 = vadd.f32 %v4823, %v4871
        %4873 = vmatmul.bf16.gmra.mxu0 %v361
        %v4874 = vpop.f32.mrf.mxu0
        %v4875 = vadd.f32 %v4826, %v4874
        %v4876 = vpop.f32.mrf.mxu0
        %v4877 = vadd.f32 %v4828, %v4876
        %4878 = vmatmul.bf16.gmra.mxu0 %v367
        %v4879 = vpop.f32.mrf.mxu0
        %v4880 = vadd.f32 %v4831, %v4879
        %v4881 = vpop.f32.mrf.mxu0
        %v4882 = vadd.f32 %v4833, %v4881
        %4883 = vmatmul.bf16.gmra.mxu0 %v373
        %v4884 = vpop.f32.mrf.mxu0
        %v4885 = vadd.f32 %v4836, %v4884
        %v4886 = vpop.f32.mrf.mxu0
        %v4887 = vadd.f32 %v4838, %v4886
        %4888 = vmatmul.bf16.gmra.mxu0 %v379
        %v4889 = vpop.f32.mrf.mxu0
        %v4890 = vadd.f32 %v4841, %v4889
        %v4891 = vpop.f32.mrf.mxu0
        %v4892 = vadd.f32 %v4843, %v4891
        %4893 = vmatmul.bf16.gmra.mxu0 %v385
        %v4894 = vpop.f32.mrf.mxu0
        %v4895 = vadd.f32 %v4846, %v4894
        %v4896 = vpop.f32.mrf.mxu0
        %v4897 = vadd.f32 %v4848, %v4896
        %4898 = vmatmul.bf16.gmra.mxu0 %v391
        %v4899 = vpop.f32.mrf.mxu0
        %v4900 = vadd.f32 %v4851, %v4899
        %v4901 = vpop.f32.mrf.mxu0
        %v4902 = vadd.f32 %v4853, %v4901
        %4903 = vdwg.mxu0
        %4904 = vmatpush.bf16.msra.mxu0 %v2186
        %4905 = vmatpush.bf16.msra.mxu0 %v2178
        %4906 = vmatpush.bf16.msra.mxu0 %v2170
        %4907 = vmatpush.bf16.msra.mxu0 %v2162
        %4908 = vmatpush.bf16.msra.mxu0 %v2154
        %4909 = vmatpush.bf16.msra.mxu0 %v2146
        %4910 = vmatpush.bf16.msra.mxu0 %v2138
        %4911 = vmatpush.bf16.msra.mxu0 %v2130
        %4912 = vmatmul.bf16.gmra.mxu0 %v350
        %v4913 = vpop.f32.mrf.mxu0
        %v4914 = vadd.f32 %v4865, %v4913
        %v4915 = vpop.f32.mrf.mxu0
        %v4916 = vadd.f32 %v4867, %v4915
        %4917 = vmatmul.bf16.gmra.mxu0 %v356
        %v4918 = vpop.f32.mrf.mxu0
        %v4919 = vadd.f32 %v4870, %v4918
        %v4920 = vpop.f32.mrf.mxu0
        %v4921 = vadd.f32 %v4872, %v4920
        %4922 = vmatmul.bf16.gmra.mxu0 %v362
        %v4923 = vpop.f32.mrf.mxu0
        %v4924 = vadd.f32 %v4875, %v4923
        %v4925 = vpop.f32.mrf.mxu0
        %v4926 = vadd.f32 %v4877, %v4925
        %4927 = vmatmul.bf16.gmra.mxu0 %v368
        %v4928 = vpop.f32.mrf.mxu0
        %v4929 = vadd.f32 %v4880, %v4928
        %v4930 = vpop.f32.mrf.mxu0
        %v4931 = vadd.f32 %v4882, %v4930
        %4932 = vmatmul.bf16.gmra.mxu0 %v374
        %v4933 = vpop.f32.mrf.mxu0
        %v4934 = vadd.f32 %v4885, %v4933
        %v4935 = vpop.f32.mrf.mxu0
        %v4936 = vadd.f32 %v4887, %v4935
        %4937 = vmatmul.bf16.gmra.mxu0 %v380
        %v4938 = vpop.f32.mrf.mxu0
        %v4939 = vadd.f32 %v4890, %v4938
        %v4940 = vpop.f32.mrf.mxu0
        %v4941 = vadd.f32 %v4892, %v4940
        %4942 = vmatmul.bf16.gmra.mxu0 %v386
        %v4943 = vpop.f32.mrf.mxu0
        %v4944 = vadd.f32 %v4895, %v4943
        %v4945 = vpop.f32.mrf.mxu0
        %v4946 = vadd.f32 %v4897, %v4945
        %4947 = vmatmul.bf16.gmra.mxu0 %v392
        %v4948 = vpop.f32.mrf.mxu0
        %v4949 = vadd.f32 %v4900, %v4948
        %v4950 = vpop.f32.mrf.mxu0
        %v4951 = vadd.f32 %v4902, %v4950
        %4952 = vdwg.mxu0
        %4953 = vmatpush.bf16.msra.mxu0 %v2250
        %4954 = vmatpush.bf16.msra.mxu0 %v2242
        %4955 = vmatpush.bf16.msra.mxu0 %v2234
        %4956 = vmatpush.bf16.msra.mxu0 %v2226
        %4957 = vmatpush.bf16.msra.mxu0 %v2218
        %4958 = vmatpush.bf16.msra.mxu0 %v2210
        %4959 = vmatpush.bf16.msra.mxu0 %v2202
        %4960 = vmatpush.bf16.msra.mxu0 %v2194
        %4961 = vmatmul.bf16.gmra.mxu0 %v351
        %v4962 = vpop.f32.mrf.mxu0
        %v4963 = vadd.f32 %v4914, %v4962
        %v4964 = vpop.f32.mrf.mxu0
        %v4965 = vadd.f32 %v4916, %v4964
        %4966 = vmatmul.bf16.gmra.mxu0 %v357
        %v4967 = vpop.f32.mrf.mxu0
        %v4968 = vadd.f32 %v4919, %v4967
        %v4969 = vpop.f32.mrf.mxu0
        %v4970 = vadd.f32 %v4921, %v4969
        %4971 = vmatmul.bf16.gmra.mxu0 %v363
        %v4972 = vpop.f32.mrf.mxu0
        %v4973 = vadd.f32 %v4924, %v4972
        %v4974 = vpop.f32.mrf.mxu0
        %v4975 = vadd.f32 %v4926, %v4974
        %4976 = vmatmul.bf16.gmra.mxu0 %v369
        %v4977 = vpop.f32.mrf.mxu0
        %v4978 = vadd.f32 %v4929, %v4977
        %v4979 = vpop.f32.mrf.mxu0
        %v4980 = vadd.f32 %v4931, %v4979
        %4981 = vmatmul.bf16.gmra.mxu0 %v375
        %v4982 = vpop.f32.mrf.mxu0
        %v4983 = vadd.f32 %v4934, %v4982
        %v4984 = vpop.f32.mrf.mxu0
        %v4985 = vadd.f32 %v4936, %v4984
        %4986 = vmatmul.bf16.gmra.mxu0 %v381
        %v4987 = vpop.f32.mrf.mxu0
        %v4988 = vadd.f32 %v4939, %v4987
        %v4989 = vpop.f32.mrf.mxu0
        %v4990 = vadd.f32 %v4941, %v4989
        %4991 = vmatmul.bf16.gmra.mxu0 %v387
        %v4992 = vpop.f32.mrf.mxu0
        %v4993 = vadd.f32 %v4944, %v4992
        %v4994 = vpop.f32.mrf.mxu0
        %v4995 = vadd.f32 %v4946, %v4994
        %4996 = vmatmul.bf16.gmra.mxu0 %v393
        %v4997 = vpop.f32.mrf.mxu0
        %v4998 = vadd.f32 %v4949, %v4997
        %v4999 = vpop.f32.mrf.mxu0
        %v5000 = vadd.f32 %v4951, %v4999
        %5001 = vdwg.mxu0
        %5002 = vmatpush.bf16.msra.mxu0 %v2314
        %5003 = vmatpush.bf16.msra.mxu0 %v2306
        %5004 = vmatpush.bf16.msra.mxu0 %v2298
        %5005 = vmatpush.bf16.msra.mxu0 %v2290
        %5006 = vmatpush.bf16.msra.mxu0 %v2282
        %5007 = vmatpush.bf16.msra.mxu0 %v2274
        %5008 = vmatpush.bf16.msra.mxu0 %v2266
        %5009 = vmatpush.bf16.msra.mxu0 %v2258
        %5010 = vmatmul.bf16.gmra.mxu0 %v352
        %v5011 = vpop.f32.mrf.mxu0
        %v5012 = vadd.f32 %v4963, %v5011
        %v5013 = vpop.f32.mrf.mxu0
        %v5014 = vadd.f32 %v4965, %v5013
        %5015 = vmatmul.bf16.gmra.mxu0 %v358
        %v5016 = vpop.f32.mrf.mxu0
        %v5017 = vadd.f32 %v4968, %v5016
        %v5018 = vpop.f32.mrf.mxu0
        %v5019 = vadd.f32 %v4970, %v5018
        %5020 = vmatmul.bf16.gmra.mxu0 %v364
        %v5021 = vpop.f32.mrf.mxu0
        %v5022 = vadd.f32 %v4973, %v5021
        %v5023 = vpop.f32.mrf.mxu0
        %v5024 = vadd.f32 %v4975, %v5023
        %5025 = vmatmul.bf16.gmra.mxu0 %v370
        %v5026 = vpop.f32.mrf.mxu0
        %v5027 = vadd.f32 %v4978, %v5026
        %v5028 = vpop.f32.mrf.mxu0
        %v5029 = vadd.f32 %v4980, %v5028
        %5030 = vmatmul.bf16.gmra.mxu0 %v376
        %v5031 = vpop.f32.mrf.mxu0
        %v5032 = vadd.f32 %v4983, %v5031
        %v5033 = vpop.f32.mrf.mxu0
        %v5034 = vadd.f32 %v4985, %v5033
        %5035 = vmatmul.bf16.gmra.mxu0 %v382
        %v5036 = vpop.f32.mrf.mxu0
        %v5037 = vadd.f32 %v4988, %v5036
        %v5038 = vpop.f32.mrf.mxu0
        %v5039 = vadd.f32 %v4990, %v5038
        %5040 = vmatmul.bf16.gmra.mxu0 %v388
        %v5041 = vpop.f32.mrf.mxu0
        %v5042 = vadd.f32 %v4993, %v5041
        %v5043 = vpop.f32.mrf.mxu0
        %v5044 = vadd.f32 %v4995, %v5043
        %5045 = vmatmul.bf16.gmra.mxu0 %v394
        %v5046 = vpop.f32.mrf.mxu0
        %v5047 = vadd.f32 %v4998, %v5046
        %v5048 = vpop.f32.mrf.mxu0
        %v5049 = vadd.f32 %v5000, %v5048
        %5050 = vdwg.mxu0
        %v5051 = vld [vmem:[#allocation8] sm:$0xff]
        %v5053 = vperm.slane %v5051, 0
        %v5054 = vperm.slane %v5051, 1
        %v5055 = vperm.slane %v5051, 2
        %v5056 = vperm.slane %v5051, 3
        %v5057 = vperm.slane %v5051, 4
        %v5058 = vperm.slane %v5051, 5
        %v5059 = vperm.slane %v5051, 6
        %v5060 = vperm.slane %v5051, 7
        %v5069 = vmul.f32 %v2954, %v5053
        %v5070 = vmul.f32 %v3248, %v5054
        %v5071 = vmul.f32 %v3542, %v5055
        %v5072 = vmul.f32 %v3836, %v5056
        %v5073 = vmul.f32 %v4130, %v5057
        %v5074 = vmul.f32 %v4424, %v5058
        %v5075 = vmul.f32 %v4718, %v5059
        %v5076 = vmul.f32 %v5012, %v5060
        %v5077 = vmul.f32 %v2956, %v5053
        %v5078 = vmul.f32 %v3250, %v5054
        %v5079 = vmul.f32 %v3544, %v5055
        %v5080 = vmul.f32 %v3838, %v5056
        %v5081 = vmul.f32 %v4132, %v5057
        %v5082 = vmul.f32 %v4426, %v5058
        %v5083 = vmul.f32 %v4720, %v5059
        %v5084 = vmul.f32 %v5014, %v5060
        %v5085 = vmul.f32 %v2959, %v5053
        %v5086 = vmul.f32 %v3253, %v5054
        %v5087 = vmul.f32 %v3547, %v5055
        %v5088 = vmul.f32 %v3841, %v5056
        %v5089 = vmul.f32 %v4135, %v5057
        %v5090 = vmul.f32 %v4429, %v5058
        %v5091 = vmul.f32 %v4723, %v5059
        %v5092 = vmul.f32 %v5017, %v5060
        %v5093 = vmul.f32 %v2961, %v5053
        %v5094 = vmul.f32 %v3255, %v5054
        %v5095 = vmul.f32 %v3549, %v5055
        %v5096 = vmul.f32 %v3843, %v5056
        %v5097 = vmul.f32 %v4137, %v5057
        %v5098 = vmul.f32 %v4431, %v5058
        %v5099 = vmul.f32 %v4725, %v5059
        %v5100 = vmul.f32 %v5019, %v5060
        %v5101 = vmul.f32 %v2964, %v5053
        %v5102 = vmul.f32 %v3258, %v5054
        %v5103 = vmul.f32 %v3552, %v5055
        %v5104 = vmul.f32 %v3846, %v5056
        %v5105 = vmul.f32 %v4140, %v5057
        %v5106 = vmul.f32 %v4434, %v5058
        %v5107 = vmul.f32 %v4728, %v5059
        %v5108 = vmul.f32 %v5022, %v5060
        %v5109 = vmul.f32 %v2966, %v5053
        %v5110 = vmul.f32 %v3260, %v5054
        %v5111 = vmul.f32 %v3554, %v5055
        %v5112 = vmul.f32 %v3848, %v5056
        %v5113 = vmul.f32 %v4142, %v5057
        %v5114 = vmul.f32 %v4436, %v5058
        %v5115 = vmul.f32 %v4730, %v5059
        %v5116 = vmul.f32 %v5024, %v5060
        %v5117 = vmul.f32 %v2969, %v5053
        %v5118 = vmul.f32 %v3263, %v5054
        %v5119 = vmul.f32 %v3557, %v5055
        %v5120 = vmul.f32 %v3851, %v5056
        %v5121 = vmul.f32 %v4145, %v5057
        %v5122 = vmul.f32 %v4439, %v5058
        %v5123 = vmul.f32 %v4733, %v5059
        %v5124 = vmul.f32 %v5027, %v5060
        %v5125 = vmul.f32 %v2971, %v5053
        %v5126 = vmul.f32 %v3265, %v5054
        %v5127 = vmul.f32 %v3559, %v5055
        %v5128 = vmul.f32 %v3853, %v5056
        %v5129 = vmul.f32 %v4147, %v5057
        %v5130 = vmul.f32 %v4441, %v5058
        %v5131 = vmul.f32 %v4735, %v5059
        %v5132 = vmul.f32 %v5029, %v5060
        %v5133 = vmul.f32 %v2974, %v5053
        %v5134 = vmul.f32 %v3268, %v5054
        %v5135 = vmul.f32 %v3562, %v5055
        %v5136 = vmul.f32 %v3856, %v5056
        %v5137 = vmul.f32 %v4150, %v5057
        %v5138 = vmul.f32 %v4444, %v5058
        %v5139 = vmul.f32 %v4738, %v5059
        %v5140 = vmul.f32 %v5032, %v5060
        %v5141 = vmul.f32 %v2976, %v5053
        %v5142 = vmul.f32 %v3270, %v5054
        %v5143 = vmul.f32 %v3564, %v5055
        %v5144 = vmul.f32 %v3858, %v5056
        %v5145 = vmul.f32 %v4152, %v5057
        %v5146 = vmul.f32 %v4446, %v5058
        %v5147 = vmul.f32 %v4740, %v5059
        %v5148 = vmul.f32 %v5034, %v5060
        %v5149 = vmul.f32 %v2979, %v5053
        %v5150 = vmul.f32 %v3273, %v5054
        %v5151 = vmul.f32 %v3567, %v5055
        %v5152 = vmul.f32 %v3861, %v5056
        %v5153 = vmul.f32 %v4155, %v5057
        %v5154 = vmul.f32 %v4449, %v5058
        %v5155 = vmul.f32 %v4743, %v5059
        %v5156 = vmul.f32 %v5037, %v5060
        %v5157 = vmul.f32 %v2981, %v5053
        %v5158 = vmul.f32 %v3275, %v5054
        %v5159 = vmul.f32 %v3569, %v5055
        %v5160 = vmul.f32 %v3863, %v5056
        %v5161 = vmul.f32 %v4157, %v5057
        %v5162 = vmul.f32 %v4451, %v5058
        %v5163 = vmul.f32 %v4745, %v5059
        %v5164 = vmul.f32 %v5039, %v5060
        %v5165 = vmul.f32 %v2984, %v5053
        %v5166 = vmul.f32 %v3278, %v5054
        %v5167 = vmul.f32 %v3572, %v5055
        %v5168 = vmul.f32 %v3866, %v5056
        %v5169 = vmul.f32 %v4160, %v5057
        %v5170 = vmul.f32 %v4454, %v5058
        %v5171 = vmul.f32 %v4748, %v5059
        %v5172 = vmul.f32 %v5042, %v5060
        %v5173 = vmul.f32 %v2986, %v5053
        %v5174 = vmul.f32 %v3280, %v5054
        %v5175 = vmul.f32 %v3574, %v5055
        %v5176 = vmul.f32 %v3868, %v5056
        %v5177 = vmul.f32 %v4162, %v5057
        %v5178 = vmul.f32 %v4456, %v5058
        %v5179 = vmul.f32 %v4750, %v5059
        %v5180 = vmul.f32 %v5044, %v5060
        %v5181 = vmul.f32 %v2989, %v5053
        %v5182 = vmul.f32 %v3283, %v5054
        %v5183 = vmul.f32 %v3577, %v5055
        %v5184 = vmul.f32 %v3871, %v5056
        %v5185 = vmul.f32 %v4165, %v5057
        %v5186 = vmul.f32 %v4459, %v5058
        %v5187 = vmul.f32 %v4753, %v5059
        %v5188 = vmul.f32 %v5047, %v5060
        %v5189 = vmul.f32 %v2991, %v5053
        %v5190 = vmul.f32 %v3285, %v5054
        %v5191 = vmul.f32 %v3579, %v5055
        %v5192 = vmul.f32 %v3873, %v5056
        %v5193 = vmul.f32 %v4167, %v5057
        %v5194 = vmul.f32 %v4461, %v5058
        %v5195 = vmul.f32 %v4755, %v5059
        %v5196 = vmul.f32 %v5049, %v5060
        %v5197 = vadd.f32 %v5069, %v5070
        %v5198 = vadd.f32 %v5197, %v5071
        %v5199 = vadd.f32 %v5198, %v5072
        %v5200 = vadd.f32 %v5199, %v5073
        %v5201 = vadd.f32 %v5200, %v5074
        %v5202 = vadd.f32 %v5201, %v5075
        %v5203 = vadd.f32 %v5202, %v5076
        %5204 = vadd.xlane.f32.xlu0 %v5203
        %v5205 = vpop.xlane.xlu0 %5204
        %v5206 = vadd.f32 %v5077, %v5078
        %v5207 = vadd.f32 %v5206, %v5079
        %v5208 = vadd.f32 %v5207, %v5080
        %v5209 = vadd.f32 %v5208, %v5081
        %v5210 = vadd.f32 %v5209, %v5082
        %v5211 = vadd.f32 %v5210, %v5083
        %v5212 = vadd.f32 %v5211, %v5084
        %5213 = vadd.xlane.f32.xlu0 %v5212
        %v5214 = vpop.xlane.xlu0 %5213
        %v5215 = vadd.f32 %v5085, %v5086
        %v5216 = vadd.f32 %v5215, %v5087
        %v5217 = vadd.f32 %v5216, %v5088
        %v5218 = vadd.f32 %v5217, %v5089
        %v5219 = vadd.f32 %v5218, %v5090
        %v5220 = vadd.f32 %v5219, %v5091
        %v5221 = vadd.f32 %v5220, %v5092
        %5222 = vadd.xlane.f32.xlu0 %v5221
        %v5223 = vpop.xlane.xlu0 %5222
        %v5224 = vadd.f32 %v5093, %v5094
        %v5225 = vadd.f32 %v5224, %v5095
        %v5226 = vadd.f32 %v5225, %v5096
        %v5227 = vadd.f32 %v5226, %v5097
        %v5228 = vadd.f32 %v5227, %v5098
        %v5229 = vadd.f32 %v5228, %v5099
        %v5230 = vadd.f32 %v5229, %v5100
        %5231 = vadd.xlane.f32.xlu0 %v5230
        %v5232 = vpop.xlane.xlu0 %5231
        %v5233 = vadd.f32 %v5101, %v5102
        %v5234 = vadd.f32 %v5233, %v5103
        %v5235 = vadd.f32 %v5234, %v5104
        %v5236 = vadd.f32 %v5235, %v5105
        %v5237 = vadd.f32 %v5236, %v5106
        %v5238 = vadd.f32 %v5237, %v5107
        %v5239 = vadd.f32 %v5238, %v5108
        %5240 = vadd.xlane.f32.xlu0 %v5239
        %v5241 = vpop.xlane.xlu0 %5240
        %v5242 = vadd.f32 %v5109, %v5110
        %v5243 = vadd.f32 %v5242, %v5111
        %v5244 = vadd.f32 %v5243, %v5112
        %v5245 = vadd.f32 %v5244, %v5113
        %v5246 = vadd.f32 %v5245, %v5114
        %v5247 = vadd.f32 %v5246, %v5115
        %v5248 = vadd.f32 %v5247, %v5116
        %5249 = vadd.xlane.f32.xlu0 %v5248
        %v5250 = vpop.xlane.xlu0 %5249
        %v5251 = vadd.f32 %v5117, %v5118
        %v5252 = vadd.f32 %v5251, %v5119
        %v5253 = vadd.f32 %v5252, %v5120
        %v5254 = vadd.f32 %v5253, %v5121
        %v5255 = vadd.f32 %v5254, %v5122
        %v5256 = vadd.f32 %v5255, %v5123
        %v5257 = vadd.f32 %v5256, %v5124
        %5258 = vadd.xlane.f32.xlu0 %v5257
        %v5259 = vpop.xlane.xlu0 %5258
        %v5260 = vadd.f32 %v5125, %v5126
        %v5261 = vadd.f32 %v5260, %v5127
        %v5262 = vadd.f32 %v5261, %v5128
        %v5263 = vadd.f32 %v5262, %v5129
        %v5264 = vadd.f32 %v5263, %v5130
        %v5265 = vadd.f32 %v5264, %v5131
        %v5266 = vadd.f32 %v5265, %v5132
        %5267 = vadd.xlane.f32.xlu0 %v5266
        %v5268 = vpop.xlane.xlu0 %5267
        %v5269 = vadd.f32 %v5133, %v5134
        %v5270 = vadd.f32 %v5269, %v5135
        %v5271 = vadd.f32 %v5270, %v5136
        %v5272 = vadd.f32 %v5271, %v5137
        %v5273 = vadd.f32 %v5272, %v5138
        %v5274 = vadd.f32 %v5273, %v5139
        %v5275 = vadd.f32 %v5274, %v5140
        %5276 = vadd.xlane.f32.xlu0 %v5275
        %v5277 = vpop.xlane.xlu0 %5276
        %v5278 = vadd.f32 %v5141, %v5142
        %v5279 = vadd.f32 %v5278, %v5143
        %v5280 = vadd.f32 %v5279, %v5144
        %v5281 = vadd.f32 %v5280, %v5145
        %v5282 = vadd.f32 %v5281, %v5146
        %v5283 = vadd.f32 %v5282, %v5147
        %v5284 = vadd.f32 %v5283, %v5148
        %5285 = vadd.xlane.f32.xlu0 %v5284
        %v5286 = vpop.xlane.xlu0 %5285
        %v5287 = vadd.f32 %v5149, %v5150
        %v5288 = vadd.f32 %v5287, %v5151
        %v5289 = vadd.f32 %v5288, %v5152
        %v5290 = vadd.f32 %v5289, %v5153
        %v5291 = vadd.f32 %v5290, %v5154
        %v5292 = vadd.f32 %v5291, %v5155
        %v5293 = vadd.f32 %v5292, %v5156
        %5294 = vadd.xlane.f32.xlu0 %v5293
        %v5295 = vpop.xlane.xlu0 %5294
        %v5296 = vadd.f32 %v5157, %v5158
        %v5297 = vadd.f32 %v5296, %v5159
        %v5298 = vadd.f32 %v5297, %v5160
        %v5299 = vadd.f32 %v5298, %v5161
        %v5300 = vadd.f32 %v5299, %v5162
        %v5301 = vadd.f32 %v5300, %v5163
        %v5302 = vadd.f32 %v5301, %v5164
        %5303 = vadd.xlane.f32.xlu0 %v5302
        %v5304 = vpop.xlane.xlu0 %5303
        %v5305 = vadd.f32 %v5165, %v5166
        %v5306 = vadd.f32 %v5305, %v5167
        %v5307 = vadd.f32 %v5306, %v5168
        %v5308 = vadd.f32 %v5307, %v5169
        %v5309 = vadd.f32 %v5308, %v5170
        %v5310 = vadd.f32 %v5309, %v5171
        %v5311 = vadd.f32 %v5310, %v5172
        %5312 = vadd.xlane.f32.xlu0 %v5311
        %v5313 = vpop.xlane.xlu0 %5312
        %v5314 = vadd.f32 %v5173, %v5174
        %v5315 = vadd.f32 %v5314, %v5175
        %v5316 = vadd.f32 %v5315, %v5176
        %v5317 = vadd.f32 %v5316, %v5177
        %v5318 = vadd.f32 %v5317, %v5178
        %v5319 = vadd.f32 %v5318, %v5179
        %v5320 = vadd.f32 %v5319, %v5180
        %5321 = vadd.xlane.f32.xlu0 %v5320
        %v5322 = vpop.xlane.xlu0 %5321
        %v5323 = vadd.f32 %v5181, %v5182
        %v5324 = vadd.f32 %v5323, %v5183
        %v5325 = vadd.f32 %v5324, %v5184
        %v5326 = vadd.f32 %v5325, %v5185
        %v5327 = vadd.f32 %v5326, %v5186
        %v5328 = vadd.f32 %v5327, %v5187
        %v5329 = vadd.f32 %v5328, %v5188
        %5330 = vadd.xlane.f32.xlu0 %v5329
        %v5331 = vpop.xlane.xlu0 %5330
        %v5332 = vadd.f32 %v5189, %v5190
        %v5333 = vadd.f32 %v5332, %v5191
        %v5334 = vadd.f32 %v5333, %v5192
        %v5335 = vadd.f32 %v5334, %v5193
        %v5336 = vadd.f32 %v5335, %v5194
        %v5337 = vadd.f32 %v5336, %v5195
        %v5338 = vadd.f32 %v5337, %v5196
        %5339 = vadd.xlane.f32.xlu0 %v5338
        %v5340 = vpop.xlane.xlu0 %5339
        %s5341 = sld [smem:[#allocation2]]
        %v5342 = vstv %s5341
        %v5343 = vadd.f32 %v5205, %v5342
        %v5344 = vadd.f32 %v5214, %v5342
        %v5345 = vadd.f32 %v5223, %v5342
        %v5346 = vadd.f32 %v5232, %v5342
        %v5347 = vadd.f32 %v5241, %v5342
        %v5348 = vadd.f32 %v5250, %v5342
        %v5349 = vadd.f32 %v5259, %v5342
        %v5350 = vadd.f32 %v5268, %v5342
        %v5351 = vadd.f32 %v5277, %v5342
        %v5352 = vadd.f32 %v5286, %v5342
        %v5353 = vadd.f32 %v5295, %v5342
        %v5354 = vadd.f32 %v5304, %v5342
        %v5355 = vadd.f32 %v5313, %v5342
        %v5356 = vadd.f32 %v5322, %v5342
        %v5357 = vadd.f32 %v5331, %v5342
        %v5358 = vadd.f32 %v5340, %v5342
        %v5375 = vlaneseq
        %v5376 = vand.u32 %v5375, 127
        %v5377 = vperm.slane %v5343, %v5376
        %v5378 = vadd.s32 %v5376, 4294967288
        %v5379 = vperm.slane %v5344, %v5378
        %vm5380 = vcmask 130112
        %v5381 = vsel %vm5380, %v5379, %v5377
        %v5382 = vadd.s32 %v5376, 4294967280
        %v5383 = vperm.slane %v5345, %v5382
        %vm5384 = vcmask 195712
        %v5385 = vsel %vm5384, %v5383, %v5381
        %v5386 = vadd.s32 %v5376, 4294967272
        %v5387 = vperm.slane %v5346, %v5386
        %vm5388 = vcmask 261312
        %v5389 = vsel %vm5388, %v5387, %v5385
        %v5390 = vadd.s32 %v5376, 4294967264
        %v5391 = vperm.slane %v5347, %v5390
        %vm5392 = vcmask 326912
        %v5393 = vsel %vm5392, %v5391, %v5389
        %v5394 = vadd.s32 %v5376, 4294967256
        %v5395 = vperm.slane %v5348, %v5394
        %vm5396 = vcmask 392512
        %v5397 = vsel %vm5396, %v5395, %v5393
        %v5398 = vadd.s32 %v5376, 4294967248
        %v5399 = vperm.slane %v5349, %v5398
        %vm5400 = vcmask 458112
        %v5401 = vsel %vm5400, %v5399, %v5397
        %v5402 = vadd.s32 %v5376, 4294967240
        %v5403 = vperm.slane %v5350, %v5402
        %vm5404 = vcmask 523712
        %v5405 = vsel %vm5404, %v5403, %v5401
        %v5406 = vadd.s32 %v5376, 4294967232
        %v5407 = vperm.slane %v5351, %v5406
        %vm5408 = vcmask 589312
        %v5409 = vsel %vm5408, %v5407, %v5405
        %v5410 = vadd.s32 %v5376, 4294967224
        %v5411 = vperm.slane %v5352, %v5410
        %vm5412 = vcmask 654912
        %v5413 = vsel %vm5412, %v5411, %v5409
        %v5414 = vadd.s32 %v5376, 4294967216
        %v5415 = vperm.slane %v5353, %v5414
        %vm5416 = vcmask 720512
        %v5417 = vsel %vm5416, %v5415, %v5413
        %v5418 = vadd.s32 %v5376, 4294967208
        %v5419 = vperm.slane %v5354, %v5418
        %vm5420 = vcmask 786112
        %v5421 = vsel %vm5420, %v5419, %v5417
        %v5422 = vadd.s32 %v5376, 4294967200
        %v5423 = vperm.slane %v5355, %v5422
        %vm5424 = vcmask 851712
        %v5425 = vsel %vm5424, %v5423, %v5421
        %v5426 = vadd.s32 %v5376, 4294967192
        %v5427 = vperm.slane %v5356, %v5426
        %vm5428 = vcmask 917312
        %v5429 = vsel %vm5428, %v5427, %v5425
        %v5430 = vadd.s32 %v5376, 4294967184
        %v5431 = vperm.slane %v5357, %v5430
        %vm5432 = vcmask 982912
        %v5433 = vsel %vm5432, %v5431, %v5429
        %v5434 = vadd.s32 %v5376, 4294967176
        %v5435 = vperm.slane %v5358, %v5434
        %vm5436 = vcmask 1048512
        %v5437 = vsel %vm5436, %v5435, %v5433
        %5439 = vst [vmem:[%s249] sm:$0x1] %v5437
        %s5440 = sand.u32 %s120, 1
        %s5441 = scalar_lea.sflag [#allocation5], %s5440
        %s5442 = sand.u32 %s120, 1
        %s5443 = scalar_lea.vmem [#allocation9], %s5442
        // Predicated region
        $region49: #{tpu_custom_call.1} parent=35 // pred_check
          %p5444 = pneg %p130
        $region50: #{tpu_custom_call.1} parent=35 // pred_check_branch
          %5446 = sbr.rel (%p5444) target = $region52
        $region51: #{tpu_custom_call.1} parent=35 // pred_region
          %5448 = vsyncadd %s5441, 0
          %s5449 = scalar_lea.hbm %s4, %s23
          %s5451 = sshll.u32 %s5443, 4
          %s5452 = int_to_ptr.vmem [resolvable:$true] %s5451
          %s5453 = sshll.u32 %s5449, 4
          %s5454 = int_to_ptr.hbm [resolvable:$true] %s5453
          %5456 = dma.vmem_to_hbm [thread:$0]  %s5452, 16, %s5454, %s5441
        $region52: #{tpu_custom_call.1} parent=35 // pred_fallthru
          _
      $region36: #{tpu_custom_call.1} parent=5 // pred_fallthru
        _
      %p5457 = scmp.le.s32.totalorder 2, %s18
      // Predicated region
      $region53: #{tpu_custom_call.1} parent=5 // pred_check
        %p5458 = pneg %p5457
      $region54: #{tpu_custom_call.1} parent=5 // pred_check_branch
        %5460 = sbr.rel (%p5458) target = $region56
      $region55: #{tpu_custom_call.1} parent=5 // pred_region
        %s5461 = ssub.s32 %s18, 2
        // Predicated region
        $region57: #{tpu_custom_call.1} parent=55 // pred_check
          %p5462 = pneg %p136
        $region58: #{tpu_custom_call.1} parent=55 // pred_check_branch
          %5464 = sbr.rel (%p5462) target = $region60
        $region59: #{tpu_custom_call.1} parent=55 // pred_region
          %s5465 = sand.u32 %s121, 1
          %s5466 = scalar_lea.sflag [#allocation5], %s5465
          %s5467 = sand.u32 %s121, 1
          %s5468 = scalar_lea.vmem [#allocation9], %s5467
          %5470 = dma.done %s5466, 16
        $region60: #{tpu_custom_call.1} parent=55 // pred_fallthru
          _
      $region56: #{tpu_custom_call.1} parent=5 // pred_fallthru
        _
    $region6: #{tpu_custom_call.1} parent=1 // loop_footer
      %s22 = sadd.s32 1, %s18
    $region7: #{tpu_custom_call.1} parent=1 // loop_footer_branch
      %17 = sbr.rel target = $region3
    $region8: #{tpu_custom_call.1} parent=1 // loop_exit
      _
    %5471 = vsyncpa [#allocation4], 1
    %s5472 = scalar_lea.sflag [#allocation4], 1
    %5473 = vsyncpa %s5472, 1
    %5474 = vsyncpa [#allocation7], 1
    %5475 = vsyncpa [#allocation5], 1
    %s5476 = scalar_lea.sflag [#allocation5], 1
    %5477 = vsyncpa %s5476, 1

</llo_original>
